<compile_context>
chip_gen: v6e
topology: v6e:2x2x1
jax: 0.10.0
libtpu: 0.0.40
codegen_flags: <defaults>
</compile_context>

<pallas_src>
import functools

import jax
import jax.numpy as jnp
import numpy as np
from jax.experimental import pallas as pl
from jax.experimental.pallas import tpu as pltpu


def _round_up(x, m):
    return (x + m - 1) // m * m


def _vmem_capacity_bytes():
    """Physical VMEM of the current chip; conservative 64 MiB (v7x) fallback."""
    try:
        cap = getattr(pltpu.get_tpu_info(), "vmem_capacity_bytes", None)
        if cap:
            return int(cap)
    except Exception:
        pass
    return 64 * 1024 * 1024


def _choose_time_chunk(T, max_tc):
    """Largest divisor of T that is <= max_tc (keeps every chunk full, so the
    recurrence never sees padded timesteps)."""
    best = 1
    for c in range(1, min(T, max(1, max_tc)) + 1):
        if T % c == 0:
            best = c
    return best


def _sigmoid(x):
    # One EUP push (tanh) + VPU fma instead of a possible exp + reciprocal.
    return 0.5 * jnp.tanh(0.5 * x) + 0.5


# ----------------------------------------------------------------------------
# Pallas kernel: grid = (direction d, time-chunk c).  One chunk of the
# recurrence per grid step; h/c carried across chunks in VMEM scratch.
# ----------------------------------------------------------------------------
def _bilstm_kernel(x_ref, wih_ref, whh_ref, b_ref, *refs,
                   seq_out: bool, cell_out: bool, unroll: int):
    gx_scr, h_scr, c_scr = refs[-3], refs[-2], refs[-1]
    outs = refs[:-3]
    n = 0
    seq_ref = None
    if seq_out:
        seq_ref = outs[n]
        n += 1
    hn_ref = outs[n]
    n += 1
    cn_ref = outs[n] if cell_out else None

    d = pl.program_id(0)                  # direction: 0 = forward, 1 = backward
    c = pl.program_id(1)                  # time chunk (index maps reverse it for d=1)
    TC, B, I = x_ref.shape                # chunk len, batch (mult of 8), padded in-dim
    HP = whh_ref.shape[0]                 # padded hidden width (multiple of 128)

    # (Re)initialise the recurrent state at the first chunk of each direction.
    @pl.when(c == 0)
    def _():
        h_scr[...] = jnp.zeros_like(h_scr)
        c_scr[...] = jnp.zeros_like(c_scr)

    # Hoisted input projection for this chunk: one MXU-friendly matmul,
    # bias (b_ih + b_hh) folded in once.
    gx = jnp.dot(x_ref[...].reshape(TC * B, I), wih_ref[...],
                 preferred_element_type=jnp.float32) + b_ref[...]
    gx_scr[...] = gx.reshape(TC, B, 4 * HP)

    whh = whh_ref[...]                    # (HP, 4*HP) loaded once per chunk
    # Direction-dependent local-time walk, hoisted out of the loop.
    base = d * (TC - 1)
    sign = 1 - 2 * d

    def step(t, carry):
        h, c_state = carry
        tt = base + sign * t              # local (forward-order) time index
        gates = gx_scr[tt] + jnp.dot(h, whh, preferred_element_type=jnp.float32)
        # 128-lane-aligned gate slices, PyTorch order [i, f, g, o].
        i_g = _sigmoid(gates[:, 0 * HP:1 * HP])
        f_g = _sigmoid(gates[:, 1 * HP:2 * HP])
        g_g = jnp.tanh(gates[:, 2 * HP:3 * HP])
        o_g = _sigmoid(gates[:, 3 * HP:4 * HP])
        c_new = f_g * c_state + i_g * g_g
        h_new = o_g * jnp.tanh(c_new)
        if seq_out:
            # Backward direction writes already in forward time order.
            seq_ref[tt] = h_new
        return h_new, c_new

    h_fin, c_fin = jax.lax.fori_loop(0, TC, step, (h_scr[...], c_scr[...]),
                                     unroll=unroll)
    h_scr[...] = h_fin
    c_scr[...] = c_fin
    # hn/cn output blocks are resident across the chunk axis (same block index
    # for every c), so writing each chunk is a cheap VMEM store; only the final
    # value is written back to HBM.
    hn_ref[...] = h_fin
    if cell_out:
        cn_ref[...] = c_fin


# ----------------------------------------------------------------------------
# Wrapper: one bidirectional LSTM layer (both directions, all chunks, one call).
# ----------------------------------------------------------------------------
def _bilstm_layer(x, p, *, seq_out, cell_out):
    """x: (T, B_pad, I_pad) f32; p: prepared (padded, direction-stacked) params.

    Returns padded outputs:
      seq (optional): (T, B_pad, 2*HP)  [fwd in lanes :HP, bwd in lanes HP:]
      hn / cn:        (2, B_pad, HP)
    """
    T, B, I = x.shape
    HP = p["HP"]
    assert I == p["I_pad"] and B % 8 == 0

    # ---- VMEM-aware chunk sizing (v7x has half the VMEM of v5e/v6e). ----
    vmem_cap = _vmem_capacity_bytes()
    vmem_limit = min(int(0.75 * vmem_cap), 100 * 1024 * 1024)
    budget = int(0.6 * vmem_limit)                       # headroom for compiler temps
    fixed = 8 * (I * 4 * HP + HP * 4 * HP + 4 * HP)      # double-buffered weights+bias
    fixed += 4 * 4 * B * HP                              # h/c scratch + hn/cn blocks
    per_t = 4 * B * (2 * I + 4 * HP + (2 * HP if seq_out else 0))
    max_tc = max(1, (budget - fixed) // per_t)
    t_chunk = _choose_time_chunk(T, int(min(max_tc, 256)))
    nc = T // t_chunk

    def chunk_idx(d, c):                 # backward direction walks chunks in reverse
        return (1 - d) * c + d * (nc - 1 - c)

    in_specs = [
        pl.BlockSpec((t_chunk, B, I), lambda d, c: (chunk_idx(d, c), 0, 0)),   # x chunk
        pl.BlockSpec((None, I, 4 * HP), lambda d, c: (d, 0, 0)),               # W_ih^T
        pl.BlockSpec((None, HP, 4 * HP), lambda d, c: (d, 0, 0)),              # W_hh^T
        pl.BlockSpec((None, 1, 4 * HP), lambda d, c: (d, 0, 0)),               # bias
    ]

    out_shapes = []
    out_specs = []
    if seq_out:
        out_shapes.append(jax.ShapeDtypeStruct((T, B, 2 * HP), jnp.float32))
        out_specs.append(pl.BlockSpec((t_chunk, B, HP),
                                      lambda d, c: (chunk_idx(d, c), 0, d)))
    out_shapes.append(jax.ShapeDtypeStruct((2, B, HP), jnp.float32))
    out_specs.append(pl.BlockSpec((None, B, HP), lambda d, c: (d, 0, 0)))
    if cell_out:
        out_shapes.append(jax.ShapeDtypeStruct((2, B, HP), jnp.float32))
        out_specs.append(pl.BlockSpec((None, B, HP), lambda d, c: (d, 0, 0)))

    kernel = functools.partial(_bilstm_kernel, seq_out=seq_out, cell_out=cell_out,
                               unroll=min(8, t_chunk))

    results = pl.pallas_call(
        kernel,
        out_shape=tuple(out_shapes),
        grid_spec=pltpu.PrefetchScalarGridSpec(
            num_scalar_prefetch=0,
            grid=(2, nc),                                  # (direction, time chunk)
            in_specs=in_specs,
            out_specs=tuple(out_specs),
            scratch_shapes=[
                pltpu.VMEM((t_chunk, B, 4 * HP), jnp.float32),   # gx chunk
                pltpu.VMEM((B, HP), jnp.float32),                # h carry
                pltpu.VMEM((B, HP), jnp.float32),                # c carry
            ],
        ),
        compiler_params=pltpu.CompilerParams(
            dimension_semantics=("parallel", "arbitrary"),
            vmem_limit_bytes=vmem_limit),
    )(x, p["wih"], p["whh"], p["b"])

    if not isinstance(results, (tuple, list)):
        results = (results,)
    return tuple(results)


# ----------------------------------------------------------------------------
# Parameter preparation: PyTorch layout -> padded, transposed, direction-stacked.
# ----------------------------------------------------------------------------
def _prep_direction(w_ih, w_hh, b_ih, b_hh, I_pad, HP):
    """(4H,I),(4H,H),(4H,),(4H,) -> (I_pad,4HP), (HP,4HP), (1,4HP) with each
    gate occupying a full 128-lane-aligned block (zero-padded)."""
    H4, I = w_ih.shape
    H = H4 // 4
    w_ih_g = jnp.asarray(w_ih, jnp.float32).reshape(4, H, I)
    w_hh_g = jnp.asarray(w_hh, jnp.float32).reshape(4, H, H)
    b_g = jnp.asarray(b_ih + b_hh, jnp.float32).reshape(4, H)

    wih_p = jnp.zeros((4, HP, I_pad), jnp.float32).at[:, :H, :I].set(w_ih_g)
    whh_p = jnp.zeros((4, HP, HP), jnp.float32).at[:, :H, :H].set(w_hh_g)
    b_p = jnp.zeros((4, HP), jnp.float32).at[:, :H].set(b_g)

    wih_t = wih_p.transpose(2, 0, 1).reshape(I_pad, 4 * HP)   # x @ wih_t -> gates
    whh_t = whh_p.transpose(2, 0, 1).reshape(HP, 4 * HP)
    b_row = b_p.reshape(1, 4 * HP)
    return wih_t, whh_t, b_row


def prepare_encoder_params(raw):
    def prep_layer(layer, in_dim):
        H = layer["fwd"][1].shape[1]                 # w_hh: (4H, H)
        HP = _round_up(H, 128)
        I_pad = _round_up(in_dim, 128)
        f = _prep_direction(*layer["fwd"], I_pad, HP)
        b = _prep_direction(*layer["bwd"], I_pad, HP)
        return {
            "wih": jnp.stack([f[0], b[0]]),          # (2, I_pad, 4*HP)
            "whh": jnp.stack([f[1], b[1]]),          # (2, HP, 4*HP)
            "b": jnp.stack([f[2], b[2]]),            # (2, 1, 4*HP)
            "H": H, "HP": HP, "I": in_dim, "I_pad": I_pad,
        }

    num_features = raw["rnn1"]["fwd"][0].shape[1]
    hidden_dim = raw["rnn1"]["fwd"][1].shape[1]      # rnn2 input size == rnn1 hidden
    return {
        "rnn1": prep_layer(raw["rnn1"], num_features),
        "rnn2": prep_layer(raw["rnn2"], hidden_dim),
    }


# ----------------------------------------------------------------------------
# Encoder forward (PyTorch semantics).
# ----------------------------------------------------------------------------
def encoder_forward(x, params):
    """x: (seq_len, batch, num_features) ->
       (x2 (2, B, 2*emb), (hidden_n (2, B, emb), cell_n (2, B, emb)))"""
    T, B, F = x.shape
    p1, p2 = params["rnn1"], params["rnn2"]
    B_pad = _round_up(B, 8)

    # Pad batch to the f32 sublane tile and features to a 128-lane multiple.
    x_pad = jnp.zeros((T, B_pad, p1["I_pad"]), jnp.float32)
    x_pad = x_pad.at[:, :B, :F].set(x.astype(jnp.float32))

    # rnn1: only hidden_n is consumed by the encoder -> skip seq / cell outputs.
    (hn1,) = _bilstm_layer(x_pad, p1, seq_out=False, cell_out=False)

    # rnn2 input is hidden_n of rnn1, i.e. a length-2 sequence (fwd, bwd) of
    # (B, hidden_dim) features.  hn1 is already in that (padded) layout: its
    # padded lanes are exactly zero and p2's W_ih has zero rows there, and
    # HP(rnn1) == I_pad(rnn2) by construction.
    seq2, hn2, cn2 = _bilstm_layer(hn1, p2, seq_out=True, cell_out=True)

    H2, HP2 = p2["H"], p2["HP"]
    if H2 == HP2:
        out2 = seq2[:, :B, :]                                   # already [fwd|bwd]
    else:
        out2 = jnp.concatenate(
            [seq2[:, :B, :H2], seq2[:, :B, HP2:HP2 + H2]], axis=-1)
    return out2, (hn2[:, :B, :H2], cn2[:, :B, :H2])


# ----------------------------------------------------------------------------
# Deterministic parameter init (PyTorch-style uniform(-1/sqrt(H), 1/sqrt(H))).
# ----------------------------------------------------------------------------
def init_encoder_params(key, num_features, embedding_dim):
    hidden_dim = 2 * embedding_dim

    def lstm_dir_params(key, in_dim, hid):
        k = 1.0 / np.sqrt(hid)
        ks = jax.random.split(key, 4)
        w_ih = jax.random.uniform(ks[0], (4 * hid, in_dim), jnp.float32, -k, k)
        w_hh = jax.random.uniform(ks[1], (4 * hid, hid), jnp.float32, -k, k)
        b_ih = jax.random.uniform(ks[2], (4 * hid,), jnp.float32, -k, k)
        b_hh = jax.random.uniform(ks[3], (4 * hid,), jnp.float32, -k, k)
        return (w_ih, w_hh, b_ih, b_hh)

    k1, k2, k3, k4 = jax.random.split(key, 4)
    return {
        "rnn1": {"fwd": lstm_dir_params(k1, num_features, hidden_dim),
                 "bwd": lstm_dir_params(k2, num_features, hidden_dim)},
        "rnn2": {"fwd": lstm_dir_params(k3, hidden_dim, embedding_dim),
                 "bwd": lstm_dir_params(k4, hidden_dim, embedding_dim)},
    }


# ----------------------------------------------------------------------------
# Pure-JAX reference (lax.scan) for correctness checking.
# ----------------------------------------------------------------------------
def _lstm_direction_ref(x, w_ih, w_hh, b_ih, b_hh, *, reverse):
    T, B, _ = x.shape
    H = w_hh.shape[1]
    if reverse:
        x = x[::-1]

    def step(carry, x_t):
        h, c = carry
        gates = x_t @ w_ih.T + h @ w_hh.T + b_ih + b_hh
        i, f, g, o = jnp.split(gates, 4, axis=-1)
        i = jax.nn.sigmoid(i)
        f = jax.nn.sigmoid(f)
        g = jnp.tanh(g)
        o = jax.nn.sigmoid(o)
        c = f * c + i * g
        h = o * jnp.tanh(c)
        return (h, c), h

    (h, c), out = jax.lax.scan(
        step, (jnp.zeros((B, H), jnp.float32), jnp.zeros((B, H), jnp.float32)), x)
    if reverse:
        out = out[::-1]
    return out, h, c


def _bilstm_ref(x, params):
    out_f, hf, cf = _lstm_direction_ref(x, *params["fwd"], reverse=False)
    out_b, hb, cb = _lstm_direction_ref(x, *params["bwd"], reverse=True)
    return (jnp.concatenate([out_f, out_b], axis=-1),
            jnp.stack([hf, hb], axis=0),
            jnp.stack([cf, cb], axis=0))


def encoder_forward_ref(x, params):
    _, h1, _ = _bilstm_ref(x, params["rnn1"])
    out2, h2, c2 = _bilstm_ref(h1, params["rnn2"])
    return out2, (h2, c2)


if __name__ == "__main__":
    seq_len, batch, num_features, embedding_dim = 8, 2, 16, 32

    key = jax.random.PRNGKey(0)
    kx, kp = jax.random.split(key)
    x = jax.random.normal(kx, (seq_len, batch, num_features), jnp.float32)
    raw_params = init_encoder_params(kp, num_features, embedding_dim)
    prep_params = prepare_encoder_params(raw_params)

    fwd = jax.jit(functools.partial(encoder_forward, params=prep_params))
    out2, (h_n, c_n) = fwd(x)
    jax.block_until_ready((out2, h_n, c_n))

    assert out2.shape == (2, batch, 2 * embedding_dim)
    assert h_n.shape == (2, batch, embedding_dim)
    assert c_n.shape == (2, batch, embedding_dim)

    # Reference check against pure-JAX lax.scan implementation.
    out2_r, (h_n_r, c_n_r) = encoder_forward_ref(x, raw_params)
    np.testing.assert_allclose(np.asarray(out2), np.asarray(out2_r), rtol=3e-5, atol=3e-5)
    np.testing.assert_allclose(np.asarray(h_n), np.asarray(h_n_r), rtol=3e-5, atol=3e-5)
    np.testing.assert_allclose(np.asarray(c_n), np.asarray(c_n_r), rtol=3e-5, atol=3e-5)

    print("KERNEL_OK")
</pallas_src>

<mosaic_0001>
module attributes {stable_mosaic.version = 11 : i64} {
  func.func @_bilstm_kernel(%arg0: i32, %arg1: i32, %arg2: memref<2x8x128xf32, #tpu.memory_space<vmem>>, %arg3: memref<1x128x512xf32, #tpu.memory_space<vmem>>, %arg4: memref<1x128x512xf32, #tpu.memory_space<vmem>>, %arg5: memref<1x1x512xf32, #tpu.memory_space<vmem>>, %arg6: memref<2x8x128xf32, #tpu.memory_space<vmem>>, %arg7: memref<1x8x128xf32, #tpu.memory_space<vmem>>, %arg8: memref<1x8x128xf32, #tpu.memory_space<vmem>>, %arg9: memref<2x8x512xf32, #tpu.memory_space<vmem>>, %arg10: memref<8x128xf32, #tpu.memory_space<vmem>>, %arg11: memref<8x128xf32, #tpu.memory_space<vmem>>) attributes {dimension_semantics = [#tpu.dimension_semantics<parallel>, #tpu.dimension_semantics<arbitrary>], iteration_bounds = array<i64: 2, 1>, scalar_prefetch = 0 : i64, scratch_operands = 3 : i64, tpu.core_type = #tpu.core_type<tc>, window_params = [{transform_indices = @transform_0, window_bounds = array<i64: 2, 8, 128>}, {transform_indices = @transform_1, window_bounds = array<i64: 1, 128, 512>}, {transform_indices = @transform_2, window_bounds = array<i64: 1, 128, 512>}, {transform_indices = @transform_3, window_bounds = array<i64: 1, 1, 512>}, {transform_indices = @transform_4, window_bounds = array<i64: 2, 8, 128>}, {transform_indices = @transform_5, window_bounds = array<i64: 1, 8, 128>}, {transform_indices = @transform_6, window_bounds = array<i64: 1, 8, 128>}]} {
    %c0_i32 = arith.constant 0 : i32
    %0 = arith.cmpi eq, %arg1, %c0_i32 : i32
    %1 = arith.extui %0 : i1 to i32
    %c0_i32_0 = arith.constant 0 : i32
    %2 = arith.cmpi ne, %1, %c0_i32_0 : i32
    scf.if %2 {
      %cst_61 = arith.constant 0.000000e+00 : f32
      %113 = vector.broadcast %cst_61 : f32 to vector<8x128xf32>
      %c0_62 = arith.constant 0 : index
      %c0_63 = arith.constant 0 : index
      %114 = vector.load %arg10[%c0_62, %c0_63] : memref<8x128xf32, #tpu.memory_space<vmem>>, vector<8x128xf32>
      tpu.vector_store %arg10[%c0_62, %c0_63], %113 {strides = array<i32>} : memref<8x128xf32, #tpu.memory_space<vmem>>, vector<8x128xf32>,
      %cst_64 = arith.constant 0.000000e+00 : f32
      %115 = vector.broadcast %cst_64 : f32 to vector<8x128xf32>
      %c0_65 = arith.constant 0 : index
      %c0_66 = arith.constant 0 : index
      %116 = vector.load %arg11[%c0_65, %c0_66] : memref<8x128xf32, #tpu.memory_space<vmem>>, vector<8x128xf32>
      tpu.vector_store %arg11[%c0_65, %c0_66], %115 {strides = array<i32>} : memref<8x128xf32, #tpu.memory_space<vmem>>, vector<8x128xf32>,
    } else {
    }
    %c0 = arith.constant 0 : index
    %c0_1 = arith.constant 0 : index
    %c0_2 = arith.constant 0 : index
    %3 = vector.load %arg2[%c0, %c0_1, %c0_2] : memref<2x8x128xf32, #tpu.memory_space<vmem>>, vector<2x8x128xf32>
    %4 = vector.shape_cast %3 : vector<2x8x128xf32> to vector<16x128xf32>
    %c0_3 = arith.constant 0 : index
    %c0_4 = arith.constant 0 : index
    %c0_5 = arith.constant 0 : index
    %5 = vector.load %arg3[%c0_3, %c0_4, %c0_5] : memref<1x128x512xf32, #tpu.memory_space<vmem>>, vector<1x128x512xf32>
    %6 = vector.shape_cast %5 : vector<1x128x512xf32> to vector<128x512xf32>
    %cst = arith.constant dense<0.000000e+00> : vector<16x512xf32>
    %7 = tpu.matmul %4, %6, %cst {dimension_numbers = #tpu.dot_dimension_numbers<[1], [0], [0], [1], [0, 0, 1, 1], [], []>} : vector<16x128xf32>, vector<128x512xf32>, vector<16x512xf32> -> vector<16x512xf32>
    %c0_6 = arith.constant 0 : index
    %c0_7 = arith.constant 0 : index
    %c0_8 = arith.constant 0 : index
    %8 = vector.load %arg5[%c0_6, %c0_7, %c0_8] : memref<1x1x512xf32, #tpu.memory_space<vmem>>, vector<1x1x512xf32>
    %9 = vector.shape_cast %8 : vector<1x1x512xf32> to vector<1x512xf32>
    %10 = vector.broadcast %9 : vector<1x512xf32> to vector<16x512xf32>
    %11 = arith.addf %7, %10 : vector<16x512xf32>
    %12 = vector.shape_cast %11 : vector<16x512xf32> to vector<2x8x512xf32>
    %c0_9 = arith.constant 0 : index
    %c0_10 = arith.constant 0 : index
    %c0_11 = arith.constant 0 : index
    %13 = vector.load %arg9[%c0_9, %c0_10, %c0_11] : memref<2x8x512xf32, #tpu.memory_space<vmem>>, vector<2x8x512xf32>
    tpu.vector_store %arg9[%c0_9, %c0_10, %c0_11], %12 {strides = array<i32>} : memref<2x8x512xf32, #tpu.memory_space<vmem>>, vector<2x8x512xf32>,
    %c0_12 = arith.constant 0 : index
    %c0_13 = arith.constant 0 : index
    %c0_14 = arith.constant 0 : index
    %14 = vector.load %arg4[%c0_12, %c0_13, %c0_14] : memref<1x128x512xf32, #tpu.memory_space<vmem>>, vector<1x128x512xf32>
    %15 = vector.shape_cast %14 : vector<1x128x512xf32> to vector<128x512xf32>
    %c1_i32 = arith.constant 1 : i32
    %16 = arith.muli %arg0, %c1_i32 : i32
    %c2_i32 = arith.constant 2 : i32
    %17 = arith.muli %c2_i32, %arg0 : i32
    %c1_i32_15 = arith.constant 1 : i32
    %18 = arith.subi %c1_i32_15, %17 : i32
    %c0_16 = arith.constant 0 : index
    %c0_17 = arith.constant 0 : index
    %19 = vector.load %arg10[%c0_16, %c0_17] : memref<8x128xf32, #tpu.memory_space<vmem>>, vector<8x128xf32>
    %c0_18 = arith.constant 0 : index
    %c0_19 = arith.constant 0 : index
    %20 = vector.load %arg11[%c0_18, %c0_19] : memref<8x128xf32, #tpu.memory_space<vmem>>, vector<8x128xf32>
    %c0_i32_20 = arith.constant 0 : i32
    %21 = arith.muli %18, %c0_i32_20 : i32
    %22 = arith.addi %16, %21 : i32
    %23 = arith.index_cast %22 : i32 to index
    %c0_21 = arith.constant 0 : index
    %c0_22 = arith.constant 0 : index
    %24 = vector.load %arg9[%23, %c0_21, %c0_22] : memref<2x8x512xf32, #tpu.memory_space<vmem>>, vector<1x8x512xf32>
    %25 = vector.shape_cast %24 : vector<1x8x512xf32> to vector<8x512xf32>
    %cst_23 = arith.constant dense<0.000000e+00> : vector<8x512xf32>
    %26 = tpu.matmul %19, %15, %cst_23 {dimension_numbers = #tpu.dot_dimension_numbers<[1], [0], [0], [1], [0, 0, 1, 1], [], []>} : vector<8x128xf32>, vector<128x512xf32>, vector<8x512xf32> -> vector<8x512xf32>
    %27 = arith.addf %25, %26 : vector<8x512xf32>
    %28 = vector.extract_strided_slice %27 {offsets = [0, 0], sizes = [8, 128], strides = [1, 1]} : vector<8x512xf32> to vector<8x128xf32>
    %cst_24 = arith.constant 5.000000e-01 : f32
    %29 = vector.broadcast %cst_24 : f32 to vector<8x128xf32>
    %30 = arith.mulf %29, %28 : vector<8x128xf32>
    %31 = math.tanh %30 : vector<8x128xf32>
    %cst_25 = arith.constant 5.000000e-01 : f32
    %32 = vector.broadcast %cst_25 : f32 to vector<8x128xf32>
    %33 = arith.mulf %32, %31 : vector<8x128xf32>
    %cst_26 = arith.constant 5.000000e-01 : f32
    %34 = vector.broadcast %cst_26 : f32 to vector<8x128xf32>
    %35 = arith.addf %33, %34 : vector<8x128xf32>
    %36 = vector.extract_strided_slice %27 {offsets = [0, 128], sizes = [8, 128], strides = [1, 1]} : vector<8x512xf32> to vector<8x128xf32>
    %cst_27 = arith.constant 5.000000e-01 : f32
    %37 = vector.broadcast %cst_27 : f32 to vector<8x128xf32>
    %38 = arith.mulf %37, %36 : vector<8x128xf32>
    %39 = math.tanh %38 : vector<8x128xf32>
    %cst_28 = arith.constant 5.000000e-01 : f32
    %40 = vector.broadcast %cst_28 : f32 to vector<8x128xf32>
    %41 = arith.mulf %40, %39 : vector<8x128xf32>
    %cst_29 = arith.constant 5.000000e-01 : f32
    %42 = vector.broadcast %cst_29 : f32 to vector<8x128xf32>
    %43 = arith.addf %41, %42 : vector<8x128xf32>
    %44 = vector.extract_strided_slice %27 {offsets = [0, 256], sizes = [8, 128], strides = [1, 1]} : vector<8x512xf32> to vector<8x128xf32>
    %45 = math.tanh %44 : vector<8x128xf32>
    %46 = vector.extract_strided_slice %27 {offsets = [0, 384], sizes = [8, 128], strides = [1, 1]} : vector<8x512xf32> to vector<8x128xf32>
    %cst_30 = arith.constant 5.000000e-01 : f32
    %47 = vector.broadcast %cst_30 : f32 to vector<8x128xf32>
    %48 = arith.mulf %47, %46 : vector<8x128xf32>
    %49 = math.tanh %48 : vector<8x128xf32>
    %cst_31 = arith.constant 5.000000e-01 : f32
    %50 = vector.broadcast %cst_31 : f32 to vector<8x128xf32>
    %51 = arith.mulf %50, %49 : vector<8x128xf32>
    %cst_32 = arith.constant 5.000000e-01 : f32
    %52 = vector.broadcast %cst_32 : f32 to vector<8x128xf32>
    %53 = arith.addf %51, %52 : vector<8x128xf32>
    %54 = arith.mulf %43, %20 : vector<8x128xf32>
    %55 = arith.mulf %35, %45 : vector<8x128xf32>
    %56 = arith.addf %54, %55 : vector<8x128xf32>
    %57 = math.tanh %56 : vector<8x128xf32>
    %58 = arith.mulf %53, %57 : vector<8x128xf32>
    %59 = arith.index_cast %22 : i32 to index
    %c0_33 = arith.constant 0 : index
    %c0_34 = arith.constant 0 : index
    %60 = vector.load %arg6[%59, %c0_33, %c0_34] : memref<2x8x128xf32, #tpu.memory_space<vmem>>, vector<1x8x128xf32>
    %61 = vector.shape_cast %60 : vector<1x8x128xf32> to vector<8x128xf32>
    %62 = vector.shape_cast %58 : vector<8x128xf32> to vector<1x8x128xf32>
    tpu.vector_store %arg6[%59, %c0_33, %c0_34], %62 {strides = array<i32>} : memref<2x8x128xf32, #tpu.memory_space<vmem>>, vector<1x8x128xf32>,
    %c1_i32_35 = arith.constant 1 : i32
    %63 = arith.muli %18, %c1_i32_35 : i32
    %64 = arith.addi %16, %63 : i32
    %65 = arith.index_cast %64 : i32 to index
    %c0_36 = arith.constant 0 : index
    %c0_37 = arith.constant 0 : index
    %66 = vector.load %arg9[%65, %c0_36, %c0_37] : memref<2x8x512xf32, #tpu.memory_space<vmem>>, vector<1x8x512xf32>
    %67 = vector.shape_cast %66 : vector<1x8x512xf32> to vector<8x512xf32>
    %cst_38 = arith.constant dense<0.000000e+00> : vector<8x512xf32>
    %68 = tpu.matmul %58, %15, %cst_38 {dimension_numbers = #tpu.dot_dimension_numbers<[1], [0], [0], [1], [0, 0, 1, 1], [], []>} : vector<8x128xf32>, vector<128x512xf32>, vector<8x512xf32> -> vector<8x512xf32>
    %69 = arith.addf %67, %68 : vector<8x512xf32>
    %70 = vector.extract_strided_slice %69 {offsets = [0, 0], sizes = [8, 128], strides = [1, 1]} : vector<8x512xf32> to vector<8x128xf32>
    %cst_39 = arith.constant 5.000000e-01 : f32
    %71 = vector.broadcast %cst_39 : f32 to vector<8x128xf32>
    %72 = arith.mulf %71, %70 : vector<8x128xf32>
    %73 = math.tanh %72 : vector<8x128xf32>
    %cst_40 = arith.constant 5.000000e-01 : f32
    %74 = vector.broadcast %cst_40 : f32 to vector<8x128xf32>
    %75 = arith.mulf %74, %73 : vector<8x128xf32>
    %cst_41 = arith.constant 5.000000e-01 : f32
    %76 = vector.broadcast %cst_41 : f32 to vector<8x128xf32>
    %77 = arith.addf %75, %76 : vector<8x128xf32>
    %78 = vector.extract_strided_slice %69 {offsets = [0, 128], sizes = [8, 128], strides = [1, 1]} : vector<8x512xf32> to vector<8x128xf32>
    %cst_42 = arith.constant 5.000000e-01 : f32
    %79 = vector.broadcast %cst_42 : f32 to vector<8x128xf32>
    %80 = arith.mulf %79, %78 : vector<8x128xf32>
    %81 = math.tanh %80 : vector<8x128xf32>
    %cst_43 = arith.constant 5.000000e-01 : f32
    %82 = vector.broadcast %cst_43 : f32 to vector<8x128xf32>
    %83 = arith.mulf %82, %81 : vector<8x128xf32>
    %cst_44 = arith.constant 5.000000e-01 : f32
    %84 = vector.broadcast %cst_44 : f32 to vector<8x128xf32>
    %85 = arith.addf %83, %84 : vector<8x128xf32>
    %86 = vector.extract_strided_slice %69 {offsets = [0, 256], sizes = [8, 128], strides = [1, 1]} : vector<8x512xf32> to vector<8x128xf32>
    %87 = math.tanh %86 : vector<8x128xf32>
    %88 = vector.extract_strided_slice %69 {offsets = [0, 384], sizes = [8, 128], strides = [1, 1]} : vector<8x512xf32> to vector<8x128xf32>
    %cst_45 = arith.constant 5.000000e-01 : f32
    %89 = vector.broadcast %cst_45 : f32 to vector<8x128xf32>
    %90 = arith.mulf %89, %88 : vector<8x128xf32>
    %91 = math.tanh %90 : vector<8x128xf32>
    %cst_46 = arith.constant 5.000000e-01 : f32
    %92 = vector.broadcast %cst_46 : f32 to vector<8x128xf32>
    %93 = arith.mulf %92, %91 : vector<8x128xf32>
    %cst_47 = arith.constant 5.000000e-01 : f32
    %94 = vector.broadcast %cst_47 : f32 to vector<8x128xf32>
    %95 = arith.addf %93, %94 : vector<8x128xf32>
    %96 = arith.mulf %85, %56 : vector<8x128xf32>
    %97 = arith.mulf %77, %87 : vector<8x128xf32>
    %98 = arith.addf %96, %97 : vector<8x128xf32>
    %99 = math.tanh %98 : vector<8x128xf32>
    %100 = arith.mulf %95, %99 : vector<8x128xf32>
    %101 = arith.index_cast %64 : i32 to index
    %c0_48 = arith.constant 0 : index
    %c0_49 = arith.constant 0 : index
    %102 = vector.load %arg6[%101, %c0_48, %c0_49] : memref<2x8x128xf32, #tpu.memory_space<vmem>>, vector<1x8x128xf32>
    %103 = vector.shape_cast %102 : vector<1x8x128xf32> to vector<8x128xf32>
    %104 = vector.shape_cast %100 : vector<8x128xf32> to vector<1x8x128xf32>
    tpu.vector_store %arg6[%101, %c0_48, %c0_49], %104 {strides = array<i32>} : memref<2x8x128xf32, #tpu.memory_space<vmem>>, vector<1x8x128xf32>,
    %c2_i32_50 = arith.constant 2 : i32
    %c0_51 = arith.constant 0 : index
    %c0_52 = arith.constant 0 : index
    %105 = vector.load %arg10[%c0_51, %c0_52] : memref<8x128xf32, #tpu.memory_space<vmem>>, vector<8x128xf32>
    tpu.vector_store %arg10[%c0_51, %c0_52], %100 {strides = array<i32>} : memref<8x128xf32, #tpu.memory_space<vmem>>, vector<8x128xf32>,
    %c0_53 = arith.constant 0 : index
    %c0_54 = arith.constant 0 : index
    %106 = vector.load %arg11[%c0_53, %c0_54] : memref<8x128xf32, #tpu.memory_space<vmem>>, vector<8x128xf32>
    tpu.vector_store %arg11[%c0_53, %c0_54], %98 {strides = array<i32>} : memref<8x128xf32, #tpu.memory_space<vmem>>, vector<8x128xf32>,
    %c0_55 = arith.constant 0 : index
    %c0_56 = arith.constant 0 : index
    %c0_57 = arith.constant 0 : index
    %107 = vector.load %arg7[%c0_55, %c0_56, %c0_57] : memref<1x8x128xf32, #tpu.memory_space<vmem>>, vector<1x8x128xf32>
    %108 = vector.shape_cast %107 : vector<1x8x128xf32> to vector<8x128xf32>
    %109 = vector.shape_cast %100 : vector<8x128xf32> to vector<1x8x128xf32>
    tpu.vector_store %arg7[%c0_55, %c0_56, %c0_57], %109 {strides = array<i32>} : memref<1x8x128xf32, #tpu.memory_space<vmem>>, vector<1x8x128xf32>,
    %c0_58 = arith.constant 0 : index
    %c0_59 = arith.constant 0 : index
    %c0_60 = arith.constant 0 : index
    %110 = vector.load %arg8[%c0_58, %c0_59, %c0_60] : memref<1x8x128xf32, #tpu.memory_space<vmem>>, vector<1x8x128xf32>
    %111 = vector.shape_cast %110 : vector<1x8x128xf32> to vector<8x128xf32>
    %112 = vector.shape_cast %98 : vector<8x128xf32> to vector<1x8x128xf32>
    tpu.vector_store %arg8[%c0_58, %c0_59, %c0_60], %112 {strides = array<i32>} : memref<1x8x128xf32, #tpu.memory_space<vmem>>, vector<1x8x128xf32>,
    return
  }
  func.func @transform_0(%arg0: i32, %arg1: i32) -> (i32, i32, i32) {
    %c1_i32 = arith.constant 1 : i32
    %0 = arith.subi %c1_i32, %arg0 : i32
    %1 = arith.muli %0, %arg1 : i32
    %c0_i32 = arith.constant 0 : i32
    %2 = arith.subi %c0_i32, %arg1 : i32
    %3 = arith.muli %arg0, %2 : i32
    %4 = arith.addi %1, %3 : i32
    %c0_i32_0 = arith.constant 0 : i32
    %c0_i32_1 = arith.constant 0 : i32
    %c0_i32_2 = arith.constant 0 : i32
    return %4, %c0_i32_0, %c0_i32_1 : i32, i32, i32
  }
  func.func @transform_1(%arg0: i32, %arg1: i32) -> (i32, i32, i32) {
    %c0_i32 = arith.constant 0 : i32
    %c0_i32_0 = arith.constant 0 : i32
    %c0_i32_1 = arith.constant 0 : i32
    return %arg0, %c0_i32, %c0_i32_0 : i32, i32, i32
  }
  func.func @transform_2(%arg0: i32, %arg1: i32) -> (i32, i32, i32) {
    %c0_i32 = arith.constant 0 : i32
    %c0_i32_0 = arith.constant 0 : i32
    %c0_i32_1 = arith.constant 0 : i32
    return %arg0, %c0_i32, %c0_i32_0 : i32, i32, i32
  }
  func.func @transform_3(%arg0: i32, %arg1: i32) -> (i32, i32, i32) {
    %c0_i32 = arith.constant 0 : i32
    %c0_i32_0 = arith.constant 0 : i32
    %c0_i32_1 = arith.constant 0 : i32
    return %arg0, %c0_i32, %c0_i32_0 : i32, i32, i32
  }
  func.func @transform_4(%arg0: i32, %arg1: i32) -> (i32, i32, i32) {
    %c1_i32 = arith.constant 1 : i32
    %0 = arith.subi %c1_i32, %arg0 : i32
    %1 = arith.muli %0, %arg1 : i32
    %c0_i32 = arith.constant 0 : i32
    %2 = arith.subi %c0_i32, %arg1 : i32
    %3 = arith.muli %arg0, %2 : i32
    %4 = arith.addi %1, %3 : i32
    %c0_i32_0 = arith.constant 0 : i32
    %c0_i32_1 = arith.constant 0 : i32
    return %4, %c0_i32_0, %arg0 : i32, i32, i32
  }
  func.func @transform_5(%arg0: i32, %arg1: i32) -> (i32, i32, i32) {
    %c0_i32 = arith.constant 0 : i32
    %c0_i32_0 = arith.constant 0 : i32
    %c0_i32_1 = arith.constant 0 : i32
    return %arg0, %c0_i32, %c0_i32_0 : i32, i32, i32
  }
  func.func @transform_6(%arg0: i32, %arg1: i32) -> (i32, i32, i32) {
    %c0_i32 = arith.constant 0 : i32
    %c0_i32_0 = arith.constant 0 : i32
    %c0_i32_1 = arith.constant 0 : i32
    return %arg0, %c0_i32, %c0_i32_0 : i32, i32, i32
  }
}

module attributes {stable_mosaic.version = 11 : i64} {
  func.func @_bilstm_kernel(%arg0: i32, %arg1: i32, %arg2: memref<8x8x128xf32, #tpu.memory_space<vmem>>, %arg3: memref<1x128x512xf32, #tpu.memory_space<vmem>>, %arg4: memref<1x128x512xf32, #tpu.memory_space<vmem>>, %arg5: memref<1x1x512xf32, #tpu.memory_space<vmem>>, %arg6: memref<1x8x128xf32, #tpu.memory_space<vmem>>, %arg7: memref<8x8x512xf32, #tpu.memory_space<vmem>>, %arg8: memref<8x128xf32, #tpu.memory_space<vmem>>, %arg9: memref<8x128xf32, #tpu.memory_space<vmem>>) attributes {dimension_semantics = [#tpu.dimension_semantics<parallel>, #tpu.dimension_semantics<arbitrary>], iteration_bounds = array<i64: 2, 1>, scalar_prefetch = 0 : i64, scratch_operands = 3 : i64, tpu.core_type = #tpu.core_type<tc>, window_params = [{transform_indices = @transform_0, window_bounds = array<i64: 8, 8, 128>}, {transform_indices = @transform_1, window_bounds = array<i64: 1, 128, 512>}, {transform_indices = @transform_2, window_bounds = array<i64: 1, 128, 512>}, {transform_indices = @transform_3, window_bounds = array<i64: 1, 1, 512>}, {transform_indices = @transform_4, window_bounds = array<i64: 1, 8, 128>}]} {
    %c0_i32 = arith.constant 0 : i32
    %0 = arith.cmpi eq, %arg1, %c0_i32 : i32
    %1 = arith.extui %0 : i1 to i32
    %c0_i32_0 = arith.constant 0 : i32
    %2 = arith.cmpi ne, %1, %c0_i32_0 : i32
    scf.if %2 {
      %cst_126 = arith.constant 0.000000e+00 : f32
      %330 = vector.broadcast %cst_126 : f32 to vector<8x128xf32>
      %c0_127 = arith.constant 0 : index
      %c0_128 = arith.constant 0 : index
      %331 = vector.load %arg8[%c0_127, %c0_128] : memref<8x128xf32, #tpu.memory_space<vmem>>, vector<8x128xf32>
      tpu.vector_store %arg8[%c0_127, %c0_128], %330 {strides = array<i32>} : memref<8x128xf32, #tpu.memory_space<vmem>>, vector<8x128xf32>,
      %cst_129 = arith.constant 0.000000e+00 : f32
      %332 = vector.broadcast %cst_129 : f32 to vector<8x128xf32>
      %c0_130 = arith.constant 0 : index
      %c0_131 = arith.constant 0 : index
      %333 = vector.load %arg9[%c0_130, %c0_131] : memref<8x128xf32, #tpu.memory_space<vmem>>, vector<8x128xf32>
      tpu.vector_store %arg9[%c0_130, %c0_131], %332 {strides = array<i32>} : memref<8x128xf32, #tpu.memory_space<vmem>>, vector<8x128xf32>,
    } else {
    }
    %c0 = arith.constant 0 : index
    %c0_1 = arith.constant 0 : index
    %c0_2 = arith.constant 0 : index
    %3 = vector.load %arg2[%c0, %c0_1, %c0_2] : memref<8x8x128xf32, #tpu.memory_space<vmem>>, vector<8x8x128xf32>
    %4 = vector.shape_cast %3 : vector<8x8x128xf32> to vector<64x128xf32>
    %c0_3 = arith.constant 0 : index
    %c0_4 = arith.constant 0 : index
    %c0_5 = arith.constant 0 : index
    %5 = vector.load %arg3[%c0_3, %c0_4, %c0_5] : memref<1x128x512xf32, #tpu.memory_space<vmem>>, vector<1x128x512xf32>
    %6 = vector.shape_cast %5 : vector<1x128x512xf32> to vector<128x512xf32>
    %cst = arith.constant dense<0.000000e+00> : vector<64x512xf32>
    %7 = tpu.matmul %4, %6, %cst {dimension_numbers = #tpu.dot_dimension_numbers<[1], [0], [0], [1], [0, 0, 1, 1], [], []>} : vector<64x128xf32>, vector<128x512xf32>, vector<64x512xf32> -> vector<64x512xf32>
    %c0_6 = arith.constant 0 : index
    %c0_7 = arith.constant 0 : index
    %c0_8 = arith.constant 0 : index
    %8 = vector.load %arg5[%c0_6, %c0_7, %c0_8] : memref<1x1x512xf32, #tpu.memory_space<vmem>>, vector<1x1x512xf32>
    %9 = vector.shape_cast %8 : vector<1x1x512xf32> to vector<1x512xf32>
    %10 = vector.broadcast %9 : vector<1x512xf32> to vector<64x512xf32>
    %11 = arith.addf %7, %10 : vector<64x512xf32>
    %12 = vector.shape_cast %11 : vector<64x512xf32> to vector<8x8x512xf32>
    %c0_9 = arith.constant 0 : index
    %c0_10 = arith.constant 0 : index
    %c0_11 = arith.constant 0 : index
    %13 = vector.load %arg7[%c0_9, %c0_10, %c0_11] : memref<8x8x512xf32, #tpu.memory_space<vmem>>, vector<8x8x512xf32>
    tpu.vector_store %arg7[%c0_9, %c0_10, %c0_11], %12 {strides = array<i32>} : memref<8x8x512xf32, #tpu.memory_space<vmem>>, vector<8x8x512xf32>,
    %c0_12 = arith.constant 0 : index
    %c0_13 = arith.constant 0 : index
    %c0_14 = arith.constant 0 : index
    %14 = vector.load %arg4[%c0_12, %c0_13, %c0_14] : memref<1x128x512xf32, #tpu.memory_space<vmem>>, vector<1x128x512xf32>
    %15 = vector.shape_cast %14 : vector<1x128x512xf32> to vector<128x512xf32>
    %c7_i32 = arith.constant 7 : i32
    %16 = arith.muli %arg0, %c7_i32 : i32
    %c2_i32 = arith.constant 2 : i32
    %17 = arith.muli %c2_i32, %arg0 : i32
    %c1_i32 = arith.constant 1 : i32
    %18 = arith.subi %c1_i32, %17 : i32
    %c0_15 = arith.constant 0 : index
    %c0_16 = arith.constant 0 : index
    %19 = vector.load %arg8[%c0_15, %c0_16] : memref<8x128xf32, #tpu.memory_space<vmem>>, vector<8x128xf32>
    %c0_17 = arith.constant 0 : index
    %c0_18 = arith.constant 0 : index
    %20 = vector.load %arg9[%c0_17, %c0_18] : memref<8x128xf32, #tpu.memory_space<vmem>>, vector<8x128xf32>
    %c0_i32_19 = arith.constant 0 : i32
    %21 = arith.muli %18, %c0_i32_19 : i32
    %22 = arith.addi %16, %21 : i32
    %23 = arith.index_cast %22 : i32 to index
    %c0_20 = arith.constant 0 : index
    %c0_21 = arith.constant 0 : index
    %24 = vector.load %arg7[%23, %c0_20, %c0_21] : memref<8x8x512xf32, #tpu.memory_space<vmem>>, vector<1x8x512xf32>
    %25 = vector.shape_cast %24 : vector<1x8x512xf32> to vector<8x512xf32>
    %cst_22 = arith.constant dense<0.000000e+00> : vector<8x512xf32>
    %26 = tpu.matmul %19, %15, %cst_22 {dimension_numbers = #tpu.dot_dimension_numbers<[1], [0], [0], [1], [0, 0, 1, 1], [], []>} : vector<8x128xf32>, vector<128x512xf32>, vector<8x512xf32> -> vector<8x512xf32>
    %27 = arith.addf %25, %26 : vector<8x512xf32>
    %28 = vector.extract_strided_slice %27 {offsets = [0, 0], sizes = [8, 128], strides = [1, 1]} : vector<8x512xf32> to vector<8x128xf32>
    %cst_23 = arith.constant 5.000000e-01 : f32
    %29 = vector.broadcast %cst_23 : f32 to vector<8x128xf32>
    %30 = arith.mulf %29, %28 : vector<8x128xf32>
    %31 = math.tanh %30 : vector<8x128xf32>
    %cst_24 = arith.constant 5.000000e-01 : f32
    %32 = vector.broadcast %cst_24 : f32 to vector<8x128xf32>
    %33 = arith.mulf %32, %31 : vector<8x128xf32>
    %cst_25 = arith.constant 5.000000e-01 : f32
    %34 = vector.broadcast %cst_25 : f32 to vector<8x128xf32>
    %35 = arith.addf %33, %34 : vector<8x128xf32>
    %36 = vector.extract_strided_slice %27 {offsets = [0, 128], sizes = [8, 128], strides = [1, 1]} : vector<8x512xf32> to vector<8x128xf32>
    %cst_26 = arith.constant 5.000000e-01 : f32
    %37 = vector.broadcast %cst_26 : f32 to vector<8x128xf32>
    %38 = arith.mulf %37, %36 : vector<8x128xf32>
    %39 = math.tanh %38 : vector<8x128xf32>
    %cst_27 = arith.constant 5.000000e-01 : f32
    %40 = vector.broadcast %cst_27 : f32 to vector<8x128xf32>
    %41 = arith.mulf %40, %39 : vector<8x128xf32>
    %cst_28 = arith.constant 5.000000e-01 : f32
    %42 = vector.broadcast %cst_28 : f32 to vector<8x128xf32>
    %43 = arith.addf %41, %42 : vector<8x128xf32>
    %44 = vector.extract_strided_slice %27 {offsets = [0, 256], sizes = [8, 128], strides = [1, 1]} : vector<8x512xf32> to vector<8x128xf32>
    %45 = math.tanh %44 : vector<8x128xf32>
    %46 = vector.extract_strided_slice %27 {offsets = [0, 384], sizes = [8, 128], strides = [1, 1]} : vector<8x512xf32> to vector<8x128xf32>
    %cst_29 = arith.constant 5.000000e-01 : f32
    %47 = vector.broadcast %cst_29 : f32 to vector<8x128xf32>
    %48 = arith.mulf %47, %46 : vector<8x128xf32>
    %49 = math.tanh %48 : vector<8x128xf32>
    %cst_30 = arith.constant 5.000000e-01 : f32
    %50 = vector.broadcast %cst_30 : f32 to vector<8x128xf32>
    %51 = arith.mulf %50, %49 : vector<8x128xf32>
    %cst_31 = arith.constant 5.000000e-01 : f32
    %52 = vector.broadcast %cst_31 : f32 to vector<8x128xf32>
    %53 = arith.addf %51, %52 : vector<8x128xf32>
    %54 = arith.mulf %43, %20 : vector<8x128xf32>
    %55 = arith.mulf %35, %45 : vector<8x128xf32>
    %56 = arith.addf %54, %55 : vector<8x128xf32>
    %57 = math.tanh %56 : vector<8x128xf32>
    %58 = arith.mulf %53, %57 : vector<8x128xf32>
    %c1_i32_32 = arith.constant 1 : i32
    %59 = arith.muli %18, %c1_i32_32 : i32
    %60 = arith.addi %16, %59 : i32
    %61 = arith.index_cast %60 : i32 to index
    %c0_33 = arith.constant 0 : index
    %c0_34 = arith.constant 0 : index
    %62 = vector.load %arg7[%61, %c0_33, %c0_34] : memref<8x8x512xf32, #tpu.memory_space<vmem>>, vector<1x8x512xf32>
    %63 = vector.shape_cast %62 : vector<1x8x512xf32> to vector<8x512xf32>
    %cst_35 = arith.constant dense<0.000000e+00> : vector<8x512xf32>
    %64 = tpu.matmul %58, %15, %cst_35 {dimension_numbers = #tpu.dot_dimension_numbers<[1], [0], [0], [1], [0, 0, 1, 1], [], []>} : vector<8x128xf32>, vector<128x512xf32>, vector<8x512xf32> -> vector<8x512xf32>
    %65 = arith.addf %63, %64 : vector<8x512xf32>
    %66 = vector.extract_strided_slice %65 {offsets = [0, 0], sizes = [8, 128], strides = [1, 1]} : vector<8x512xf32> to vector<8x128xf32>
    %cst_36 = arith.constant 5.000000e-01 : f32
    %67 = vector.broadcast %cst_36 : f32 to vector<8x128xf32>
    %68 = arith.mulf %67, %66 : vector<8x128xf32>
    %69 = math.tanh %68 : vector<8x128xf32>
    %cst_37 = arith.constant 5.000000e-01 : f32
    %70 = vector.broadcast %cst_37 : f32 to vector<8x128xf32>
    %71 = arith.mulf %70, %69 : vector<8x128xf32>
    %cst_38 = arith.constant 5.000000e-01 : f32
    %72 = vector.broadcast %cst_38 : f32 to vector<8x128xf32>
    %73 = arith.addf %71, %72 : vector<8x128xf32>
    %74 = vector.extract_strided_slice %65 {offsets = [0, 128], sizes = [8, 128], strides = [1, 1]} : vector<8x512xf32> to vector<8x128xf32>
    %cst_39 = arith.constant 5.000000e-01 : f32
    %75 = vector.broadcast %cst_39 : f32 to vector<8x128xf32>
    %76 = arith.mulf %75, %74 : vector<8x128xf32>
    %77 = math.tanh %76 : vector<8x128xf32>
    %cst_40 = arith.constant 5.000000e-01 : f32
    %78 = vector.broadcast %cst_40 : f32 to vector<8x128xf32>
    %79 = arith.mulf %78, %77 : vector<8x128xf32>
    %cst_41 = arith.constant 5.000000e-01 : f32
    %80 = vector.broadcast %cst_41 : f32 to vector<8x128xf32>
    %81 = arith.addf %79, %80 : vector<8x128xf32>
    %82 = vector.extract_strided_slice %65 {offsets = [0, 256], sizes = [8, 128], strides = [1, 1]} : vector<8x512xf32> to vector<8x128xf32>
    %83 = math.tanh %82 : vector<8x128xf32>
    %84 = vector.extract_strided_slice %65 {offsets = [0, 384], sizes = [8, 128], strides = [1, 1]} : vector<8x512xf32> to vector<8x128xf32>
    %cst_42 = arith.constant 5.000000e-01 : f32
    %85 = vector.broadcast %cst_42 : f32 to vector<8x128xf32>
    %86 = arith.mulf %85, %84 : vector<8x128xf32>
    %87 = math.tanh %86 : vector<8x128xf32>
    %cst_43 = arith.constant 5.000000e-01 : f32
    %88 = vector.broadcast %cst_43 : f32 to vector<8x128xf32>
    %89 = arith.mulf %88, %87 : vector<8x128xf32>
    %cst_44 = arith.constant 5.000000e-01 : f32
    %90 = vector.broadcast %cst_44 : f32 to vector<8x128xf32>
    %91 = arith.addf %89, %90 : vector<8x128xf32>
    %92 = arith.mulf %81, %56 : vector<8x128xf32>
    %93 = arith.mulf %73, %83 : vector<8x128xf32>
    %94 = arith.addf %92, %93 : vector<8x128xf32>
    %95 = math.tanh %94 : vector<8x128xf32>
    %96 = arith.mulf %91, %95 : vector<8x128xf32>
    %c2_i32_45 = arith.constant 2 : i32
    %97 = arith.muli %18, %c2_i32_45 : i32
    %98 = arith.addi %16, %97 : i32
    %99 = arith.index_cast %98 : i32 to index
    %c0_46 = arith.constant 0 : index
    %c0_47 = arith.constant 0 : index
    %100 = vector.load %arg7[%99, %c0_46, %c0_47] : memref<8x8x512xf32, #tpu.memory_space<vmem>>, vector<1x8x512xf32>
    %101 = vector.shape_cast %100 : vector<1x8x512xf32> to vector<8x512xf32>
    %cst_48 = arith.constant dense<0.000000e+00> : vector<8x512xf32>
    %102 = tpu.matmul %96, %15, %cst_48 {dimension_numbers = #tpu.dot_dimension_numbers<[1], [0], [0], [1], [0, 0, 1, 1], [], []>} : vector<8x128xf32>, vector<128x512xf32>, vector<8x512xf32> -> vector<8x512xf32>
    %103 = arith.addf %101, %102 : vector<8x512xf32>
    %104 = vector.extract_strided_slice %103 {offsets = [0, 0], sizes = [8, 128], strides = [1, 1]} : vector<8x512xf32> to vector<8x128xf32>
    %cst_49 = arith.constant 5.000000e-01 : f32
    %105 = vector.broadcast %cst_49 : f32 to vector<8x128xf32>
    %106 = arith.mulf %105, %104 : vector<8x128xf32>
    %107 = math.tanh %106 : vector<8x128xf32>
    %cst_50 = arith.constant 5.000000e-01 : f32
    %108 = vector.broadcast %cst_50 : f32 to vector<8x128xf32>
    %109 = arith.mulf %108, %107 : vector<8x128xf32>
    %cst_51 = arith.constant 5.000000e-01 : f32
    %110 = vector.broadcast %cst_51 : f32 to vector<8x128xf32>
    %111 = arith.addf %109, %110 : vector<8x128xf32>
    %112 = vector.extract_strided_slice %103 {offsets = [0, 128], sizes = [8, 128], strides = [1, 1]} : vector<8x512xf32> to vector<8x128xf32>
    %cst_52 = arith.constant 5.000000e-01 : f32
    %113 = vector.broadcast %cst_52 : f32 to vector<8x128xf32>
    %114 = arith.mulf %113, %112 : vector<8x128xf32>
    %115 = math.tanh %114 : vector<8x128xf32>
    %cst_53 = arith.constant 5.000000e-01 : f32
    %116 = vector.broadcast %cst_53 : f32 to vector<8x128xf32>
    %117 = arith.mulf %116, %115 : vector<8x128xf32>
    %cst_54 = arith.constant 5.000000e-01 : f32
    %118 = vector.broadcast %cst_54 : f32 to vector<8x128xf32>
    %119 = arith.addf %117, %118 : vector<8x128xf32>
    %120 = vector.extract_strided_slice %103 {offsets = [0, 256], sizes = [8, 128], strides = [1, 1]} : vector<8x512xf32> to vector<8x128xf32>
    %121 = math.tanh %120 : vector<8x128xf32>
    %122 = vector.extract_strided_slice %103 {offsets = [0, 384], sizes = [8, 128], strides = [1, 1]} : vector<8x512xf32> to vector<8x128xf32>
    %cst_55 = arith.constant 5.000000e-01 : f32
    %123 = vector.broadcast %cst_55 : f32 to vector<8x128xf32>
    %124 = arith.mulf %123, %122 : vector<8x128xf32>
    %125 = math.tanh %124 : vector<8x128xf32>
    %cst_56 = arith.constant 5.000000e-01 : f32
    %126 = vector.broadcast %cst_56 : f32 to vector<8x128xf32>
    %127 = arith.mulf %126, %125 : vector<8x128xf32>
    %cst_57 = arith.constant 5.000000e-01 : f32
    %128 = vector.broadcast %cst_57 : f32 to vector<8x128xf32>
    %129 = arith.addf %127, %128 : vector<8x128xf32>
    %130 = arith.mulf %119, %94 : vector<8x128xf32>
    %131 = arith.mulf %111, %121 : vector<8x128xf32>
    %132 = arith.addf %130, %131 : vector<8x128xf32>
    %133 = math.tanh %132 : vector<8x128xf32>
    %134 = arith.mulf %129, %133 : vector<8x128xf32>
    %c3_i32 = arith.constant 3 : i32
    %135 = arith.muli %18, %c3_i32 : i32
    %136 = arith.addi %16, %135 : i32
    %137 = arith.index_cast %136 : i32 to index
    %c0_58 = arith.constant 0 : index
    %c0_59 = arith.constant 0 : index
    %138 = vector.load %arg7[%137, %c0_58, %c0_59] : memref<8x8x512xf32, #tpu.memory_space<vmem>>, vector<1x8x512xf32>
    %139 = vector.shape_cast %138 : vector<1x8x512xf32> to vector<8x512xf32>
    %cst_60 = arith.constant dense<0.000000e+00> : vector<8x512xf32>
    %140 = tpu.matmul %134, %15, %cst_60 {dimension_numbers = #tpu.dot_dimension_numbers<[1], [0], [0], [1], [0, 0, 1, 1], [], []>} : vector<8x128xf32>, vector<128x512xf32>, vector<8x512xf32> -> vector<8x512xf32>
    %141 = arith.addf %139, %140 : vector<8x512xf32>
    %142 = vector.extract_strided_slice %141 {offsets = [0, 0], sizes = [8, 128], strides = [1, 1]} : vector<8x512xf32> to vector<8x128xf32>
    %cst_61 = arith.constant 5.000000e-01 : f32
    %143 = vector.broadcast %cst_61 : f32 to vector<8x128xf32>
    %144 = arith.mulf %143, %142 : vector<8x128xf32>
    %145 = math.tanh %144 : vector<8x128xf32>
    %cst_62 = arith.constant 5.000000e-01 : f32
    %146 = vector.broadcast %cst_62 : f32 to vector<8x128xf32>
    %147 = arith.mulf %146, %145 : vector<8x128xf32>
    %cst_63 = arith.constant 5.000000e-01 : f32
    %148 = vector.broadcast %cst_63 : f32 to vector<8x128xf32>
    %149 = arith.addf %147, %148 : vector<8x128xf32>
    %150 = vector.extract_strided_slice %141 {offsets = [0, 128], sizes = [8, 128], strides = [1, 1]} : vector<8x512xf32> to vector<8x128xf32>
    %cst_64 = arith.constant 5.000000e-01 : f32
    %151 = vector.broadcast %cst_64 : f32 to vector<8x128xf32>
    %152 = arith.mulf %151, %150 : vector<8x128xf32>
    %153 = math.tanh %152 : vector<8x128xf32>
    %cst_65 = arith.constant 5.000000e-01 : f32
    %154 = vector.broadcast %cst_65 : f32 to vector<8x128xf32>
    %155 = arith.mulf %154, %153 : vector<8x128xf32>
    %cst_66 = arith.constant 5.000000e-01 : f32
    %156 = vector.broadcast %cst_66 : f32 to vector<8x128xf32>
    %157 = arith.addf %155, %156 : vector<8x128xf32>
    %158 = vector.extract_strided_slice %141 {offsets = [0, 256], sizes = [8, 128], strides = [1, 1]} : vector<8x512xf32> to vector<8x128xf32>
    %159 = math.tanh %158 : vector<8x128xf32>
    %160 = vector.extract_strided_slice %141 {offsets = [0, 384], sizes = [8, 128], strides = [1, 1]} : vector<8x512xf32> to vector<8x128xf32>
    %cst_67 = arith.constant 5.000000e-01 : f32
    %161 = vector.broadcast %cst_67 : f32 to vector<8x128xf32>
    %162 = arith.mulf %161, %160 : vector<8x128xf32>
    %163 = math.tanh %162 : vector<8x128xf32>
    %cst_68 = arith.constant 5.000000e-01 : f32
    %164 = vector.broadcast %cst_68 : f32 to vector<8x128xf32>
    %165 = arith.mulf %164, %163 : vector<8x128xf32>
    %cst_69 = arith.constant 5.000000e-01 : f32
    %166 = vector.broadcast %cst_69 : f32 to vector<8x128xf32>
    %167 = arith.addf %165, %166 : vector<8x128xf32>
    %168 = arith.mulf %157, %132 : vector<8x128xf32>
    %169 = arith.mulf %149, %159 : vector<8x128xf32>
    %170 = arith.addf %168, %169 : vector<8x128xf32>
    %171 = math.tanh %170 : vector<8x128xf32>
    %172 = arith.mulf %167, %171 : vector<8x128xf32>
    %c4_i32 = arith.constant 4 : i32
    %173 = arith.muli %18, %c4_i32 : i32
    %174 = arith.addi %16, %173 : i32
    %175 = arith.index_cast %174 : i32 to index
    %c0_70 = arith.constant 0 : index
    %c0_71 = arith.constant 0 : index
    %176 = vector.load %arg7[%175, %c0_70, %c0_71] : memref<8x8x512xf32, #tpu.memory_space<vmem>>, vector<1x8x512xf32>
    %177 = vector.shape_cast %176 : vector<1x8x512xf32> to vector<8x512xf32>
    %cst_72 = arith.constant dense<0.000000e+00> : vector<8x512xf32>
    %178 = tpu.matmul %172, %15, %cst_72 {dimension_numbers = #tpu.dot_dimension_numbers<[1], [0], [0], [1], [0, 0, 1, 1], [], []>} : vector<8x128xf32>, vector<128x512xf32>, vector<8x512xf32> -> vector<8x512xf32>
    %179 = arith.addf %177, %178 : vector<8x512xf32>
    %180 = vector.extract_strided_slice %179 {offsets = [0, 0], sizes = [8, 128], strides = [1, 1]} : vector<8x512xf32> to vector<8x128xf32>
    %cst_73 = arith.constant 5.000000e-01 : f32
    %181 = vector.broadcast %cst_73 : f32 to vector<8x128xf32>
    %182 = arith.mulf %181, %180 : vector<8x128xf32>
    %183 = math.tanh %182 : vector<8x128xf32>
    %cst_74 = arith.constant 5.000000e-01 : f32
    %184 = vector.broadcast %cst_74 : f32 to vector<8x128xf32>
    %185 = arith.mulf %184, %183 : vector<8x128xf32>
    %cst_75 = arith.constant 5.000000e-01 : f32
    %186 = vector.broadcast %cst_75 : f32 to vector<8x128xf32>
    %187 = arith.addf %185, %186 : vector<8x128xf32>
    %188 = vector.extract_strided_slice %179 {offsets = [0, 128], sizes = [8, 128], strides = [1, 1]} : vector<8x512xf32> to vector<8x128xf32>
    %cst_76 = arith.constant 5.000000e-01 : f32
    %189 = vector.broadcast %cst_76 : f32 to vector<8x128xf32>
    %190 = arith.mulf %189, %188 : vector<8x128xf32>
    %191 = math.tanh %190 : vector<8x128xf32>
    %cst_77 = arith.constant 5.000000e-01 : f32
    %192 = vector.broadcast %cst_77 : f32 to vector<8x128xf32>
    %193 = arith.mulf %192, %191 : vector<8x128xf32>
    %cst_78 = arith.constant 5.000000e-01 : f32
    %194 = vector.broadcast %cst_78 : f32 to vector<8x128xf32>
    %195 = arith.addf %193, %194 : vector<8x128xf32>
    %196 = vector.extract_strided_slice %179 {offsets = [0, 256], sizes = [8, 128], strides = [1, 1]} : vector<8x512xf32> to vector<8x128xf32>
    %197 = math.tanh %196 : vector<8x128xf32>
    %198 = vector.extract_strided_slice %179 {offsets = [0, 384], sizes = [8, 128], strides = [1, 1]} : vector<8x512xf32> to vector<8x128xf32>
    %cst_79 = arith.constant 5.000000e-01 : f32
    %199 = vector.broadcast %cst_79 : f32 to vector<8x128xf32>
    %200 = arith.mulf %199, %198 : vector<8x128xf32>
    %201 = math.tanh %200 : vector<8x128xf32>
    %cst_80 = arith.constant 5.000000e-01 : f32
    %202 = vector.broadcast %cst_80 : f32 to vector<8x128xf32>
    %203 = arith.mulf %202, %201 : vector<8x128xf32>
    %cst_81 = arith.constant 5.000000e-01 : f32
    %204 = vector.broadcast %cst_81 : f32 to vector<8x128xf32>
    %205 = arith.addf %203, %204 : vector<8x128xf32>
    %206 = arith.mulf %195, %170 : vector<8x128xf32>
    %207 = arith.mulf %187, %197 : vector<8x128xf32>
    %208 = arith.addf %206, %207 : vector<8x128xf32>
    %209 = math.tanh %208 : vector<8x128xf32>
    %210 = arith.mulf %205, %209 : vector<8x128xf32>
    %c5_i32 = arith.constant 5 : i32
    %211 = arith.muli %18, %c5_i32 : i32
    %212 = arith.addi %16, %211 : i32
    %213 = arith.index_cast %212 : i32 to index
    %c0_82 = arith.constant 0 : index
    %c0_83 = arith.constant 0 : index
    %214 = vector.load %arg7[%213, %c0_82, %c0_83] : memref<8x8x512xf32, #tpu.memory_space<vmem>>, vector<1x8x512xf32>
    %215 = vector.shape_cast %214 : vector<1x8x512xf32> to vector<8x512xf32>
    %cst_84 = arith.constant dense<0.000000e+00> : vector<8x512xf32>
    %216 = tpu.matmul %210, %15, %cst_84 {dimension_numbers = #tpu.dot_dimension_numbers<[1], [0], [0], [1], [0, 0, 1, 1], [], []>} : vector<8x128xf32>, vector<128x512xf32>, vector<8x512xf32> -> vector<8x512xf32>
    %217 = arith.addf %215, %216 : vector<8x512xf32>
    %218 = vector.extract_strided_slice %217 {offsets = [0, 0], sizes = [8, 128], strides = [1, 1]} : vector<8x512xf32> to vector<8x128xf32>
    %cst_85 = arith.constant 5.000000e-01 : f32
    %219 = vector.broadcast %cst_85 : f32 to vector<8x128xf32>
    %220 = arith.mulf %219, %218 : vector<8x128xf32>
    %221 = math.tanh %220 : vector<8x128xf32>
    %cst_86 = arith.constant 5.000000e-01 : f32
    %222 = vector.broadcast %cst_86 : f32 to vector<8x128xf32>
    %223 = arith.mulf %222, %221 : vector<8x128xf32>
    %cst_87 = arith.constant 5.000000e-01 : f32
    %224 = vector.broadcast %cst_87 : f32 to vector<8x128xf32>
    %225 = arith.addf %223, %224 : vector<8x128xf32>
    %226 = vector.extract_strided_slice %217 {offsets = [0, 128], sizes = [8, 128], strides = [1, 1]} : vector<8x512xf32> to vector<8x128xf32>
    %cst_88 = arith.constant 5.000000e-01 : f32
    %227 = vector.broadcast %cst_88 : f32 to vector<8x128xf32>
    %228 = arith.mulf %227, %226 : vector<8x128xf32>
    %229 = math.tanh %228 : vector<8x128xf32>
    %cst_89 = arith.constant 5.000000e-01 : f32
    %230 = vector.broadcast %cst_89 : f32 to vector<8x128xf32>
    %231 = arith.mulf %230, %229 : vector<8x128xf32>
    %cst_90 = arith.constant 5.000000e-01 : f32
    %232 = vector.broadcast %cst_90 : f32 to vector<8x128xf32>
    %233 = arith.addf %231, %232 : vector<8x128xf32>
    %234 = vector.extract_strided_slice %217 {offsets = [0, 256], sizes = [8, 128], strides = [1, 1]} : vector<8x512xf32> to vector<8x128xf32>
    %235 = math.tanh %234 : vector<8x128xf32>
    %236 = vector.extract_strided_slice %217 {offsets = [0, 384], sizes = [8, 128], strides = [1, 1]} : vector<8x512xf32> to vector<8x128xf32>
    %cst_91 = arith.constant 5.000000e-01 : f32
    %237 = vector.broadcast %cst_91 : f32 to vector<8x128xf32>
    %238 = arith.mulf %237, %236 : vector<8x128xf32>
    %239 = math.tanh %238 : vector<8x128xf32>
    %cst_92 = arith.constant 5.000000e-01 : f32
    %240 = vector.broadcast %cst_92 : f32 to vector<8x128xf32>
    %241 = arith.mulf %240, %239 : vector<8x128xf32>
    %cst_93 = arith.constant 5.000000e-01 : f32
    %242 = vector.broadcast %cst_93 : f32 to vector<8x128xf32>
    %243 = arith.addf %241, %242 : vector<8x128xf32>
    %244 = arith.mulf %233, %208 : vector<8x128xf32>
    %245 = arith.mulf %225, %235 : vector<8x128xf32>
    %246 = arith.addf %244, %245 : vector<8x128xf32>
    %247 = math.tanh %246 : vector<8x128xf32>
    %248 = arith.mulf %243, %247 : vector<8x128xf32>
    %c6_i32 = arith.constant 6 : i32
    %249 = arith.muli %18, %c6_i32 : i32
    %250 = arith.addi %16, %249 : i32
    %251 = arith.index_cast %250 : i32 to index
    %c0_94 = arith.constant 0 : index
    %c0_95 = arith.constant 0 : index
    %252 = vector.load %arg7[%251, %c0_94, %c0_95] : memref<8x8x512xf32, #tpu.memory_space<vmem>>, vector<1x8x512xf32>
    %253 = vector.shape_cast %252 : vector<1x8x512xf32> to vector<8x512xf32>
    %cst_96 = arith.constant dense<0.000000e+00> : vector<8x512xf32>
    %254 = tpu.matmul %248, %15, %cst_96 {dimension_numbers = #tpu.dot_dimension_numbers<[1], [0], [0], [1], [0, 0, 1, 1], [], []>} : vector<8x128xf32>, vector<128x512xf32>, vector<8x512xf32> -> vector<8x512xf32>
    %255 = arith.addf %253, %254 : vector<8x512xf32>
    %256 = vector.extract_strided_slice %255 {offsets = [0, 0], sizes = [8, 128], strides = [1, 1]} : vector<8x512xf32> to vector<8x128xf32>
    %cst_97 = arith.constant 5.000000e-01 : f32
    %257 = vector.broadcast %cst_97 : f32 to vector<8x128xf32>
    %258 = arith.mulf %257, %256 : vector<8x128xf32>
    %259 = math.tanh %258 : vector<8x128xf32>
    %cst_98 = arith.constant 5.000000e-01 : f32
    %260 = vector.broadcast %cst_98 : f32 to vector<8x128xf32>
    %261 = arith.mulf %260, %259 : vector<8x128xf32>
    %cst_99 = arith.constant 5.000000e-01 : f32
    %262 = vector.broadcast %cst_99 : f32 to vector<8x128xf32>
    %263 = arith.addf %261, %262 : vector<8x128xf32>
    %264 = vector.extract_strided_slice %255 {offsets = [0, 128], sizes = [8, 128], strides = [1, 1]} : vector<8x512xf32> to vector<8x128xf32>
    %cst_100 = arith.constant 5.000000e-01 : f32
    %265 = vector.broadcast %cst_100 : f32 to vector<8x128xf32>
    %266 = arith.mulf %265, %264 : vector<8x128xf32>
    %267 = math.tanh %266 : vector<8x128xf32>
    %cst_101 = arith.constant 5.000000e-01 : f32
    %268 = vector.broadcast %cst_101 : f32 to vector<8x128xf32>
    %269 = arith.mulf %268, %267 : vector<8x128xf32>
    %cst_102 = arith.constant 5.000000e-01 : f32
    %270 = vector.broadcast %cst_102 : f32 to vector<8x128xf32>
    %271 = arith.addf %269, %270 : vector<8x128xf32>
    %272 = vector.extract_strided_slice %255 {offsets = [0, 256], sizes = [8, 128], strides = [1, 1]} : vector<8x512xf32> to vector<8x128xf32>
    %273 = math.tanh %272 : vector<8x128xf32>
    %274 = vector.extract_strided_slice %255 {offsets = [0, 384], sizes = [8, 128], strides = [1, 1]} : vector<8x512xf32> to vector<8x128xf32>
    %cst_103 = arith.constant 5.000000e-01 : f32
    %275 = vector.broadcast %cst_103 : f32 to vector<8x128xf32>
    %276 = arith.mulf %275, %274 : vector<8x128xf32>
    %277 = math.tanh %276 : vector<8x128xf32>
    %cst_104 = arith.constant 5.000000e-01 : f32
    %278 = vector.broadcast %cst_104 : f32 to vector<8x128xf32>
    %279 = arith.mulf %278, %277 : vector<8x128xf32>
    %cst_105 = arith.constant 5.000000e-01 : f32
    %280 = vector.broadcast %cst_105 : f32 to vector<8x128xf32>
    %281 = arith.addf %279, %280 : vector<8x128xf32>
    %282 = arith.mulf %271, %246 : vector<8x128xf32>
    %283 = arith.mulf %263, %273 : vector<8x128xf32>
    %284 = arith.addf %282, %283 : vector<8x128xf32>
    %285 = math.tanh %284 : vector<8x128xf32>
    %286 = arith.mulf %281, %285 : vector<8x128xf32>
    %c7_i32_106 = arith.constant 7 : i32
    %287 = arith.muli %18, %c7_i32_106 : i32
    %288 = arith.addi %16, %287 : i32
    %289 = arith.index_cast %288 : i32 to index
    %c0_107 = arith.constant 0 : index
    %c0_108 = arith.constant 0 : index
    %290 = vector.load %arg7[%289, %c0_107, %c0_108] : memref<8x8x512xf32, #tpu.memory_space<vmem>>, vector<1x8x512xf32>
    %291 = vector.shape_cast %290 : vector<1x8x512xf32> to vector<8x512xf32>
    %cst_109 = arith.constant dense<0.000000e+00> : vector<8x512xf32>
    %292 = tpu.matmul %286, %15, %cst_109 {dimension_numbers = #tpu.dot_dimension_numbers<[1], [0], [0], [1], [0, 0, 1, 1], [], []>} : vector<8x128xf32>, vector<128x512xf32>, vector<8x512xf32> -> vector<8x512xf32>
    %293 = arith.addf %291, %292 : vector<8x512xf32>
    %294 = vector.extract_strided_slice %293 {offsets = [0, 0], sizes = [8, 128], strides = [1, 1]} : vector<8x512xf32> to vector<8x128xf32>
    %cst_110 = arith.constant 5.000000e-01 : f32
    %295 = vector.broadcast %cst_110 : f32 to vector<8x128xf32>
    %296 = arith.mulf %295, %294 : vector<8x128xf32>
    %297 = math.tanh %296 : vector<8x128xf32>
    %cst_111 = arith.constant 5.000000e-01 : f32
    %298 = vector.broadcast %cst_111 : f32 to vector<8x128xf32>
    %299 = arith.mulf %298, %297 : vector<8x128xf32>
    %cst_112 = arith.constant 5.000000e-01 : f32
    %300 = vector.broadcast %cst_112 : f32 to vector<8x128xf32>
    %301 = arith.addf %299, %300 : vector<8x128xf32>
    %302 = vector.extract_strided_slice %293 {offsets = [0, 128], sizes = [8, 128], strides = [1, 1]} : vector<8x512xf32> to vector<8x128xf32>
    %cst_113 = arith.constant 5.000000e-01 : f32
    %303 = vector.broadcast %cst_113 : f32 to vector<8x128xf32>
    %304 = arith.mulf %303, %302 : vector<8x128xf32>
    %305 = math.tanh %304 : vector<8x128xf32>
    %cst_114 = arith.constant 5.000000e-01 : f32
    %306 = vector.broadcast %cst_114 : f32 to vector<8x128xf32>
    %307 = arith.mulf %306, %305 : vector<8x128xf32>
    %cst_115 = arith.constant 5.000000e-01 : f32
    %308 = vector.broadcast %cst_115 : f32 to vector<8x128xf32>
    %309 = arith.addf %307, %308 : vector<8x128xf32>
    %310 = vector.extract_strided_slice %293 {offsets = [0, 256], sizes = [8, 128], strides = [1, 1]} : vector<8x512xf32> to vector<8x128xf32>
    %311 = math.tanh %310 : vector<8x128xf32>
    %312 = vector.extract_strided_slice %293 {offsets = [0, 384], sizes = [8, 128], strides = [1, 1]} : vector<8x512xf32> to vector<8x128xf32>
    %cst_116 = arith.constant 5.000000e-01 : f32
    %313 = vector.broadcast %cst_116 : f32 to vector<8x128xf32>
    %314 = arith.mulf %313, %312 : vector<8x128xf32>
    %315 = math.tanh %314 : vector<8x128xf32>
    %cst_117 = arith.constant 5.000000e-01 : f32
    %316 = vector.broadcast %cst_117 : f32 to vector<8x128xf32>
    %317 = arith.mulf %316, %315 : vector<8x128xf32>
    %cst_118 = arith.constant 5.000000e-01 : f32
    %318 = vector.broadcast %cst_118 : f32 to vector<8x128xf32>
    %319 = arith.addf %317, %318 : vector<8x128xf32>
    %320 = arith.mulf %309, %284 : vector<8x128xf32>
    %321 = arith.mulf %301, %311 : vector<8x128xf32>
    %322 = arith.addf %320, %321 : vector<8x128xf32>
    %323 = math.tanh %322 : vector<8x128xf32>
    %324 = arith.mulf %319, %323 : vector<8x128xf32>
    %c8_i32 = arith.constant 8 : i32
    %c0_119 = arith.constant 0 : index
    %c0_120 = arith.constant 0 : index
    %325 = vector.load %arg8[%c0_119, %c0_120] : memref<8x128xf32, #tpu.memory_space<vmem>>, vector<8x128xf32>
    tpu.vector_store %arg8[%c0_119, %c0_120], %324 {strides = array<i32>} : memref<8x128xf32, #tpu.memory_space<vmem>>, vector<8x128xf32>,
    %c0_121 = arith.constant 0 : index
    %c0_122 = arith.constant 0 : index
    %326 = vector.load %arg9[%c0_121, %c0_122] : memref<8x128xf32, #tpu.memory_space<vmem>>, vector<8x128xf32>
    tpu.vector_store %arg9[%c0_121, %c0_122], %322 {strides = array<i32>} : memref<8x128xf32, #tpu.memory_space<vmem>>, vector<8x128xf32>,
    %c0_123 = arith.constant 0 : index
    %c0_124 = arith.constant 0 : index
    %c0_125 = arith.constant 0 : index
    %327 = vector.load %arg6[%c0_123, %c0_124, %c0_125] : memref<1x8x128xf32, #tpu.memory_space<vmem>>, vector<1x8x128xf32>
    %328 = vector.shape_cast %327 : vector<1x8x128xf32> to vector<8x128xf32>
    %329 = vector.shape_cast %324 : vector<8x128xf32> to vector<1x8x128xf32>
    tpu.vector_store %arg6[%c0_123, %c0_124, %c0_125], %329 {strides = array<i32>} : memref<1x8x128xf32, #tpu.memory_space<vmem>>, vector<1x8x128xf32>,
    return
  }
  func.func @transform_0(%arg0: i32, %arg1: i32) -> (i32, i32, i32) {
    %c1_i32 = arith.constant 1 : i32
    %0 = arith.subi %c1_i32, %arg0 : i32
    %1 = arith.muli %0, %arg1 : i32
    %c0_i32 = arith.constant 0 : i32
    %2 = arith.subi %c0_i32, %arg1 : i32
    %3 = arith.muli %arg0, %2 : i32
    %4 = arith.addi %1, %3 : i32
    %c0_i32_0 = arith.constant 0 : i32
    %c0_i32_1 = arith.constant 0 : i32
    %c0_i32_2 = arith.constant 0 : i32
    return %4, %c0_i32_0, %c0_i32_1 : i32, i32, i32
  }
  func.func @transform_1(%arg0: i32, %arg1: i32) -> (i32, i32, i32) {
    %c0_i32 = arith.constant 0 : i32
    %c0_i32_0 = arith.constant 0 : i32
    %c0_i32_1 = arith.constant 0 : i32
    return %arg0, %c0_i32, %c0_i32_0 : i32, i32, i32
  }
  func.func @transform_2(%arg0: i32, %arg1: i32) -> (i32, i32, i32) {
    %c0_i32 = arith.constant 0 : i32
    %c0_i32_0 = arith.constant 0 : i32
    %c0_i32_1 = arith.constant 0 : i32
    return %arg0, %c0_i32, %c0_i32_0 : i32, i32, i32
  }
  func.func @transform_3(%arg0: i32, %arg1: i32) -> (i32, i32, i32) {
    %c0_i32 = arith.constant 0 : i32
    %c0_i32_0 = arith.constant 0 : i32
    %c0_i32_1 = arith.constant 0 : i32
    return %arg0, %c0_i32, %c0_i32_0 : i32, i32, i32
  }
  func.func @transform_4(%arg0: i32, %arg1: i32) -> (i32, i32, i32) {
    %c0_i32 = arith.constant 0 : i32
    %c0_i32_0 = arith.constant 0 : i32
    %c0_i32_1 = arith.constant 0 : i32
    return %arg0, %c0_i32, %c0_i32_0 : i32, i32, i32
  }
}

</mosaic_0001>

<llo_original>
// kernel: encoder_forward.3
$region0: #{encoder_forward.3}
  #allocation0 [shape = 'u32[]', space=smem, size = 0x4, offset = 0x4, fixed_abs, tag = 'smem constant byte address 0x4 - core index']
  #allocation1 [shape = 'u32[144,128]{1,0:T(1,128)}', space=vmem, size = 0x12000, scoped, tag = 'internal scratch']
  #allocation2 [shape = 'f32[2,8,512]{2,1,0:T(8,128)}', space=vmem, size = 0x8000, scoped, tag = 'scratch operand']
  #allocation3 [shape = 'f32[8,128]{1,0:T(8,128)}', space=vmem, size = 0x1000, scoped, tag = 'scratch operand']
  #allocation4 [shape = 'f32[8,128]{1,0:T(8,128)}', space=vmem, size = 0x1000, scoped, tag = 'scratch operand']
  %s0 = inlined_call_operand.vmem [shape: f32[2,8,128], index: 0, kind: input, shape index: {}]
  %s1 = inlined_call_operand.vmem [shape: f32[2,128,512], index: 1, kind: input, shape index: {}]
  %s2 = inlined_call_operand.vmem [shape: f32[2,128,512], index: 2, kind: input, shape index: {}]
  %s3 = inlined_call_operand.vmem [shape: f32[2,1,512], index: 3, kind: input, shape index: {}]
  %s4 = inlined_call_operand.vmem [shape: f32[2,8,256], index: 4, kind: output, shape index: {0}]
  %s5 = inlined_call_operand.vmem [shape: f32[2,8,128], index: 5, kind: output, shape index: {1}]
  %s6 = inlined_call_operand.vmem [shape: f32[2,8,128], index: 6, kind: output, shape index: {2}]
  %7 = xla_tuple %s4, %s5, %s6
  %s8 = sld [smem:[#allocation0]]
  $region103: #{encoder_forward.3} parent=0
    _
  %s10 = ssub.s32 1, %s8
  %s11 = scalar_select 0, %s10, %s8
  $region1: #{encoder_forward.3} parent=0
    #allocation5 [shape = 'u8[16384]{0}', space=vmem, size = 0x4000, scoped, tag = 'output window, operand 0']
    loop: start=0, step=1, limit=4
    $region2: #{encoder_forward.3} parent=1 // loop_pre_header
      _
    $region3: #{encoder_forward.3} parent=1 // loop_header
      %s13 = sphi 0, %s17
      %p14 = scmp.ge.s32.totalorder %s13, 4
      %s20 = sphi 0, %s32
      %s21 = sphi 0, %s28
      %s22 = sphi 0, %s20
      %s23 = sphi 0, %s21
      %s24 = sphi 0, %s22
      %s25 = sphi 0, %s23
      %s45 = sphi 0, %s47
      %s48 = sphi 0, %s45
      %s49 = sphi 0, %s48
      %s65 = sphi 0, %s49
      %s71 = sphi 0, %s73
      %s74 = sphi 0, %s71
      %s75 = sphi 0, %s74
      %s91 = sphi 0, %s75
      %s97 = sphi 0, %s99
      %s100 = sphi 0, %s97
      %s101 = sphi 0, %s100
      %s117 = sphi 0, %s101
      %s123 = sphi 0, %s125
      %s126 = sphi 0, %s123
      %s127 = sphi 0, %s126
      %s143 = sphi 0, %s127
      %s161 = sphi 0, %s163
      %s164 = sphi 0, %s161
      %s165 = sphi 0, %s164
      %s181 = sphi 0, %s165
      %s187 = sphi 0, %s189
      %s190 = sphi 0, %s187
      %s191 = sphi 0, %s190
      %s207 = sphi 0, %s191
      %s213 = sphi 0, %s215
      %s216 = sphi 0, %s213
      %s217 = sphi 0, %s216
      %s233 = sphi 0, %s217
    $region4: #{encoder_forward.3} parent=1 // loop_header_branch
      %16 = sbr.rel (%p14) target = $region8
    $region5: #{encoder_forward.3} parent=1 // loop_body
      %s18 = ssub.s32 %s13, 1
      %s19 = ssub.s32 %s13, 2
      %s26 = sadd.s32 1, %s21
      %p27 = scmp.ge.s32.totalorder %s26, 1
      %s28 = scalar_select %p27, 0, %s26
      %s29 = sadd.s32 1, %s20
      %s30 = scalar_select %p27, %s29, %s20
      %p31 = scmp.ge.s32.totalorder %s30, 2
      %s32 = scalar_select %p31, 0, %s30
      %s33 = ssub.s32 1, %s20
      %s34 = smul.u32 %s33, %s21
      %s35 = ssub.s32 0, %s21
      %s36 = smul.u32 %s20, %s35
      %s37 = sadd.s32 %s34, %s36
      %s38 = ssub.s32 1, %s32
      %s39 = smul.u32 %s38, %s28
      %s40 = ssub.s32 0, %s28
      %s41 = smul.u32 %s32, %s40
      %s42 = sadd.s32 %s39, %s41
      %s43 = ssub.s32 %s37, %s42
      %p44 = scmp.eq.s32.totalorder %s43, 0
      %s46 = sadd.s32 %s45, 1
      %s47 = scalar_select %p44, %s45, %s46
      %p50 = pneg %p44
      %p51 = scmp.eq.s32.totalorder %s13, 1
      %p52 = por %p50, %p51
      %p53 = scmp.ne.s32.totalorder %s45, %s48
      %p54 = scmp.eq.s32.totalorder %s13, 0
      %p55 = por %p53, %p54
      %p56 = scmp.ne.s32.totalorder %s45, %s48
      %p57 = scmp.eq.s32.totalorder %s18, 1
      %p58 = por %p56, %p57
      %p59 = scmp.ne.s32.totalorder %s48, %s49
      %p60 = scmp.eq.s32.totalorder %s18, 0
      %p61 = por %p59, %p60
      %p62 = scmp.ne.s32.totalorder %s48, %s49
      %p63 = scmp.eq.s32.totalorder %s19, 1
      %p64 = por %p62, %p63
      %p66 = scmp.ne.s32.totalorder %s49, %s65
      %p67 = scmp.eq.s32.totalorder %s19, 0
      %p68 = por %p66, %p67
      %s69 = ssub.s32 %s20, %s32
      %p70 = scmp.eq.s32.totalorder %s69, 0
      %s72 = sadd.s32 %s71, 1
      %s73 = scalar_select %p70, %s71, %s72
      %p76 = pneg %p70
      %p77 = scmp.eq.s32.totalorder %s13, 1
      %p78 = por %p76, %p77
      %p79 = scmp.ne.s32.totalorder %s71, %s74
      %p80 = scmp.eq.s32.totalorder %s13, 0
      %p81 = por %p79, %p80
      %p82 = scmp.ne.s32.totalorder %s71, %s74
      %p83 = scmp.eq.s32.totalorder %s18, 1
      %p84 = por %p82, %p83
      %p85 = scmp.ne.s32.totalorder %s74, %s75
      %p86 = scmp.eq.s32.totalorder %s18, 0
      %p87 = por %p85, %p86
      %p88 = scmp.ne.s32.totalorder %s74, %s75
      %p89 = scmp.eq.s32.totalorder %s19, 1
      %p90 = por %p88, %p89
      %p92 = scmp.ne.s32.totalorder %s75, %s91
      %p93 = scmp.eq.s32.totalorder %s19, 0
      %p94 = por %p92, %p93
      %s95 = ssub.s32 %s20, %s32
      %p96 = scmp.eq.s32.totalorder %s95, 0
      %s98 = sadd.s32 %s97, 1
      %s99 = scalar_select %p96, %s97, %s98
      %p102 = pneg %p96
      %p103 = scmp.eq.s32.totalorder %s13, 1
      %p104 = por %p102, %p103
      %p105 = scmp.ne.s32.totalorder %s97, %s100
      %p106 = scmp.eq.s32.totalorder %s13, 0
      %p107 = por %p105, %p106
      %p108 = scmp.ne.s32.totalorder %s97, %s100
      %p109 = scmp.eq.s32.totalorder %s18, 1
      %p110 = por %p108, %p109
      %p111 = scmp.ne.s32.totalorder %s100, %s101
      %p112 = scmp.eq.s32.totalorder %s18, 0
      %p113 = por %p111, %p112
      %p114 = scmp.ne.s32.totalorder %s100, %s101
      %p115 = scmp.eq.s32.totalorder %s19, 1
      %p116 = por %p114, %p115
      %p118 = scmp.ne.s32.totalorder %s101, %s117
      %p119 = scmp.eq.s32.totalorder %s19, 0
      %p120 = por %p118, %p119
      %s121 = ssub.s32 %s20, %s32
      %p122 = scmp.eq.s32.totalorder %s121, 0
      %s124 = sadd.s32 %s123, 1
      %s125 = scalar_select %p122, %s123, %s124
      %p128 = pneg %p122
      %p129 = scmp.eq.s32.totalorder %s13, 1
      %p130 = por %p128, %p129
      %p131 = scmp.ne.s32.totalorder %s123, %s126
      %p132 = scmp.eq.s32.totalorder %s13, 0
      %p133 = por %p131, %p132
      %p134 = scmp.ne.s32.totalorder %s123, %s126
      %p135 = scmp.eq.s32.totalorder %s18, 1
      %p136 = por %p134, %p135
      %p137 = scmp.ne.s32.totalorder %s126, %s127
      %p138 = scmp.eq.s32.totalorder %s18, 0
      %p139 = por %p137, %p138
      %p140 = scmp.ne.s32.totalorder %s126, %s127
      %p141 = scmp.eq.s32.totalorder %s19, 1
      %p142 = por %p140, %p141
      %p144 = scmp.ne.s32.totalorder %s127, %s143
      %p145 = scmp.eq.s32.totalorder %s19, 0
      %p146 = por %p144, %p145
      %s147 = ssub.s32 1, %s20
      %s148 = smul.u32 %s147, %s21
      %s149 = ssub.s32 0, %s21
      %s150 = smul.u32 %s20, %s149
      %s151 = sadd.s32 %s148, %s150
      %s152 = ssub.s32 1, %s32
      %s153 = smul.u32 %s152, %s28
      %s154 = ssub.s32 0, %s28
      %s155 = smul.u32 %s32, %s154
      %s156 = sadd.s32 %s153, %s155
      %s157 = ssub.s32 %s151, %s156
      %s158 = ssub.s32 %s20, %s32
      %s159 = sor.u32 %s157, %s158
      %p160 = scmp.eq.s32.totalorder %s159, 0
      %s162 = sadd.s32 %s161, 1
      %s163 = scalar_select %p160, %s161, %s162
      %p166 = pneg %p160
      %p167 = scmp.eq.s32.totalorder %s13, 1
      %p168 = por %p166, %p167
      %p169 = scmp.ne.s32.totalorder %s161, %s164
      %p170 = scmp.eq.s32.totalorder %s13, 0
      %p171 = por %p169, %p170
      %p172 = scmp.ne.s32.totalorder %s161, %s164
      %p173 = scmp.eq.s32.totalorder %s18, 1
      %p174 = por %p172, %p173
      %p175 = scmp.ne.s32.totalorder %s164, %s165
      %p176 = scmp.eq.s32.totalorder %s18, 0
      %p177 = por %p175, %p176
      %p178 = scmp.ne.s32.totalorder %s164, %s165
      %p179 = scmp.eq.s32.totalorder %s19, 1
      %p180 = por %p178, %p179
      %p182 = scmp.ne.s32.totalorder %s165, %s181
      %p183 = scmp.eq.s32.totalorder %s19, 0
      %p184 = por %p182, %p183
      %s185 = ssub.s32 %s20, %s32
      %p186 = scmp.eq.s32.totalorder %s185, 0
      %s188 = sadd.s32 %s187, 1
      %s189 = scalar_select %p186, %s187, %s188
      %p192 = pneg %p186
      %p193 = scmp.eq.s32.totalorder %s13, 1
      %p194 = por %p192, %p193
      %p195 = scmp.ne.s32.totalorder %s187, %s190
      %p196 = scmp.eq.s32.totalorder %s13, 0
      %p197 = por %p195, %p196
      %p198 = scmp.ne.s32.totalorder %s187, %s190
      %p199 = scmp.eq.s32.totalorder %s18, 1
      %p200 = por %p198, %p199
      %p201 = scmp.ne.s32.totalorder %s190, %s191
      %p202 = scmp.eq.s32.totalorder %s18, 0
      %p203 = por %p201, %p202
      %p204 = scmp.ne.s32.totalorder %s190, %s191
      %p205 = scmp.eq.s32.totalorder %s19, 1
      %p206 = por %p204, %p205
      %p208 = scmp.ne.s32.totalorder %s191, %s207
      %p209 = scmp.eq.s32.totalorder %s19, 0
      %p210 = por %p208, %p209
      %s211 = ssub.s32 %s20, %s32
      %p212 = scmp.eq.s32.totalorder %s211, 0
      %s214 = sadd.s32 %s213, 1
      %s215 = scalar_select %p212, %s213, %s214
      %p218 = pneg %p212
      %p219 = scmp.eq.s32.totalorder %s13, 1
      %p220 = por %p218, %p219
      %p221 = scmp.ne.s32.totalorder %s213, %s216
      %p222 = scmp.eq.s32.totalorder %s13, 0
      %p223 = por %p221, %p222
      %p224 = scmp.ne.s32.totalorder %s213, %s216
      %p225 = scmp.eq.s32.totalorder %s18, 1
      %p226 = por %p224, %p225
      %p227 = scmp.ne.s32.totalorder %s216, %s217
      %p228 = scmp.eq.s32.totalorder %s18, 0
      %p229 = por %p227, %p228
      %p230 = scmp.ne.s32.totalorder %s216, %s217
      %p231 = scmp.eq.s32.totalorder %s19, 1
      %p232 = por %p230, %p231
      %p234 = scmp.ne.s32.totalorder %s217, %s233
      %p235 = scmp.eq.s32.totalorder %s19, 0
      %p236 = por %p234, %p235
      %p237 = scmp.le.s32.totalorder 1, %s13
      %p238 = scmp.lt.s32.totalorder %s13, 3
      %p239 = pnand %p237, %p238
      %p240 = pneg %p239
      // Predicated region
      $region9: #{encoder_forward.3} parent=5 // pred_check
        _
      $region10: #{encoder_forward.3} parent=5 // pred_check_branch
        %242 = sbr.rel (%p239) target = $region12
      $region11: #{encoder_forward.3} parent=5 // pred_region
        %s243 = ssub.s32 %s13, 1
      $region12: #{encoder_forward.3} parent=5 // pred_fallthru
        _
      %p244 = scmp.lt.s32.totalorder %s13, 2
      // Predicated region
      $region13: #{encoder_forward.3} parent=5 // pred_check
        %p245 = pneg %p244
      $region14: #{encoder_forward.3} parent=5 // pred_check_branch
        %247 = sbr.rel (%p245) target = $region16
      $region15: #{encoder_forward.3} parent=5 // pred_region
        // Predicated region
        $region17: #{encoder_forward.3} parent=15 // pred_check
          %p248 = pneg %p55
        $region18: #{encoder_forward.3} parent=15 // pred_check_branch
          %250 = sbr.rel (%p248) target = $region20
        $region19: #{encoder_forward.3} parent=15 // pred_region
          %s251 = ssub.s32 1, %s20
          %s252 = smul.u32 %s251, %s21
          %s253 = ssub.s32 0, %s21
          %s254 = smul.u32 %s20, %s253
          %s255 = sadd.s32 %s252, %s254
          %s256 = smul.u32 2, %s255
          %p257 = scmp.lt.s32.totalorder %s256, 1
          %s258 = scalar_select %p257, %s256, 1
          %s259 = smul.addr %s258, 8
          %s260 = scalar_lea.vmem %s0, %s259
          %s261 = ssub.s32 1, %s20
          %s262 = smul.u32 %s261, %s21
          %s263 = ssub.s32 0, %s21
          %s264 = smul.u32 %s20, %s263
          %s265 = sadd.s32 %s262, %s264
          %s266 = smul.u32 2, %s265
        $region20: #{encoder_forward.3} parent=15 // pred_fallthru
          _
        // Predicated region
        $region21: #{encoder_forward.3} parent=15 // pred_check
          %p267 = pneg %p81
        $region22: #{encoder_forward.3} parent=15 // pred_check_branch
          %269 = sbr.rel (%p267) target = $region24
        $region23: #{encoder_forward.3} parent=15 // pred_region
          %p270 = scmp.lt.s32.totalorder %s20, 1
          %s271 = scalar_select %p270, %s20, 1
          %s272 = smul.addr %s271, 64
          %s273 = smul.addr %s272, 8
          %s274 = scalar_lea.vmem %s1, %s273
        $region24: #{encoder_forward.3} parent=15 // pred_fallthru
          _
        // Predicated region
        $region25: #{encoder_forward.3} parent=15 // pred_check
          %p275 = pneg %p107
        $region26: #{encoder_forward.3} parent=15 // pred_check_branch
          %277 = sbr.rel (%p275) target = $region28
        $region27: #{encoder_forward.3} parent=15 // pred_region
          %p278 = scmp.lt.s32.totalorder %s20, 1
          %s279 = scalar_select %p278, %s20, 1
          %s280 = smul.addr %s279, 64
          %s281 = smul.addr %s280, 8
          %s282 = scalar_lea.vmem %s2, %s281
        $region28: #{encoder_forward.3} parent=15 // pred_fallthru
          _
        // Predicated region
        $region29: #{encoder_forward.3} parent=15 // pred_check
          %p283 = pneg %p133
        $region30: #{encoder_forward.3} parent=15 // pred_check_branch
          %285 = sbr.rel (%p283) target = $region32
        $region31: #{encoder_forward.3} parent=15 // pred_region
          %p286 = scmp.lt.s32.totalorder %s20, 1
          %s287 = scalar_select %p286, %s20, 1
          %s288 = smul.addr %s287, 4
          %s289 = scalar_lea.vmem %s3, %s288
        $region32: #{encoder_forward.3} parent=15 // pred_fallthru
          _
      $region16: #{encoder_forward.3} parent=5 // pred_fallthru
        _
      %p290 = scmp.le.s32.totalorder 1, %s13
      %p291 = scmp.lt.s32.totalorder %s13, 3
      %p292 = pnand %p290, %p291
      %p293 = pneg %p292
      // Predicated region
      $region33: #{encoder_forward.3} parent=5 // pred_check
        _
      $region34: #{encoder_forward.3} parent=5 // pred_check_branch
        %295 = sbr.rel (%p292) target = $region36
      $region35: #{encoder_forward.3} parent=5 // pred_region
        %s296 = ssub.s32 %s13, 1
        %s297 = ssub.s32 1, %s22
        %s298 = smul.u32 %s297, %s23
        %s299 = ssub.s32 0, %s23
        %s300 = smul.u32 %s22, %s299
        %s301 = sadd.s32 %s298, %s300
        %s302 = smul.u32 2, %s301
        %p303 = scmp.lt.s32.totalorder %s302, 1
        %s304 = scalar_select %p303, %s302, 1
        %s305 = smul.addr %s304, 8
        %s306 = scalar_lea.vmem %s0, %s305
        %p307 = pneg %p61
        %p308 = pneg %p58
        %p309 = scmp.lt.s32.totalorder %s22, 1
        %s310 = scalar_select %p309, %s22, 1
        %s311 = smul.addr %s310, 64
        %s312 = smul.addr %s311, 8
        %s313 = scalar_lea.vmem %s1, %s312
        %p314 = pneg %p87
        %p315 = pneg %p84
        %p316 = scmp.lt.s32.totalorder %s22, 1
        %s317 = scalar_select %p316, %s22, 1
        %s318 = smul.addr %s317, 64
        %s319 = smul.addr %s318, 8
        %s320 = scalar_lea.vmem %s2, %s319
        %p321 = pneg %p113
        %p322 = pneg %p110
        %p323 = scmp.lt.s32.totalorder %s22, 1
        %s324 = scalar_select %p323, %s22, 1
        %s325 = smul.addr %s324, 4
        %s326 = scalar_lea.vmem %s3, %s325
        %p327 = pneg %p139
        %p328 = pneg %p136
        %p329 = pneg %p177
        %p330 = pneg %p174
        %s331 = sand.u32 %s164, 1
        %s332 = sand.u32 %s164, 1
        %s333 = smul.addr %s332, 16
        %s334 = scalar_lea.vmem [#allocation5], %s333
        %p335 = pneg %p203
        %p336 = pneg %p200
        %p337 = scmp.lt.s32.totalorder %s22, 1
        %s338 = scalar_select %p337, %s22, 1
        %s339 = smul.addr %s338, 8
        %s340 = scalar_lea.vmem %s5, %s339
        %p341 = pneg %p229
        %p342 = pneg %p226
        %p343 = scmp.lt.s32.totalorder %s22, 1
        %s344 = scalar_select %p343, %s22, 1
        %s345 = smul.addr %s344, 8
        %s346 = scalar_lea.vmem %s6, %s345
        %s347 = ssub.s32 1, %s22
        %s348 = smul.u32 %s347, %s23
        %s349 = ssub.s32 0, %s23
        %s350 = smul.u32 %s22, %s349
        %s351 = sadd.s32 %s348, %s350
        %s352 = smul.u32 2, %s351
        %p353 = scmp.lt.s32.totalorder %s352, 1
        %s354 = scalar_select %p353, %s352, 1
        %s355 = smul.addr %s354, 8
        %s356 = scalar_lea.vmem %s0, %s355
        %s357 = ssub.s32 1, %s22
        %s358 = smul.u32 %s357, %s23
        %s359 = ssub.s32 0, %s23
        %s360 = smul.u32 %s22, %s359
        %s361 = sadd.s32 %s358, %s360
        %s362 = smul.u32 2, %s361
        %p363 = scmp.lt.s32.totalorder %s22, 1
        %s364 = scalar_select %p363, %s22, 1
        %s365 = smul.addr %s364, 64
        %s366 = smul.addr %s365, 8
        %s367 = scalar_lea.vmem %s1, %s366
        %p368 = scmp.lt.s32.totalorder %s22, 1
        %s369 = scalar_select %p368, %s22, 1
        %s370 = smul.addr %s369, 64
        %s371 = smul.addr %s370, 8
        %s372 = scalar_lea.vmem %s2, %s371
        %p373 = scmp.lt.s32.totalorder %s22, 1
        %s374 = scalar_select %p373, %s22, 1
        %s375 = smul.addr %s374, 4
        %s376 = scalar_lea.vmem %s3, %s375
        %s377 = ssub.s32 1, %s22
        %s378 = smul.u32 %s377, %s23
        %s379 = ssub.s32 0, %s23
        %s380 = smul.u32 %s22, %s379
        %s381 = sadd.s32 %s378, %s380
        %s382 = smul.u32 2, %s381
        %p383 = scmp.lt.s32.totalorder %s22, 1
        %s384 = scalar_select %p383, %s22, 1
        %s385 = smul.addr %s384, 8
        %s386 = scalar_lea.vmem %s5, %s385
        %p387 = scmp.lt.s32.totalorder %s22, 1
        %s388 = scalar_select %p387, %s22, 1
        %s389 = smul.addr %s388, 8
        %s390 = scalar_lea.vmem %s6, %s389
        %p391 = scmp.eq.s32.totalorder %s23, 0
        // Predicated region
        $region37: #{encoder_forward.3} parent=35 // pred_check
          %p392 = pneg %p391
        $region38: #{encoder_forward.3} parent=35 // pred_check_branch
          %394 = sbr.rel (%p392) target = $region40
        $region39: #{encoder_forward.3} parent=35 // pred_region
          %395 = vst [vmem:[#allocation3] sm:$0xff] 0.0
          %396 = vst [vmem:[#allocation4] sm:$0xff] 0.0
        $region40: #{encoder_forward.3} parent=35 // pred_fallthru
          _
        %v397 = vld [vmem:[%s356] sm:$0xff]
        %v398 = vld [vmem:[%s356 + $0x8] sm:$0xff]
        %v399 = vld [vmem:[%s367] sm:$0xff]
        %v400 = vld [vmem:[%s367 + $0x8] sm:$0xff]
        %v401 = vld [vmem:[%s367 + $0x10] sm:$0xff]
        %v402 = vld [vmem:[%s367 + $0x18] sm:$0xff]
        %v403 = vld [vmem:[%s367 + $0x20] sm:$0xff]
        %v404 = vld [vmem:[%s367 + $0x28] sm:$0xff]
        %v405 = vld [vmem:[%s367 + $0x30] sm:$0xff]
        %v406 = vld [vmem:[%s367 + $0x38] sm:$0xff]
        %v407 = vld [vmem:[%s367 + $0x40] sm:$0xff]
        %v408 = vld [vmem:[%s367 + $0x48] sm:$0xff]
        %v409 = vld [vmem:[%s367 + $0x50] sm:$0xff]
        %v410 = vld [vmem:[%s367 + $0x58] sm:$0xff]
        %v411 = vld [vmem:[%s367 + $0x60] sm:$0xff]
        %v412 = vld [vmem:[%s367 + $0x68] sm:$0xff]
        %v413 = vld [vmem:[%s367 + $0x70] sm:$0xff]
        %v414 = vld [vmem:[%s367 + $0x78] sm:$0xff]
        %v415 = vld [vmem:[%s367 + $0x80] sm:$0xff]
        %v416 = vld [vmem:[%s367 + $0x88] sm:$0xff]
        %v417 = vld [vmem:[%s367 + $0x90] sm:$0xff]
        %v418 = vld [vmem:[%s367 + $0x98] sm:$0xff]
        %v419 = vld [vmem:[%s367 + $0xa0] sm:$0xff]
        %v420 = vld [vmem:[%s367 + $0xa8] sm:$0xff]
        %v421 = vld [vmem:[%s367 + $0xb0] sm:$0xff]
        %v422 = vld [vmem:[%s367 + $0xb8] sm:$0xff]
        %v423 = vld [vmem:[%s367 + $0xc0] sm:$0xff]
        %v424 = vld [vmem:[%s367 + $0xc8] sm:$0xff]
        %v425 = vld [vmem:[%s367 + $0xd0] sm:$0xff]
        %v426 = vld [vmem:[%s367 + $0xd8] sm:$0xff]
        %v427 = vld [vmem:[%s367 + $0xe0] sm:$0xff]
        %v428 = vld [vmem:[%s367 + $0xe8] sm:$0xff]
        %v429 = vld [vmem:[%s367 + $0xf0] sm:$0xff]
        %v430 = vld [vmem:[%s367 + $0xf8] sm:$0xff]
        %v431 = vld [vmem:[%s367 + $0x100] sm:$0xff]
        %v432 = vld [vmem:[%s367 + $0x108] sm:$0xff]
        %v433 = vld [vmem:[%s367 + $0x110] sm:$0xff]
        %v434 = vld [vmem:[%s367 + $0x118] sm:$0xff]
        %v435 = vld [vmem:[%s367 + $0x120] sm:$0xff]
        %v436 = vld [vmem:[%s367 + $0x128] sm:$0xff]
        %v437 = vld [vmem:[%s367 + $0x130] sm:$0xff]
        %v438 = vld [vmem:[%s367 + $0x138] sm:$0xff]
        %v439 = vld [vmem:[%s367 + $0x140] sm:$0xff]
        %v440 = vld [vmem:[%s367 + $0x148] sm:$0xff]
        %v441 = vld [vmem:[%s367 + $0x150] sm:$0xff]
        %v442 = vld [vmem:[%s367 + $0x158] sm:$0xff]
        %v443 = vld [vmem:[%s367 + $0x160] sm:$0xff]
        %v444 = vld [vmem:[%s367 + $0x168] sm:$0xff]
        %v445 = vld [vmem:[%s367 + $0x170] sm:$0xff]
        %v446 = vld [vmem:[%s367 + $0x178] sm:$0xff]
        %v447 = vld [vmem:[%s367 + $0x180] sm:$0xff]
        %v448 = vld [vmem:[%s367 + $0x188] sm:$0xff]
        %v449 = vld [vmem:[%s367 + $0x190] sm:$0xff]
        %v450 = vld [vmem:[%s367 + $0x198] sm:$0xff]
        %v451 = vld [vmem:[%s367 + $0x1a0] sm:$0xff]
        %v452 = vld [vmem:[%s367 + $0x1a8] sm:$0xff]
        %v453 = vld [vmem:[%s367 + $0x1b0] sm:$0xff]
        %v454 = vld [vmem:[%s367 + $0x1b8] sm:$0xff]
        %v455 = vld [vmem:[%s367 + $0x1c0] sm:$0xff]
        %v456 = vld [vmem:[%s367 + $0x1c8] sm:$0xff]
        %v457 = vld [vmem:[%s367 + $0x1d0] sm:$0xff]
        %v458 = vld [vmem:[%s367 + $0x1d8] sm:$0xff]
        %v459 = vld [vmem:[%s367 + $0x1e0] sm:$0xff]
        %v460 = vld [vmem:[%s367 + $0x1e8] sm:$0xff]
        %v461 = vld [vmem:[%s367 + $0x1f0] sm:$0xff]
        %v462 = vld [vmem:[%s367 + $0x1f8] sm:$0xff]
        %v463 = vld [vmem:[%s376] sm:$0xf]
        %v465 = vlaneseq
        %v466 = vshrl.u32 %v465, 7
        %v467 = vsub.s32 0, %v466
        %v468 = vrot.slane %v463, %v467
        %v469 = vlaneseq
        %v470 = vshrl.u32 %v469, 7
        %v471 = vsub.s32 1, %v470
        %v472 = vrot.slane %v463, %v471
        %v473 = vlaneseq
        %v474 = vshrl.u32 %v473, 7
        %v475 = vsub.s32 2, %v474
        %v476 = vrot.slane %v463, %v475
        %v477 = vlaneseq
        %v478 = vshrl.u32 %v477, 7
        %v479 = vsub.s32 3, %v478
        %v480 = vrot.slane %v463, %v479
        %485 = vmatprep.subr.mxu0 %v460
        %486 = vmatpush1.msra.mxu0 %v459
        %487 = vmatprep.subr.mxu0 %v456
        %488 = vmatpush1.msra.mxu0 %v455
        %489 = vmatprep.subr.mxu0 %v452
        %490 = vmatpush1.msra.mxu0 %v451
        %491 = vmatprep.subr.mxu0 %v448
        %492 = vmatpush1.msra.mxu0 %v447
        %493 = vmatprep.subr.mxu0 %v444
        %494 = vmatpush1.msra.mxu0 %v443
        %495 = vmatprep.subr.mxu0 %v440
        %496 = vmatpush1.msra.mxu0 %v439
        %497 = vmatprep.subr.mxu0 %v436
        %498 = vmatpush1.msra.mxu0 %v435
        %499 = vmatprep.subr.mxu0 %v432
        %500 = vmatpush1.msra.mxu0 %v431
        %501 = vmatprep.subr.mxu0 %v428
        %502 = vmatpush1.msra.mxu0 %v427
        %503 = vmatprep.subr.mxu0 %v424
        %504 = vmatpush1.msra.mxu0 %v423
        %505 = vmatprep.subr.mxu0 %v420
        %506 = vmatpush1.msra.mxu0 %v419
        %507 = vmatprep.subr.mxu0 %v416
        %508 = vmatpush1.msra.mxu0 %v415
        %509 = vmatprep.subr.mxu0 %v412
        %510 = vmatpush1.msra.mxu0 %v411
        %511 = vmatprep.subr.mxu0 %v408
        %512 = vmatpush1.msra.mxu0 %v407
        %513 = vmatprep.subr.mxu0 %v404
        %514 = vmatpush1.msra.mxu0 %v403
        %515 = vmatprep.subr.mxu0 %v400
        %516 = vmatpush1.msra.mxu0 %v399
        %517 = vmatprep.subr.mxu0 0.0
        %518 = vmatpush2.msra.mxu0 0.0
        %519 = vmatprep.subr.mxu0 0.0
        %520 = vmatpush2.msra.mxu0 0.0
        %521 = vmatprep.subr.mxu0 0.0
        %522 = vmatpush2.msra.mxu0 0.0
        %523 = vmatprep.subr.mxu0 0.0
        %524 = vmatpush2.msra.mxu0 0.0
        %525 = vmatprep.subr.mxu0 0.0
        %526 = vmatpush2.msra.mxu0 0.0
        %527 = vmatprep.subr.mxu0 0.0
        %528 = vmatpush2.msra.mxu0 0.0
        %529 = vmatprep.subr.mxu0 0.0
        %530 = vmatpush2.msra.mxu0 0.0
        %531 = vmatprep.subr.mxu0 0.0
        %532 = vmatpush2.msra.mxu0 0.0
        %533 = vmatprep.subr.mxu0 0.0
        %534 = vmatpush2.msra.mxu0 0.0
        %535 = vmatprep.subr.mxu0 0.0
        %536 = vmatpush2.msra.mxu0 0.0
        %537 = vmatprep.subr.mxu0 0.0
        %538 = vmatpush2.msra.mxu0 0.0
        %539 = vmatprep.subr.mxu0 0.0
        %540 = vmatpush2.msra.mxu0 0.0
        %541 = vmatprep.subr.mxu0 0.0
        %542 = vmatpush2.msra.mxu0 0.0
        %543 = vmatprep.subr.mxu0 0.0
        %544 = vmatpush2.msra.mxu0 0.0
        %545 = vmatprep.subr.mxu0 0.0
        %546 = vmatpush2.msra.mxu0 0.0
        %547 = vmatprep.subr.mxu0 0.0
        %548 = vmatpush2.msra.mxu0 0.0
        %549 = vmatprep.mubr.f32.mxu0 0.0
        %550 = vmatmul.mubr.f32.gmra.mxu0 %v397
        %v551 = vpop.f32.mrf.mxu0
        %v552 = vadd.f32 %v468, %v551
        %v553 = vpop.f32.mrf.mxu0
        %v554 = vadd.f32 %v472, %v553
        %555 = vmatprep.mubr.f32.mxu0 0.0
        %556 = vmatmul.mubr.f32.gmra.mxu0 %v398
        %v557 = vpop.f32.mrf.mxu0
        %v558 = vadd.f32 %v468, %v557
        %v559 = vpop.f32.mrf.mxu0
        %v560 = vadd.f32 %v472, %v559
        %561 = vdwg.mxu0
        %562 = vmatprep.subr.mxu0 %v462
        %563 = vmatpush1.msra.mxu0 %v461
        %564 = vmatprep.subr.mxu0 %v458
        %565 = vmatpush1.msra.mxu0 %v457
        %566 = vmatprep.subr.mxu0 %v454
        %567 = vmatpush1.msra.mxu0 %v453
        %568 = vmatprep.subr.mxu0 %v450
        %569 = vmatpush1.msra.mxu0 %v449
        %570 = vmatprep.subr.mxu0 %v446
        %571 = vmatpush1.msra.mxu0 %v445
        %572 = vmatprep.subr.mxu0 %v442
        %573 = vmatpush1.msra.mxu0 %v441
        %574 = vmatprep.subr.mxu0 %v438
        %575 = vmatpush1.msra.mxu0 %v437
        %576 = vmatprep.subr.mxu0 %v434
        %577 = vmatpush1.msra.mxu0 %v433
        %578 = vmatprep.subr.mxu0 %v430
        %579 = vmatpush1.msra.mxu0 %v429
        %580 = vmatprep.subr.mxu0 %v426
        %581 = vmatpush1.msra.mxu0 %v425
        %582 = vmatprep.subr.mxu0 %v422
        %583 = vmatpush1.msra.mxu0 %v421
        %584 = vmatprep.subr.mxu0 %v418
        %585 = vmatpush1.msra.mxu0 %v417
        %586 = vmatprep.subr.mxu0 %v414
        %587 = vmatpush1.msra.mxu0 %v413
        %588 = vmatprep.subr.mxu0 %v410
        %589 = vmatpush1.msra.mxu0 %v409
        %590 = vmatprep.subr.mxu0 %v406
        %591 = vmatpush1.msra.mxu0 %v405
        %592 = vmatprep.subr.mxu0 %v402
        %593 = vmatpush1.msra.mxu0 %v401
        %594 = vmatprep.subr.mxu0 0.0
        %595 = vmatpush2.msra.mxu0 0.0
        %596 = vmatprep.subr.mxu0 0.0
        %597 = vmatpush2.msra.mxu0 0.0
        %598 = vmatprep.subr.mxu0 0.0
        %599 = vmatpush2.msra.mxu0 0.0
        %600 = vmatprep.subr.mxu0 0.0
        %601 = vmatpush2.msra.mxu0 0.0
        %602 = vmatprep.subr.mxu0 0.0
        %603 = vmatpush2.msra.mxu0 0.0
        %604 = vmatprep.subr.mxu0 0.0
        %605 = vmatpush2.msra.mxu0 0.0
        %606 = vmatprep.subr.mxu0 0.0
        %607 = vmatpush2.msra.mxu0 0.0
        %608 = vmatprep.subr.mxu0 0.0
        %609 = vmatpush2.msra.mxu0 0.0
        %610 = vmatprep.subr.mxu0 0.0
        %611 = vmatpush2.msra.mxu0 0.0
        %612 = vmatprep.subr.mxu0 0.0
        %613 = vmatpush2.msra.mxu0 0.0
        %614 = vmatprep.subr.mxu0 0.0
        %615 = vmatpush2.msra.mxu0 0.0
        %616 = vmatprep.subr.mxu0 0.0
        %617 = vmatpush2.msra.mxu0 0.0
        %618 = vmatprep.subr.mxu0 0.0
        %619 = vmatpush2.msra.mxu0 0.0
        %620 = vmatprep.subr.mxu0 0.0
        %621 = vmatpush2.msra.mxu0 0.0
        %622 = vmatprep.subr.mxu0 0.0
        %623 = vmatpush2.msra.mxu0 0.0
        %624 = vmatprep.subr.mxu0 0.0
        %625 = vmatpush2.msra.mxu0 0.0
        %626 = vmatprep.mubr.f32.mxu0 0.0
        %627 = vmatmul.mubr.f32.gmra.mxu0 %v397
        %v628 = vpop.f32.mrf.mxu0
        %v629 = vadd.f32 %v476, %v628
        %v630 = vpop.f32.mrf.mxu0
        %v631 = vadd.f32 %v480, %v630
        %632 = vmatprep.mubr.f32.mxu0 0.0
        %633 = vmatmul.mubr.f32.gmra.mxu0 %v398
        %v634 = vpop.f32.mrf.mxu0
        %v635 = vadd.f32 %v476, %v634
        %v636 = vpop.f32.mrf.mxu0
        %v637 = vadd.f32 %v480, %v636
        %638 = vdwg.mxu0
        %639 = vst [vmem:[#allocation2] sm:$0xff] %v552
        %640 = vst [vmem:[#allocation2 + $0x8] sm:$0xff] %v554
        %641 = vst [vmem:[#allocation2 + $0x10] sm:$0xff] %v629
        %642 = vst [vmem:[#allocation2 + $0x18] sm:$0xff] %v631
        %643 = vst [vmem:[#allocation2 + $0x20] sm:$0xff] %v558
        %644 = vst [vmem:[#allocation2 + $0x28] sm:$0xff] %v560
        %645 = vst [vmem:[#allocation2 + $0x30] sm:$0xff] %v635
        %646 = vst [vmem:[#allocation2 + $0x38] sm:$0xff] %v637
        %v647 = vld [vmem:[%s372] sm:$0xff]
        %v648 = vld [vmem:[%s372 + $0x8] sm:$0xff]
        %v649 = vld [vmem:[%s372 + $0x10] sm:$0xff]
        %v650 = vld [vmem:[%s372 + $0x18] sm:$0xff]
        %v651 = vld [vmem:[%s372 + $0x20] sm:$0xff]
        %v652 = vld [vmem:[%s372 + $0x28] sm:$0xff]
        %v653 = vld [vmem:[%s372 + $0x30] sm:$0xff]
        %v654 = vld [vmem:[%s372 + $0x38] sm:$0xff]
        %v655 = vld [vmem:[%s372 + $0x40] sm:$0xff]
        %v656 = vld [vmem:[%s372 + $0x48] sm:$0xff]
        %v657 = vld [vmem:[%s372 + $0x50] sm:$0xff]
        %v658 = vld [vmem:[%s372 + $0x58] sm:$0xff]
        %v659 = vld [vmem:[%s372 + $0x60] sm:$0xff]
        %v660 = vld [vmem:[%s372 + $0x68] sm:$0xff]
        %v661 = vld [vmem:[%s372 + $0x70] sm:$0xff]
        %v662 = vld [vmem:[%s372 + $0x78] sm:$0xff]
        %v663 = vld [vmem:[%s372 + $0x80] sm:$0xff]
        %v664 = vld [vmem:[%s372 + $0x88] sm:$0xff]
        %v665 = vld [vmem:[%s372 + $0x90] sm:$0xff]
        %v666 = vld [vmem:[%s372 + $0x98] sm:$0xff]
        %v667 = vld [vmem:[%s372 + $0xa0] sm:$0xff]
        %v668 = vld [vmem:[%s372 + $0xa8] sm:$0xff]
        %v669 = vld [vmem:[%s372 + $0xb0] sm:$0xff]
        %v670 = vld [vmem:[%s372 + $0xb8] sm:$0xff]
        %v671 = vld [vmem:[%s372 + $0xc0] sm:$0xff]
        %v672 = vld [vmem:[%s372 + $0xc8] sm:$0xff]
        %v673 = vld [vmem:[%s372 + $0xd0] sm:$0xff]
        %v674 = vld [vmem:[%s372 + $0xd8] sm:$0xff]
        %v675 = vld [vmem:[%s372 + $0xe0] sm:$0xff]
        %v676 = vld [vmem:[%s372 + $0xe8] sm:$0xff]
        %v677 = vld [vmem:[%s372 + $0xf0] sm:$0xff]
        %v678 = vld [vmem:[%s372 + $0xf8] sm:$0xff]
        %v679 = vld [vmem:[%s372 + $0x100] sm:$0xff]
        %v680 = vld [vmem:[%s372 + $0x108] sm:$0xff]
        %v681 = vld [vmem:[%s372 + $0x110] sm:$0xff]
        %v682 = vld [vmem:[%s372 + $0x118] sm:$0xff]
        %v683 = vld [vmem:[%s372 + $0x120] sm:$0xff]
        %v684 = vld [vmem:[%s372 + $0x128] sm:$0xff]
        %v685 = vld [vmem:[%s372 + $0x130] sm:$0xff]
        %v686 = vld [vmem:[%s372 + $0x138] sm:$0xff]
        %v687 = vld [vmem:[%s372 + $0x140] sm:$0xff]
        %v688 = vld [vmem:[%s372 + $0x148] sm:$0xff]
        %v689 = vld [vmem:[%s372 + $0x150] sm:$0xff]
        %v690 = vld [vmem:[%s372 + $0x158] sm:$0xff]
        %v691 = vld [vmem:[%s372 + $0x160] sm:$0xff]
        %v692 = vld [vmem:[%s372 + $0x168] sm:$0xff]
        %v693 = vld [vmem:[%s372 + $0x170] sm:$0xff]
        %v694 = vld [vmem:[%s372 + $0x178] sm:$0xff]
        %v695 = vld [vmem:[%s372 + $0x180] sm:$0xff]
        %v696 = vld [vmem:[%s372 + $0x188] sm:$0xff]
        %v697 = vld [vmem:[%s372 + $0x190] sm:$0xff]
        %v698 = vld [vmem:[%s372 + $0x198] sm:$0xff]
        %v699 = vld [vmem:[%s372 + $0x1a0] sm:$0xff]
        %v700 = vld [vmem:[%s372 + $0x1a8] sm:$0xff]
        %v701 = vld [vmem:[%s372 + $0x1b0] sm:$0xff]
        %v702 = vld [vmem:[%s372 + $0x1b8] sm:$0xff]
        %v703 = vld [vmem:[%s372 + $0x1c0] sm:$0xff]
        %v704 = vld [vmem:[%s372 + $0x1c8] sm:$0xff]
        %v705 = vld [vmem:[%s372 + $0x1d0] sm:$0xff]
        %v706 = vld [vmem:[%s372 + $0x1d8] sm:$0xff]
        %v707 = vld [vmem:[%s372 + $0x1e0] sm:$0xff]
        %v708 = vld [vmem:[%s372 + $0x1e8] sm:$0xff]
        %v709 = vld [vmem:[%s372 + $0x1f0] sm:$0xff]
        %v710 = vld [vmem:[%s372 + $0x1f8] sm:$0xff]
        %s711 = smul.u32 %s22, 2
        %s712 = ssub.s32 1, %s711
        %v713 = vld [vmem:[#allocation3] sm:$0xff]
        %v714 = vld [vmem:[#allocation4] sm:$0xff]
        %s715 = smul.u32 %s22, 4
        %s716 = smul.addr %s715, 8
        %s717 = scalar_lea.vmem [#allocation2], %s716
        %v718 = vld [vmem:[%s717] sm:$0xff]
        %v719 = vld [vmem:[%s717 + $0x8] sm:$0xff]
        %v720 = vld [vmem:[%s717 + $0x10] sm:$0xff]
        %v721 = vld [vmem:[%s717 + $0x18] sm:$0xff]
        %722 = vmatprep.subr.mxu0 %v708
        %723 = vmatpush1.msra.mxu0 %v707
        %724 = vmatprep.subr.mxu0 %v704
        %725 = vmatpush1.msra.mxu0 %v703
        %726 = vmatprep.subr.mxu0 %v700
        %727 = vmatpush1.msra.mxu0 %v699
        %728 = vmatprep.subr.mxu0 %v696
        %729 = vmatpush1.msra.mxu0 %v695
        %730 = vmatprep.subr.mxu0 %v692
        %731 = vmatpush1.msra.mxu0 %v691
        %732 = vmatprep.subr.mxu0 %v688
        %733 = vmatpush1.msra.mxu0 %v687
        %734 = vmatprep.subr.mxu0 %v684
        %735 = vmatpush1.msra.mxu0 %v683
        %736 = vmatprep.subr.mxu0 %v680
        %737 = vmatpush1.msra.mxu0 %v679
        %738 = vmatprep.subr.mxu0 %v676
        %739 = vmatpush1.msra.mxu0 %v675
        %740 = vmatprep.subr.mxu0 %v672
        %741 = vmatpush1.msra.mxu0 %v671
        %742 = vmatprep.subr.mxu0 %v668
        %743 = vmatpush1.msra.mxu0 %v667
        %744 = vmatprep.subr.mxu0 %v664
        %745 = vmatpush1.msra.mxu0 %v663
        %746 = vmatprep.subr.mxu0 %v660
        %747 = vmatpush1.msra.mxu0 %v659
        %748 = vmatprep.subr.mxu0 %v656
        %749 = vmatpush1.msra.mxu0 %v655
        %750 = vmatprep.subr.mxu0 %v652
        %751 = vmatpush1.msra.mxu0 %v651
        %752 = vmatprep.subr.mxu0 %v648
        %753 = vmatpush1.msra.mxu0 %v647
        %754 = vmatprep.subr.mxu0 0.0
        %755 = vmatpush2.msra.mxu0 0.0
        %756 = vmatprep.subr.mxu0 0.0
        %757 = vmatpush2.msra.mxu0 0.0
        %758 = vmatprep.subr.mxu0 0.0
        %759 = vmatpush2.msra.mxu0 0.0
        %760 = vmatprep.subr.mxu0 0.0
        %761 = vmatpush2.msra.mxu0 0.0
        %762 = vmatprep.subr.mxu0 0.0
        %763 = vmatpush2.msra.mxu0 0.0
        %764 = vmatprep.subr.mxu0 0.0
        %765 = vmatpush2.msra.mxu0 0.0
        %766 = vmatprep.subr.mxu0 0.0
        %767 = vmatpush2.msra.mxu0 0.0
        %768 = vmatprep.subr.mxu0 0.0
        %769 = vmatpush2.msra.mxu0 0.0
        %770 = vmatprep.subr.mxu0 0.0
        %771 = vmatpush2.msra.mxu0 0.0
        %772 = vmatprep.subr.mxu0 0.0
        %773 = vmatpush2.msra.mxu0 0.0
        %774 = vmatprep.subr.mxu0 0.0
        %775 = vmatpush2.msra.mxu0 0.0
        %776 = vmatprep.subr.mxu0 0.0
        %777 = vmatpush2.msra.mxu0 0.0
        %778 = vmatprep.subr.mxu0 0.0
        %779 = vmatpush2.msra.mxu0 0.0
        %780 = vmatprep.subr.mxu0 0.0
        %781 = vmatpush2.msra.mxu0 0.0
        %782 = vmatprep.subr.mxu0 0.0
        %783 = vmatpush2.msra.mxu0 0.0
        %784 = vmatprep.subr.mxu0 0.0
        %785 = vmatpush2.msra.mxu0 0.0
        %786 = vmatprep.mubr.f32.mxu0 0.0
        %787 = vmatmul.mubr.f32.gmra.mxu0 %v713
        %v788 = vpop.f32.mrf.mxu0
        %v789 = vadd.f32 0.0, %v788
        %v790 = vpop.f32.mrf.mxu0
        %v791 = vadd.f32 0.0, %v790
        %792 = vdwg.mxu0
        %793 = vmatprep.subr.mxu0 %v710
        %794 = vmatpush1.msra.mxu0 %v709
        %795 = vmatprep.subr.mxu0 %v706
        %796 = vmatpush1.msra.mxu0 %v705
        %797 = vmatprep.subr.mxu0 %v702
        %798 = vmatpush1.msra.mxu0 %v701
        %799 = vmatprep.subr.mxu0 %v698
        %800 = vmatpush1.msra.mxu0 %v697
        %801 = vmatprep.subr.mxu0 %v694
        %802 = vmatpush1.msra.mxu0 %v693
        %803 = vmatprep.subr.mxu0 %v690
        %804 = vmatpush1.msra.mxu0 %v689
        %805 = vmatprep.subr.mxu0 %v686
        %806 = vmatpush1.msra.mxu0 %v685
        %807 = vmatprep.subr.mxu0 %v682
        %808 = vmatpush1.msra.mxu0 %v681
        %809 = vmatprep.subr.mxu0 %v678
        %810 = vmatpush1.msra.mxu0 %v677
        %811 = vmatprep.subr.mxu0 %v674
        %812 = vmatpush1.msra.mxu0 %v673
        %813 = vmatprep.subr.mxu0 %v670
        %814 = vmatpush1.msra.mxu0 %v669
        %815 = vmatprep.subr.mxu0 %v666
        %816 = vmatpush1.msra.mxu0 %v665
        %817 = vmatprep.subr.mxu0 %v662
        %818 = vmatpush1.msra.mxu0 %v661
        %819 = vmatprep.subr.mxu0 %v658
        %820 = vmatpush1.msra.mxu0 %v657
        %821 = vmatprep.subr.mxu0 %v654
        %822 = vmatpush1.msra.mxu0 %v653
        %823 = vmatprep.subr.mxu0 %v650
        %824 = vmatpush1.msra.mxu0 %v649
        %825 = vmatprep.subr.mxu0 0.0
        %826 = vmatpush2.msra.mxu0 0.0
        %827 = vmatprep.subr.mxu0 0.0
        %828 = vmatpush2.msra.mxu0 0.0
        %829 = vmatprep.subr.mxu0 0.0
        %830 = vmatpush2.msra.mxu0 0.0
        %831 = vmatprep.subr.mxu0 0.0
        %832 = vmatpush2.msra.mxu0 0.0
        %833 = vmatprep.subr.mxu0 0.0
        %834 = vmatpush2.msra.mxu0 0.0
        %835 = vmatprep.subr.mxu0 0.0
        %836 = vmatpush2.msra.mxu0 0.0
        %837 = vmatprep.subr.mxu0 0.0
        %838 = vmatpush2.msra.mxu0 0.0
        %839 = vmatprep.subr.mxu0 0.0
        %840 = vmatpush2.msra.mxu0 0.0
        %841 = vmatprep.subr.mxu0 0.0
        %842 = vmatpush2.msra.mxu0 0.0
        %843 = vmatprep.subr.mxu0 0.0
        %844 = vmatpush2.msra.mxu0 0.0
        %845 = vmatprep.subr.mxu0 0.0
        %846 = vmatpush2.msra.mxu0 0.0
        %847 = vmatprep.subr.mxu0 0.0
        %848 = vmatpush2.msra.mxu0 0.0
        %849 = vmatprep.subr.mxu0 0.0
        %850 = vmatpush2.msra.mxu0 0.0
        %851 = vmatprep.subr.mxu0 0.0
        %852 = vmatpush2.msra.mxu0 0.0
        %853 = vmatprep.subr.mxu0 0.0
        %854 = vmatpush2.msra.mxu0 0.0
        %855 = vmatprep.subr.mxu0 0.0
        %856 = vmatpush2.msra.mxu0 0.0
        %857 = vmatprep.mubr.f32.mxu0 0.0
        %858 = vmatmul.mubr.f32.gmra.mxu0 %v713
        %v859 = vpop.f32.mrf.mxu0
        %v860 = vadd.f32 0.0, %v859
        %v861 = vpop.f32.mrf.mxu0
        %v862 = vadd.f32 0.0, %v861
        %863 = vdwg.mxu0
        %v864 = vadd.f32 %v718, %v789
        %v865 = vadd.f32 %v719, %v791
        %v866 = vadd.f32 %v720, %v860
        %v867 = vadd.f32 %v721, %v862
        %v868 = vmul.f32 %v864, 0.5
        %v869 = vtanh.pop %v868
        %v870 = vmul.f32 %v869, 0.5
        %v871 = vadd.f32 %v870, 0.5
        %v872 = vmul.f32 %v865, 0.5
        %v873 = vtanh.pop %v872
        %v874 = vmul.f32 %v873, 0.5
        %v875 = vadd.f32 %v874, 0.5
        %v876 = vtanh.pop %v866
        %v877 = vmul.f32 %v867, 0.5
        %v878 = vtanh.pop %v877
        %v879 = vmul.f32 %v878, 0.5
        %v880 = vadd.f32 %v879, 0.5
        %v881 = vmul.f32 %v875, %v714
        %v882 = vmul.f32 %v871, %v876
        %v883 = vadd.f32 %v881, %v882
        %v884 = vtanh.pop %v883
        %v885 = vmul.f32 %v880, %v884
        %s886 = smul.u32 %s22, 8
        %s887 = scalar_lea.vmem %s334, %s886 [#allocation5]
        %888 = vst [vmem:[%s887] sm:$0xff] %v885
        %s889 = sadd.s32 %s22, %s712
        %s890 = smul.u32 %s889, 4
        %s891 = smul.addr %s890, 8
        %s892 = scalar_lea.vmem [#allocation2], %s891
        %v893 = vld [vmem:[%s892] sm:$0xff]
        %v894 = vld [vmem:[%s892 + $0x8] sm:$0xff]
        %v895 = vld [vmem:[%s892 + $0x10] sm:$0xff]
        %v896 = vld [vmem:[%s892 + $0x18] sm:$0xff]
        %897 = vmatprep.subr.mxu0 %v708
        %898 = vmatpush1.msra.mxu0 %v707
        %899 = vmatprep.subr.mxu0 %v704
        %900 = vmatpush1.msra.mxu0 %v703
        %901 = vmatprep.subr.mxu0 %v700
        %902 = vmatpush1.msra.mxu0 %v699
        %903 = vmatprep.subr.mxu0 %v696
        %904 = vmatpush1.msra.mxu0 %v695
        %905 = vmatprep.subr.mxu0 %v692
        %906 = vmatpush1.msra.mxu0 %v691
        %907 = vmatprep.subr.mxu0 %v688
        %908 = vmatpush1.msra.mxu0 %v687
        %909 = vmatprep.subr.mxu0 %v684
        %910 = vmatpush1.msra.mxu0 %v683
        %911 = vmatprep.subr.mxu0 %v680
        %912 = vmatpush1.msra.mxu0 %v679
        %913 = vmatprep.subr.mxu0 %v676
        %914 = vmatpush1.msra.mxu0 %v675
        %915 = vmatprep.subr.mxu0 %v672
        %916 = vmatpush1.msra.mxu0 %v671
        %917 = vmatprep.subr.mxu0 %v668
        %918 = vmatpush1.msra.mxu0 %v667
        %919 = vmatprep.subr.mxu0 %v664
        %920 = vmatpush1.msra.mxu0 %v663
        %921 = vmatprep.subr.mxu0 %v660
        %922 = vmatpush1.msra.mxu0 %v659
        %923 = vmatprep.subr.mxu0 %v656
        %924 = vmatpush1.msra.mxu0 %v655
        %925 = vmatprep.subr.mxu0 %v652
        %926 = vmatpush1.msra.mxu0 %v651
        %927 = vmatprep.subr.mxu0 %v648
        %928 = vmatpush1.msra.mxu0 %v647
        %929 = vmatprep.subr.mxu0 0.0
        %930 = vmatpush2.msra.mxu0 0.0
        %931 = vmatprep.subr.mxu0 0.0
        %932 = vmatpush2.msra.mxu0 0.0
        %933 = vmatprep.subr.mxu0 0.0
        %934 = vmatpush2.msra.mxu0 0.0
        %935 = vmatprep.subr.mxu0 0.0
        %936 = vmatpush2.msra.mxu0 0.0
        %937 = vmatprep.subr.mxu0 0.0
        %938 = vmatpush2.msra.mxu0 0.0
        %939 = vmatprep.subr.mxu0 0.0
        %940 = vmatpush2.msra.mxu0 0.0
        %941 = vmatprep.subr.mxu0 0.0
        %942 = vmatpush2.msra.mxu0 0.0
        %943 = vmatprep.subr.mxu0 0.0
        %944 = vmatpush2.msra.mxu0 0.0
        %945 = vmatprep.subr.mxu0 0.0
        %946 = vmatpush2.msra.mxu0 0.0
        %947 = vmatprep.subr.mxu0 0.0
        %948 = vmatpush2.msra.mxu0 0.0
        %949 = vmatprep.subr.mxu0 0.0
        %950 = vmatpush2.msra.mxu0 0.0
        %951 = vmatprep.subr.mxu0 0.0
        %952 = vmatpush2.msra.mxu0 0.0
        %953 = vmatprep.subr.mxu0 0.0
        %954 = vmatpush2.msra.mxu0 0.0
        %955 = vmatprep.subr.mxu0 0.0
        %956 = vmatpush2.msra.mxu0 0.0
        %957 = vmatprep.subr.mxu0 0.0
        %958 = vmatpush2.msra.mxu0 0.0
        %959 = vmatprep.subr.mxu0 0.0
        %960 = vmatpush2.msra.mxu0 0.0
        %961 = vmatprep.mubr.f32.mxu0 0.0
        %962 = vmatmul.mubr.f32.gmra.mxu0 %v885
        %v963 = vpop.f32.mrf.mxu0
        %v964 = vadd.f32 0.0, %v963
        %v965 = vpop.f32.mrf.mxu0
        %v966 = vadd.f32 0.0, %v965
        %967 = vdwg.mxu0
        %968 = vmatprep.subr.mxu0 %v710
        %969 = vmatpush1.msra.mxu0 %v709
        %970 = vmatprep.subr.mxu0 %v706
        %971 = vmatpush1.msra.mxu0 %v705
        %972 = vmatprep.subr.mxu0 %v702
        %973 = vmatpush1.msra.mxu0 %v701
        %974 = vmatprep.subr.mxu0 %v698
        %975 = vmatpush1.msra.mxu0 %v697
        %976 = vmatprep.subr.mxu0 %v694
        %977 = vmatpush1.msra.mxu0 %v693
        %978 = vmatprep.subr.mxu0 %v690
        %979 = vmatpush1.msra.mxu0 %v689
        %980 = vmatprep.subr.mxu0 %v686
        %981 = vmatpush1.msra.mxu0 %v685
        %982 = vmatprep.subr.mxu0 %v682
        %983 = vmatpush1.msra.mxu0 %v681
        %984 = vmatprep.subr.mxu0 %v678
        %985 = vmatpush1.msra.mxu0 %v677
        %986 = vmatprep.subr.mxu0 %v674
        %987 = vmatpush1.msra.mxu0 %v673
        %988 = vmatprep.subr.mxu0 %v670
        %989 = vmatpush1.msra.mxu0 %v669
        %990 = vmatprep.subr.mxu0 %v666
        %991 = vmatpush1.msra.mxu0 %v665
        %992 = vmatprep.subr.mxu0 %v662
        %993 = vmatpush1.msra.mxu0 %v661
        %994 = vmatprep.subr.mxu0 %v658
        %995 = vmatpush1.msra.mxu0 %v657
        %996 = vmatprep.subr.mxu0 %v654
        %997 = vmatpush1.msra.mxu0 %v653
        %998 = vmatprep.subr.mxu0 %v650
        %999 = vmatpush1.msra.mxu0 %v649
        %1000 = vmatprep.subr.mxu0 0.0
        %1001 = vmatpush2.msra.mxu0 0.0
        %1002 = vmatprep.subr.mxu0 0.0
        %1003 = vmatpush2.msra.mxu0 0.0
        %1004 = vmatprep.subr.mxu0 0.0
        %1005 = vmatpush2.msra.mxu0 0.0
        %1006 = vmatprep.subr.mxu0 0.0
        %1007 = vmatpush2.msra.mxu0 0.0
        %1008 = vmatprep.subr.mxu0 0.0
        %1009 = vmatpush2.msra.mxu0 0.0
        %1010 = vmatprep.subr.mxu0 0.0
        %1011 = vmatpush2.msra.mxu0 0.0
        %1012 = vmatprep.subr.mxu0 0.0
        %1013 = vmatpush2.msra.mxu0 0.0
        %1014 = vmatprep.subr.mxu0 0.0
        %1015 = vmatpush2.msra.mxu0 0.0
        %1016 = vmatprep.subr.mxu0 0.0
        %1017 = vmatpush2.msra.mxu0 0.0
        %1018 = vmatprep.subr.mxu0 0.0
        %1019 = vmatpush2.msra.mxu0 0.0
        %1020 = vmatprep.subr.mxu0 0.0
        %1021 = vmatpush2.msra.mxu0 0.0
        %1022 = vmatprep.subr.mxu0 0.0
        %1023 = vmatpush2.msra.mxu0 0.0
        %1024 = vmatprep.subr.mxu0 0.0
        %1025 = vmatpush2.msra.mxu0 0.0
        %1026 = vmatprep.subr.mxu0 0.0
        %1027 = vmatpush2.msra.mxu0 0.0
        %1028 = vmatprep.subr.mxu0 0.0
        %1029 = vmatpush2.msra.mxu0 0.0
        %1030 = vmatprep.subr.mxu0 0.0
        %1031 = vmatpush2.msra.mxu0 0.0
        %1032 = vmatprep.mubr.f32.mxu0 0.0
        %1033 = vmatmul.mubr.f32.gmra.mxu0 %v885
        %v1034 = vpop.f32.mrf.mxu0
        %v1035 = vadd.f32 0.0, %v1034
        %v1036 = vpop.f32.mrf.mxu0
        %v1037 = vadd.f32 0.0, %v1036
        %1038 = vdwg.mxu0
        %v1039 = vadd.f32 %v893, %v964
        %v1040 = vadd.f32 %v894, %v966
        %v1041 = vadd.f32 %v895, %v1035
        %v1042 = vadd.f32 %v896, %v1037
        %v1043 = vmul.f32 %v1039, 0.5
        %v1044 = vtanh.pop %v1043
        %v1045 = vmul.f32 %v1044, 0.5
        %v1046 = vadd.f32 %v1045, 0.5
        %v1047 = vmul.f32 %v1040, 0.5
        %v1048 = vtanh.pop %v1047
        %v1049 = vmul.f32 %v1048, 0.5
        %v1050 = vadd.f32 %v1049, 0.5
        %v1051 = vtanh.pop %v1041
        %v1052 = vmul.f32 %v1042, 0.5
        %v1053 = vtanh.pop %v1052
        %v1054 = vmul.f32 %v1053, 0.5
        %v1055 = vadd.f32 %v1054, 0.5
        %v1056 = vmul.f32 %v1050, %v883
        %v1057 = vmul.f32 %v1046, %v1051
        %v1058 = vadd.f32 %v1056, %v1057
        %v1059 = vtanh.pop %v1058
        %v1060 = vmul.f32 %v1055, %v1059
        %s1061 = smul.u32 %s889, 8
        %s1062 = scalar_lea.vmem %s334, %s1061 [#allocation5]
        %1063 = vst [vmem:[%s1062] sm:$0xff] %v1060
        %1064 = vst [vmem:[#allocation3] sm:$0xff] %v1060
        %1065 = vst [vmem:[#allocation4] sm:$0xff] %v1058
        %1066 = vst [vmem:[%s386] sm:$0xff] %v1060
        %1067 = vst [vmem:[%s390] sm:$0xff] %v1058
        %s1068 = sand.u32 %s164, 1
        %s1069 = sand.u32 %s164, 1
        %s1070 = smul.addr %s1069, 16
        %s1071 = scalar_lea.vmem [#allocation5], %s1070
        %p1072 = scmp.lt.s32.totalorder %s22, 1
        %s1073 = scalar_select %p1072, %s22, 1
        %s1074 = smul.addr %s1073, 8
        %s1075 = scalar_lea.vmem %s5, %s1074
        %p1076 = scmp.lt.s32.totalorder %s22, 1
        %s1077 = scalar_select %p1076, %s22, 1
        %s1078 = smul.addr %s1077, 8
        %s1079 = scalar_lea.vmem %s6, %s1078
        // Predicated region
        $region41: #{encoder_forward.3} parent=35 // pred_check
          %p1080 = pneg %p174
        $region42: #{encoder_forward.3} parent=35 // pred_check_branch
          %1082 = sbr.rel (%p1080) target = $region44
        $region43: #{encoder_forward.3} parent=35 // pred_region
          %s1083 = ssub.s32 1, %s22
          %s1084 = smul.u32 %s1083, %s23
          %s1085 = ssub.s32 0, %s23
          %s1086 = smul.u32 %s22, %s1085
          %s1087 = sadd.s32 %s1084, %s1086
          %s1088 = smul.u32 2, %s1087
          %s1089 = smul.addr %s1088, 2
          %s1090 = sadd.s32 %s22, %s1089
          %s1091 = smul.addr %s1090, 8
          %s1092 = scalar_lea.vmem %s4, %s1091
          // Predicated region
          $region45: #{encoder_forward.3} parent=43 // pred_check
            _
          $region46: #{encoder_forward.3} parent=43 // pred_check_branch
            %1094 = sbr.rel (0) target = $region48
          $region47: #{encoder_forward.3} parent=43 // pred_region
            // Predicated region
            $region49: #{encoder_forward.3} parent=47 // pred_check
              _
            $region50: #{encoder_forward.3} parent=47 // pred_check_branch
              %1096 = sbr.rel (0) target = $region52
            $region51: #{encoder_forward.3} parent=47 // pred_region
              // Predicated region
              $region64: #{encoder_forward.3} parent=51 // pred_check
                _
              $region65: #{encoder_forward.3} parent=51 // pred_check_branch
                %1114 = sbr.rel (0) target = $region67
              $region66: #{encoder_forward.3} parent=51 // pred_region
                loop: start=0, step=1, limit=1
                $region68: #{encoder_forward.3} parent=66 // loop_pre_header
                  _
                $region69: #{encoder_forward.3} parent=66 // loop_header
                  %s1116 = sphi 0, %s1120
                  %p1117 = scmp.ge.s32.totalorder %s1116, 1
                  %s1121 = sphi %s1071, %s1071
                  %s1122 = sphi %s1092, %s1092
                $region70: #{encoder_forward.3} parent=66 // loop_header_branch
                  %1119 = sbr.rel (%p1117) target = $region74
                $region71: #{encoder_forward.3} parent=66 // loop_body
                  %v1123 = vld [vmem:[%s1121] sm:$0xff]
                  %1124 = vst [vmem:[%s1122] sm:$0xff] %v1123
                  %v1125 = vld [vmem:[%s1121 + $0x8] sm:$0xff]
                  %1126 = vst [vmem:[%s1122 + $0x10] sm:$0xff] %v1125
                $region72: #{encoder_forward.3} parent=66 // loop_footer
                  %s1120 = sadd.s32 1, %s1116
                $region73: #{encoder_forward.3} parent=66 // loop_footer_branch
                  %1115 = sbr.rel target = $region69
                $region74: #{encoder_forward.3} parent=66 // loop_exit
                  _
              $region67: #{encoder_forward.3} parent=51 // pred_fallthru
                _
              // Predicated region
              $region75: #{encoder_forward.3} parent=51 // pred_check
                _
              $region76: #{encoder_forward.3} parent=51 // pred_check_branch
                %1128 = sbr.rel target = $region78
              $region77: #{encoder_forward.3} parent=51 // pred_region
                _
              $region78: #{encoder_forward.3} parent=51 // pred_fallthru
                _
            $region52: #{encoder_forward.3} parent=47 // pred_fallthru
              _
            // Predicated region
            $region53: #{encoder_forward.3} parent=47 // pred_check
              _
            $region54: #{encoder_forward.3} parent=47 // pred_check_branch
              %1098 = sbr.rel target = $region56
            $region55: #{encoder_forward.3} parent=47 // pred_region
              %s1100 = ssub.s32 256, 1
              loop: start=0, step=1, limit=1
              $region57: #{encoder_forward.3} parent=55 // loop_pre_header
                _
              $region58: #{encoder_forward.3} parent=55 // loop_header
                %s1102 = sphi 0, %s1106
                %p1103 = scmp.ge.s32.totalorder %s1102, 1
                %s1107 = sphi %s1071, %s1071
                %s1108 = sphi %s1092, %s1092
              $region59: #{encoder_forward.3} parent=55 // loop_header_branch
                %1105 = sbr.rel (%p1103) target = $region63
              $region60: #{encoder_forward.3} parent=55 // loop_body
                %v1109 = vld [vmem:[%s1107] sm:%s1100]
                %1110 = vst [vmem:[%s1108] sm:%s1100] %v1109
                %v1111 = vld [vmem:[%s1107 + $0x8] sm:%s1100]
                %1112 = vst [vmem:[%s1108 + $0x10] sm:%s1100] %v1111
              $region61: #{encoder_forward.3} parent=55 // loop_footer
                %s1106 = sadd.s32 1, %s1102
              $region62: #{encoder_forward.3} parent=55 // loop_footer_branch
                %1101 = sbr.rel target = $region58
              $region63: #{encoder_forward.3} parent=55 // loop_exit
                _
            $region56: #{encoder_forward.3} parent=47 // pred_fallthru
              _
          $region48: #{encoder_forward.3} parent=43 // pred_fallthru
            _
          %1129 = vnop
        $region44: #{encoder_forward.3} parent=35 // pred_fallthru
          _
        // Predicated region
        $region79: #{encoder_forward.3} parent=35 // pred_check
          %p1130 = pneg %p200
        $region80: #{encoder_forward.3} parent=35 // pred_check_branch
          %1132 = sbr.rel (%p1130) target = $region82
        $region81: #{encoder_forward.3} parent=35 // pred_region
          _
        $region82: #{encoder_forward.3} parent=35 // pred_fallthru
          _
        // Predicated region
        $region83: #{encoder_forward.3} parent=35 // pred_check
          %p1133 = pneg %p226
        $region84: #{encoder_forward.3} parent=35 // pred_check_branch
          %1135 = sbr.rel (%p1133) target = $region86
        $region85: #{encoder_forward.3} parent=35 // pred_region
          _
        $region86: #{encoder_forward.3} parent=35 // pred_fallthru
          _
      $region36: #{encoder_forward.3} parent=5 // pred_fallthru
        _
      %p1136 = scmp.le.s32.totalorder 2, %s13
      // Predicated region
      $region87: #{encoder_forward.3} parent=5 // pred_check
        %p1137 = pneg %p1136
      $region88: #{encoder_forward.3} parent=5 // pred_check_branch
        %1139 = sbr.rel (%p1137) target = $region90
      $region89: #{encoder_forward.3} parent=5 // pred_region
        %s1140 = ssub.s32 %s13, 2
        // Predicated region
        $region91: #{encoder_forward.3} parent=89 // pred_check
          %p1141 = pneg %p180
        $region92: #{encoder_forward.3} parent=89 // pred_check_branch
          %1143 = sbr.rel (%p1141) target = $region94
        $region93: #{encoder_forward.3} parent=89 // pred_region
          %s1144 = sand.u32 %s165, 1
          %s1145 = sand.u32 %s165, 1
          %s1146 = smul.addr %s1145, 16
          %s1147 = scalar_lea.vmem [#allocation5], %s1146
        $region94: #{encoder_forward.3} parent=89 // pred_fallthru
          _
        // Predicated region
        $region95: #{encoder_forward.3} parent=89 // pred_check
          %p1148 = pneg %p206
        $region96: #{encoder_forward.3} parent=89 // pred_check_branch
          %1150 = sbr.rel (%p1148) target = $region98
        $region97: #{encoder_forward.3} parent=89 // pred_region
          %p1151 = scmp.lt.s32.totalorder %s24, 1
          %s1152 = scalar_select %p1151, %s24, 1
          %s1153 = smul.addr %s1152, 8
          %s1154 = scalar_lea.vmem %s5, %s1153
        $region98: #{encoder_forward.3} parent=89 // pred_fallthru
          _
        // Predicated region
        $region99: #{encoder_forward.3} parent=89 // pred_check
          %p1155 = pneg %p232
        $region100: #{encoder_forward.3} parent=89 // pred_check_branch
          %1157 = sbr.rel (%p1155) target = $region102
        $region101: #{encoder_forward.3} parent=89 // pred_region
          %p1158 = scmp.lt.s32.totalorder %s24, 1
          %s1159 = scalar_select %p1158, %s24, 1
          %s1160 = smul.addr %s1159, 8
          %s1161 = scalar_lea.vmem %s6, %s1160
        $region102: #{encoder_forward.3} parent=89 // pred_fallthru
          _
      $region90: #{encoder_forward.3} parent=5 // pred_fallthru
        _
    $region6: #{encoder_forward.3} parent=1 // loop_footer
      %s17 = sadd.s32 1, %s13
    $region7: #{encoder_forward.3} parent=1 // loop_footer_branch
      %12 = sbr.rel target = $region3
    $region8: #{encoder_forward.3} parent=1 // loop_exit
      _

// kernel: encoder_forward.2
$region0: #{encoder_forward.2}
  #allocation0 [shape = 'u32[]', space=smem, size = 0x4, offset = 0x4, fixed_abs, tag = 'smem constant byte address 0x4 - core index']
  #allocation1 [shape = 'u32[144,128]{1,0:T(1,128)}', space=vmem, size = 0x12000, scoped, tag = 'internal scratch']
  #allocation2 [shape = 'f32[8,8,512]{2,1,0:T(8,128)}', space=vmem, size = 0x20000, scoped, tag = 'scratch operand']
  #allocation3 [shape = 'f32[8,128]{1,0:T(8,128)}', space=vmem, size = 0x1000, scoped, tag = 'scratch operand']
  #allocation4 [shape = 'f32[8,128]{1,0:T(8,128)}', space=vmem, size = 0x1000, scoped, tag = 'scratch operand']
  %s0 = inlined_call_operand.vmem [shape: f32[8,8,128], index: 0, kind: input, shape index: {}]
  %s1 = inlined_call_operand.hbm [shape: f32[2,128,512], index: 1, kind: input, shape index: {}]
  %s2 = inlined_call_operand.hbm [shape: f32[2,128,512], index: 2, kind: input, shape index: {}]
  %s3 = inlined_call_operand.vmem [shape: f32[2,1,512], index: 3, kind: input, shape index: {}]
  %s4 = inlined_call_operand.vmem [shape: f32[2,8,128], index: 4, kind: output, shape index: {}]
  %s5 = sld [smem:[#allocation0]]
  $region61: #{encoder_forward.2} parent=0
    _
  %s7 = ssub.s32 1, %s5
  %s8 = scalar_select 0, %s7, %s5
  $region1: #{encoder_forward.2} parent=0
    #allocation5 [shape = 'u8[524288]{0}', space=vmem, size = 0x80000, scoped, tag = 'input window, operand 1']
    #allocation6 [shape = 's32[2]{0}', space=sflag, size = 0x8, scoped, tag = 'scoped memory for encoder_forward.2']
    #allocation7 [shape = 'u8[524288]{0}', space=vmem, size = 0x80000, scoped, tag = 'input window, operand 2']
    #allocation8 [shape = 's32[2]{0}', space=sflag, size = 0x8, scoped, tag = 'scoped memory for encoder_forward.2']
    %9 = vsyncpa [#allocation6], 0
    %s10 = scalar_lea.sflag [#allocation6], 1
    %11 = vsyncpa %s10, 0
    %12 = vsyncpa [#allocation8], 0
    %s13 = scalar_lea.sflag [#allocation8], 1
    %14 = vsyncpa %s13, 0
    loop: start=0, step=1, limit=4
    $region2: #{encoder_forward.2} parent=1 // loop_pre_header
      _
    $region3: #{encoder_forward.2} parent=1 // loop_header
      %s16 = sphi 0, %s20
      %p17 = scmp.ge.s32.totalorder %s16, 4
      %s23 = sphi 0, %s35
      %s24 = sphi 0, %s31
      %s25 = sphi 0, %s23
      %s26 = sphi 0, %s24
      %s27 = sphi 0, %s25
      %s28 = sphi 0, %s26
      %s48 = sphi 0, %s50
      %s51 = sphi 0, %s48
      %s52 = sphi 0, %s51
      %s68 = sphi 0, %s52
      %s74 = sphi 0, %s76
      %s77 = sphi 0, %s74
      %s78 = sphi 0, %s77
      %s94 = sphi 0, %s78
      %s100 = sphi 0, %s102
      %s103 = sphi 0, %s100
      %s104 = sphi 0, %s103
      %s120 = sphi 0, %s104
      %s126 = sphi 0, %s128
      %s129 = sphi 0, %s126
      %s130 = sphi 0, %s129
      %s146 = sphi 0, %s130
      %s152 = sphi 0, %s154
      %s155 = sphi 0, %s152
      %s156 = sphi 0, %s155
      %s172 = sphi 0, %s156
    $region4: #{encoder_forward.2} parent=1 // loop_header_branch
      %19 = sbr.rel (%p17) target = $region8
    $region5: #{encoder_forward.2} parent=1 // loop_body
      %s21 = ssub.s32 %s16, 1
      %s22 = ssub.s32 %s16, 2
      %s29 = sadd.s32 1, %s24
      %p30 = scmp.ge.s32.totalorder %s29, 1
      %s31 = scalar_select %p30, 0, %s29
      %s32 = sadd.s32 1, %s23
      %s33 = scalar_select %p30, %s32, %s23
      %p34 = scmp.ge.s32.totalorder %s33, 2
      %s35 = scalar_select %p34, 0, %s33
      %s36 = ssub.s32 1, %s23
      %s37 = smul.u32 %s36, %s24
      %s38 = ssub.s32 0, %s24
      %s39 = smul.u32 %s23, %s38
      %s40 = sadd.s32 %s37, %s39
      %s41 = ssub.s32 1, %s35
      %s42 = smul.u32 %s41, %s31
      %s43 = ssub.s32 0, %s31
      %s44 = smul.u32 %s35, %s43
      %s45 = sadd.s32 %s42, %s44
      %s46 = ssub.s32 %s40, %s45
      %p47 = scmp.eq.s32.totalorder %s46, 0
      %s49 = sadd.s32 %s48, 1
      %s50 = scalar_select %p47, %s48, %s49
      %p53 = pneg %p47
      %p54 = scmp.eq.s32.totalorder %s16, 1
      %p55 = por %p53, %p54
      %p56 = scmp.ne.s32.totalorder %s48, %s51
      %p57 = scmp.eq.s32.totalorder %s16, 0
      %p58 = por %p56, %p57
      %p59 = scmp.ne.s32.totalorder %s48, %s51
      %p60 = scmp.eq.s32.totalorder %s21, 1
      %p61 = por %p59, %p60
      %p62 = scmp.ne.s32.totalorder %s51, %s52
      %p63 = scmp.eq.s32.totalorder %s21, 0
      %p64 = por %p62, %p63
      %p65 = scmp.ne.s32.totalorder %s51, %s52
      %p66 = scmp.eq.s32.totalorder %s22, 1
      %p67 = por %p65, %p66
      %p69 = scmp.ne.s32.totalorder %s52, %s68
      %p70 = scmp.eq.s32.totalorder %s22, 0
      %p71 = por %p69, %p70
      %s72 = ssub.s32 %s23, %s35
      %p73 = scmp.eq.s32.totalorder %s72, 0
      %s75 = sadd.s32 %s74, 1
      %s76 = scalar_select %p73, %s74, %s75
      %p79 = pneg %p73
      %p80 = scmp.eq.s32.totalorder %s16, 1
      %p81 = por %p79, %p80
      %p82 = scmp.ne.s32.totalorder %s74, %s77
      %p83 = scmp.eq.s32.totalorder %s16, 0
      %p84 = por %p82, %p83
      %p85 = scmp.ne.s32.totalorder %s74, %s77
      %p86 = scmp.eq.s32.totalorder %s21, 1
      %p87 = por %p85, %p86
      %p88 = scmp.ne.s32.totalorder %s77, %s78
      %p89 = scmp.eq.s32.totalorder %s21, 0
      %p90 = por %p88, %p89
      %p91 = scmp.ne.s32.totalorder %s77, %s78
      %p92 = scmp.eq.s32.totalorder %s22, 1
      %p93 = por %p91, %p92
      %p95 = scmp.ne.s32.totalorder %s78, %s94
      %p96 = scmp.eq.s32.totalorder %s22, 0
      %p97 = por %p95, %p96
      %s98 = ssub.s32 %s23, %s35
      %p99 = scmp.eq.s32.totalorder %s98, 0
      %s101 = sadd.s32 %s100, 1
      %s102 = scalar_select %p99, %s100, %s101
      %p105 = pneg %p99
      %p106 = scmp.eq.s32.totalorder %s16, 1
      %p107 = por %p105, %p106
      %p108 = scmp.ne.s32.totalorder %s100, %s103
      %p109 = scmp.eq.s32.totalorder %s16, 0
      %p110 = por %p108, %p109
      %p111 = scmp.ne.s32.totalorder %s100, %s103
      %p112 = scmp.eq.s32.totalorder %s21, 1
      %p113 = por %p111, %p112
      %p114 = scmp.ne.s32.totalorder %s103, %s104
      %p115 = scmp.eq.s32.totalorder %s21, 0
      %p116 = por %p114, %p115
      %p117 = scmp.ne.s32.totalorder %s103, %s104
      %p118 = scmp.eq.s32.totalorder %s22, 1
      %p119 = por %p117, %p118
      %p121 = scmp.ne.s32.totalorder %s104, %s120
      %p122 = scmp.eq.s32.totalorder %s22, 0
      %p123 = por %p121, %p122
      %s124 = ssub.s32 %s23, %s35
      %p125 = scmp.eq.s32.totalorder %s124, 0
      %s127 = sadd.s32 %s126, 1
      %s128 = scalar_select %p125, %s126, %s127
      %p131 = pneg %p125
      %p132 = scmp.eq.s32.totalorder %s16, 1
      %p133 = por %p131, %p132
      %p134 = scmp.ne.s32.totalorder %s126, %s129
      %p135 = scmp.eq.s32.totalorder %s16, 0
      %p136 = por %p134, %p135
      %p137 = scmp.ne.s32.totalorder %s126, %s129
      %p138 = scmp.eq.s32.totalorder %s21, 1
      %p139 = por %p137, %p138
      %p140 = scmp.ne.s32.totalorder %s129, %s130
      %p141 = scmp.eq.s32.totalorder %s21, 0
      %p142 = por %p140, %p141
      %p143 = scmp.ne.s32.totalorder %s129, %s130
      %p144 = scmp.eq.s32.totalorder %s22, 1
      %p145 = por %p143, %p144
      %p147 = scmp.ne.s32.totalorder %s130, %s146
      %p148 = scmp.eq.s32.totalorder %s22, 0
      %p149 = por %p147, %p148
      %s150 = ssub.s32 %s23, %s35
      %p151 = scmp.eq.s32.totalorder %s150, 0
      %s153 = sadd.s32 %s152, 1
      %s154 = scalar_select %p151, %s152, %s153
      %p157 = pneg %p151
      %p158 = scmp.eq.s32.totalorder %s16, 1
      %p159 = por %p157, %p158
      %p160 = scmp.ne.s32.totalorder %s152, %s155
      %p161 = scmp.eq.s32.totalorder %s16, 0
      %p162 = por %p160, %p161
      %p163 = scmp.ne.s32.totalorder %s152, %s155
      %p164 = scmp.eq.s32.totalorder %s21, 1
      %p165 = por %p163, %p164
      %p166 = scmp.ne.s32.totalorder %s155, %s156
      %p167 = scmp.eq.s32.totalorder %s21, 0
      %p168 = por %p166, %p167
      %p169 = scmp.ne.s32.totalorder %s155, %s156
      %p170 = scmp.eq.s32.totalorder %s22, 1
      %p171 = por %p169, %p170
      %p173 = scmp.ne.s32.totalorder %s156, %s172
      %p174 = scmp.eq.s32.totalorder %s22, 0
      %p175 = por %p173, %p174
      %p176 = scmp.le.s32.totalorder 1, %s16
      %p177 = scmp.lt.s32.totalorder %s16, 3
      %p178 = pnand %p176, %p177
      %p179 = pneg %p178
      // Predicated region
      $region9: #{encoder_forward.2} parent=5 // pred_check
        _
      $region10: #{encoder_forward.2} parent=5 // pred_check_branch
        %181 = sbr.rel (%p178) target = $region12
      $region11: #{encoder_forward.2} parent=5 // pred_region
        %s182 = ssub.s32 %s16, 1
      $region12: #{encoder_forward.2} parent=5 // pred_fallthru
        _
      %p183 = scmp.lt.s32.totalorder %s16, 2
      // Predicated region
      $region13: #{encoder_forward.2} parent=5 // pred_check
        %p184 = pneg %p183
      $region14: #{encoder_forward.2} parent=5 // pred_check_branch
        %186 = sbr.rel (%p184) target = $region16
      $region15: #{encoder_forward.2} parent=5 // pred_region
        // Predicated region
        $region17: #{encoder_forward.2} parent=15 // pred_check
          %p187 = pneg %p58
        $region18: #{encoder_forward.2} parent=15 // pred_check_branch
          %189 = sbr.rel (%p187) target = $region20
        $region19: #{encoder_forward.2} parent=15 // pred_region
          %s190 = ssub.s32 1, %s23
          %s191 = smul.u32 %s190, %s24
          %s192 = ssub.s32 0, %s24
          %s193 = smul.u32 %s23, %s192
          %s194 = sadd.s32 %s191, %s193
          %s195 = smul.u32 8, %s194
          %p196 = scmp.lt.s32.totalorder %s195, 7
          %s197 = scalar_select %p196, %s195, 7
          %s198 = smul.addr %s197, 8
          %s199 = scalar_lea.vmem %s0, %s198
          %s200 = ssub.s32 1, %s23
          %s201 = smul.u32 %s200, %s24
          %s202 = ssub.s32 0, %s24
          %s203 = smul.u32 %s23, %s202
          %s204 = sadd.s32 %s201, %s203
          %s205 = smul.u32 8, %s204
        $region20: #{encoder_forward.2} parent=15 // pred_fallthru
          _
        // Predicated region
        $region21: #{encoder_forward.2} parent=15 // pred_check
          %p206 = pneg %p84
        $region22: #{encoder_forward.2} parent=15 // pred_check_branch
          %208 = sbr.rel (%p206) target = $region24
        $region23: #{encoder_forward.2} parent=15 // pred_region
          %s209 = sand.u32 %s74, 1
          %s210 = scalar_lea.sflag [#allocation6], %s209
          %s211 = sand.u32 %s74, 1
          %s212 = smul.addr %s211, 512
          %s213 = scalar_lea.vmem [#allocation5], %s212
          %s215 = ssub.s32 8192, 8192
          %216 = vsyncadd %s210, %s215
          %s217 = smul.addr %s23, 64
          %s218 = smul.addr %s217, 128
          %s219 = scalar_lea.hbm %s1, %s218
          %s220 = sshll.u32 %s213, 4
          %s221 = int_to_ptr.vmem [resolvable:$true] %s220
          %226 = dma.hbm_to_vmem [thread:$0]  %s219, 8192, %s221, %s210, 512, 512, 32
        $region24: #{encoder_forward.2} parent=15 // pred_fallthru
          _
        // Predicated region
        $region25: #{encoder_forward.2} parent=15 // pred_check
          %p227 = pneg %p110
        $region26: #{encoder_forward.2} parent=15 // pred_check_branch
          %229 = sbr.rel (%p227) target = $region28
        $region27: #{encoder_forward.2} parent=15 // pred_region
          %s230 = sand.u32 %s100, 1
          %s231 = scalar_lea.sflag [#allocation8], %s230
          %s232 = sand.u32 %s100, 1
          %s233 = smul.addr %s232, 512
          %s234 = scalar_lea.vmem [#allocation7], %s233
          %s236 = ssub.s32 8192, 8192
          %237 = vsyncadd %s231, %s236
          %s238 = smul.addr %s23, 64
          %s239 = smul.addr %s238, 128
          %s240 = scalar_lea.hbm %s2, %s239
          %s241 = sshll.u32 %s234, 4
          %s242 = int_to_ptr.vmem [resolvable:$true] %s241
          %247 = dma.hbm_to_vmem [thread:$0]  %s240, 8192, %s242, %s231, 512, 512, 32
        $region28: #{encoder_forward.2} parent=15 // pred_fallthru
          _
        // Predicated region
        $region29: #{encoder_forward.2} parent=15 // pred_check
          %p248 = pneg %p136
        $region30: #{encoder_forward.2} parent=15 // pred_check_branch
          %250 = sbr.rel (%p248) target = $region32
        $region31: #{encoder_forward.2} parent=15 // pred_region
          %p251 = scmp.lt.s32.totalorder %s23, 1
          %s252 = scalar_select %p251, %s23, 1
          %s253 = smul.addr %s252, 4
          %s254 = scalar_lea.vmem %s3, %s253
        $region32: #{encoder_forward.2} parent=15 // pred_fallthru
          _
      $region16: #{encoder_forward.2} parent=5 // pred_fallthru
        _
      %p255 = scmp.le.s32.totalorder 1, %s16
      %p256 = scmp.lt.s32.totalorder %s16, 3
      %p257 = pnand %p255, %p256
      %p258 = pneg %p257
      // Predicated region
      $region33: #{encoder_forward.2} parent=5 // pred_check
        _
      $region34: #{encoder_forward.2} parent=5 // pred_check_branch
        %260 = sbr.rel (%p257) target = $region36
      $region35: #{encoder_forward.2} parent=5 // pred_region
        %s261 = ssub.s32 %s16, 1
        %s262 = sand.u32 %s77, 1
        %s263 = scalar_lea.sflag [#allocation6], %s262
        %s264 = sand.u32 %s77, 1
        %s265 = smul.addr %s264, 512
        %s266 = scalar_lea.vmem [#allocation5], %s265
        // Predicated region
        $region37: #{encoder_forward.2} parent=35 // pred_check
          %p267 = pneg %p90
        $region38: #{encoder_forward.2} parent=35 // pred_check_branch
          %269 = sbr.rel (%p267) target = $region40
        $region39: #{encoder_forward.2} parent=35 // pred_region
          %270 = dma.done %s263, 8192
        $region40: #{encoder_forward.2} parent=35 // pred_fallthru
          _
        %s271 = sand.u32 %s103, 1
        %s272 = scalar_lea.sflag [#allocation8], %s271
        %s273 = sand.u32 %s103, 1
        %s274 = smul.addr %s273, 512
        %s275 = scalar_lea.vmem [#allocation7], %s274
        // Predicated region
        $region41: #{encoder_forward.2} parent=35 // pred_check
          %p276 = pneg %p116
        $region42: #{encoder_forward.2} parent=35 // pred_check_branch
          %278 = sbr.rel (%p276) target = $region44
        $region43: #{encoder_forward.2} parent=35 // pred_region
          %279 = dma.done %s272, 8192
        $region44: #{encoder_forward.2} parent=35 // pred_fallthru
          _
        %s280 = ssub.s32 1, %s25
        %s281 = smul.u32 %s280, %s26
        %s282 = ssub.s32 0, %s26
        %s283 = smul.u32 %s25, %s282
        %s284 = sadd.s32 %s281, %s283
        %s285 = smul.u32 8, %s284
        %p286 = scmp.lt.s32.totalorder %s285, 7
        %s287 = scalar_select %p286, %s285, 7
        %s288 = smul.addr %s287, 8
        %s289 = scalar_lea.vmem %s0, %s288
        %p290 = pneg %p64
        %p291 = pneg %p61
        %s292 = sand.u32 %s77, 1
        %s293 = scalar_lea.sflag [#allocation6], %s292
        %s294 = sand.u32 %s77, 1
        %s295 = smul.addr %s294, 512
        %s296 = scalar_lea.vmem [#allocation5], %s295
        %p297 = pneg %p90
        %p298 = pneg %p87
        %s299 = sand.u32 %s103, 1
        %s300 = scalar_lea.sflag [#allocation8], %s299
        %s301 = sand.u32 %s103, 1
        %s302 = smul.addr %s301, 512
        %s303 = scalar_lea.vmem [#allocation7], %s302
        %p304 = pneg %p116
        %p305 = pneg %p113
        %p306 = scmp.lt.s32.totalorder %s25, 1
        %s307 = scalar_select %p306, %s25, 1
        %s308 = smul.addr %s307, 4
        %s309 = scalar_lea.vmem %s3, %s308
        %p310 = pneg %p142
        %p311 = pneg %p139
        %p312 = pneg %p168
        %p313 = pneg %p165
        %p314 = scmp.lt.s32.totalorder %s25, 1
        %s315 = scalar_select %p314, %s25, 1
        %s316 = smul.addr %s315, 8
        %s317 = scalar_lea.vmem %s4, %s316
        %s318 = ssub.s32 1, %s25
        %s319 = smul.u32 %s318, %s26
        %s320 = ssub.s32 0, %s26
        %s321 = smul.u32 %s25, %s320
        %s322 = sadd.s32 %s319, %s321
        %s323 = smul.u32 8, %s322
        %p324 = scmp.lt.s32.totalorder %s323, 7
        %s325 = scalar_select %p324, %s323, 7
        %s326 = smul.addr %s325, 8
        %s327 = scalar_lea.vmem %s0, %s326
        %s328 = ssub.s32 1, %s25
        %s329 = smul.u32 %s328, %s26
        %s330 = ssub.s32 0, %s26
        %s331 = smul.u32 %s25, %s330
        %s332 = sadd.s32 %s329, %s331
        %s333 = smul.u32 8, %s332
        %p334 = scmp.lt.s32.totalorder %s25, 1
        %s335 = scalar_select %p334, %s25, 1
        %s336 = smul.addr %s335, 4
        %s337 = scalar_lea.vmem %s3, %s336
        %p338 = scmp.lt.s32.totalorder %s25, 1
        %s339 = scalar_select %p338, %s25, 1
        %s340 = smul.addr %s339, 8
        %s341 = scalar_lea.vmem %s4, %s340
        %p342 = scmp.eq.s32.totalorder %s26, 0
        // Predicated region
        $region45: #{encoder_forward.2} parent=35 // pred_check
          %p343 = pneg %p342
        $region46: #{encoder_forward.2} parent=35 // pred_check_branch
          %345 = sbr.rel (%p343) target = $region48
        $region47: #{encoder_forward.2} parent=35 // pred_region
          %346 = vst [vmem:[#allocation3] sm:$0xff] 0.0
          %347 = vst [vmem:[#allocation4] sm:$0xff] 0.0
        $region48: #{encoder_forward.2} parent=35 // pred_fallthru
          _
        %v348 = vld [vmem:[%s327] sm:$0xff]
        %v349 = vld [vmem:[%s327 + $0x8] sm:$0xff]
        %v350 = vld [vmem:[%s327 + $0x10] sm:$0xff]
        %v351 = vld [vmem:[%s327 + $0x18] sm:$0xff]
        %v352 = vld [vmem:[%s327 + $0x20] sm:$0xff]
        %v353 = vld [vmem:[%s327 + $0x28] sm:$0xff]
        %v354 = vld [vmem:[%s327 + $0x30] sm:$0xff]
        %v355 = vld [vmem:[%s327 + $0x38] sm:$0xff]
        %v356 = vld [vmem:[%s266] sm:$0xff]
        %v357 = vld [vmem:[%s266 + $0x8] sm:$0xff]
        %v358 = vld [vmem:[%s266 + $0x10] sm:$0xff]
        %v359 = vld [vmem:[%s266 + $0x18] sm:$0xff]
        %v360 = vld [vmem:[%s266 + $0x20] sm:$0xff]
        %v361 = vld [vmem:[%s266 + $0x28] sm:$0xff]
        %v362 = vld [vmem:[%s266 + $0x30] sm:$0xff]
        %v363 = vld [vmem:[%s266 + $0x38] sm:$0xff]
        %v364 = vld [vmem:[%s266 + $0x40] sm:$0xff]
        %v365 = vld [vmem:[%s266 + $0x48] sm:$0xff]
        %v366 = vld [vmem:[%s266 + $0x50] sm:$0xff]
        %v367 = vld [vmem:[%s266 + $0x58] sm:$0xff]
        %v368 = vld [vmem:[%s266 + $0x60] sm:$0xff]
        %v369 = vld [vmem:[%s266 + $0x68] sm:$0xff]
        %v370 = vld [vmem:[%s266 + $0x70] sm:$0xff]
        %v371 = vld [vmem:[%s266 + $0x78] sm:$0xff]
        %v372 = vld [vmem:[%s266 + $0x80] sm:$0xff]
        %v373 = vld [vmem:[%s266 + $0x88] sm:$0xff]
        %v374 = vld [vmem:[%s266 + $0x90] sm:$0xff]
        %v375 = vld [vmem:[%s266 + $0x98] sm:$0xff]
        %v376 = vld [vmem:[%s266 + $0xa0] sm:$0xff]
        %v377 = vld [vmem:[%s266 + $0xa8] sm:$0xff]
        %v378 = vld [vmem:[%s266 + $0xb0] sm:$0xff]
        %v379 = vld [vmem:[%s266 + $0xb8] sm:$0xff]
        %v380 = vld [vmem:[%s266 + $0xc0] sm:$0xff]
        %v381 = vld [vmem:[%s266 + $0xc8] sm:$0xff]
        %v382 = vld [vmem:[%s266 + $0xd0] sm:$0xff]
        %v383 = vld [vmem:[%s266 + $0xd8] sm:$0xff]
        %v384 = vld [vmem:[%s266 + $0xe0] sm:$0xff]
        %v385 = vld [vmem:[%s266 + $0xe8] sm:$0xff]
        %v386 = vld [vmem:[%s266 + $0xf0] sm:$0xff]
        %v387 = vld [vmem:[%s266 + $0xf8] sm:$0xff]
        %v388 = vld [vmem:[%s266 + $0x100] sm:$0xff]
        %v389 = vld [vmem:[%s266 + $0x108] sm:$0xff]
        %v390 = vld [vmem:[%s266 + $0x110] sm:$0xff]
        %v391 = vld [vmem:[%s266 + $0x118] sm:$0xff]
        %v392 = vld [vmem:[%s266 + $0x120] sm:$0xff]
        %v393 = vld [vmem:[%s266 + $0x128] sm:$0xff]
        %v394 = vld [vmem:[%s266 + $0x130] sm:$0xff]
        %v395 = vld [vmem:[%s266 + $0x138] sm:$0xff]
        %v396 = vld [vmem:[%s266 + $0x140] sm:$0xff]
        %v397 = vld [vmem:[%s266 + $0x148] sm:$0xff]
        %v398 = vld [vmem:[%s266 + $0x150] sm:$0xff]
        %v399 = vld [vmem:[%s266 + $0x158] sm:$0xff]
        %v400 = vld [vmem:[%s266 + $0x160] sm:$0xff]
        %v401 = vld [vmem:[%s266 + $0x168] sm:$0xff]
        %v402 = vld [vmem:[%s266 + $0x170] sm:$0xff]
        %v403 = vld [vmem:[%s266 + $0x178] sm:$0xff]
        %v404 = vld [vmem:[%s266 + $0x180] sm:$0xff]
        %v405 = vld [vmem:[%s266 + $0x188] sm:$0xff]
        %v406 = vld [vmem:[%s266 + $0x190] sm:$0xff]
        %v407 = vld [vmem:[%s266 + $0x198] sm:$0xff]
        %v408 = vld [vmem:[%s266 + $0x1a0] sm:$0xff]
        %v409 = vld [vmem:[%s266 + $0x1a8] sm:$0xff]
        %v410 = vld [vmem:[%s266 + $0x1b0] sm:$0xff]
        %v411 = vld [vmem:[%s266 + $0x1b8] sm:$0xff]
        %v412 = vld [vmem:[%s266 + $0x1c0] sm:$0xff]
        %v413 = vld [vmem:[%s266 + $0x1c8] sm:$0xff]
        %v414 = vld [vmem:[%s266 + $0x1d0] sm:$0xff]
        %v415 = vld [vmem:[%s266 + $0x1d8] sm:$0xff]
        %v416 = vld [vmem:[%s266 + $0x1e0] sm:$0xff]
        %v417 = vld [vmem:[%s266 + $0x1e8] sm:$0xff]
        %v418 = vld [vmem:[%s266 + $0x1f0] sm:$0xff]
        %v419 = vld [vmem:[%s266 + $0x1f8] sm:$0xff]
        %v420 = vld [vmem:[%s337] sm:$0xf]
        %v422 = vlaneseq
        %v423 = vshrl.u32 %v422, 7
        %v424 = vsub.s32 0, %v423
        %v425 = vrot.slane %v420, %v424
        %v426 = vlaneseq
        %v427 = vshrl.u32 %v426, 7
        %v428 = vsub.s32 1, %v427
        %v429 = vrot.slane %v420, %v428
        %v430 = vlaneseq
        %v431 = vshrl.u32 %v430, 7
        %v432 = vsub.s32 2, %v431
        %v433 = vrot.slane %v420, %v432
        %v434 = vlaneseq
        %v435 = vshrl.u32 %v434, 7
        %v436 = vsub.s32 3, %v435
        %v437 = vrot.slane %v420, %v436
        %442 = vmatprep.subr.mxu0 %v417
        %443 = vmatpush1.msra.mxu0 %v416
        %444 = vmatprep.subr.mxu0 %v413
        %445 = vmatpush1.msra.mxu0 %v412
        %446 = vmatprep.subr.mxu0 %v409
        %447 = vmatpush1.msra.mxu0 %v408
        %448 = vmatprep.subr.mxu0 %v405
        %449 = vmatpush1.msra.mxu0 %v404
        %450 = vmatprep.subr.mxu0 %v401
        %451 = vmatpush1.msra.mxu0 %v400
        %452 = vmatprep.subr.mxu0 %v397
        %453 = vmatpush1.msra.mxu0 %v396
        %454 = vmatprep.subr.mxu0 %v393
        %455 = vmatpush1.msra.mxu0 %v392
        %456 = vmatprep.subr.mxu0 %v389
        %457 = vmatpush1.msra.mxu0 %v388
        %458 = vmatprep.subr.mxu0 %v385
        %459 = vmatpush1.msra.mxu0 %v384
        %460 = vmatprep.subr.mxu0 %v381
        %461 = vmatpush1.msra.mxu0 %v380
        %462 = vmatprep.subr.mxu0 %v377
        %463 = vmatpush1.msra.mxu0 %v376
        %464 = vmatprep.subr.mxu0 %v373
        %465 = vmatpush1.msra.mxu0 %v372
        %466 = vmatprep.subr.mxu0 %v369
        %467 = vmatpush1.msra.mxu0 %v368
        %468 = vmatprep.subr.mxu0 %v365
        %469 = vmatpush1.msra.mxu0 %v364
        %470 = vmatprep.subr.mxu0 %v361
        %471 = vmatpush1.msra.mxu0 %v360
        %472 = vmatprep.subr.mxu0 %v357
        %473 = vmatpush1.msra.mxu0 %v356
        %474 = vmatprep.subr.mxu0 0.0
        %475 = vmatpush2.msra.mxu0 0.0
        %476 = vmatprep.subr.mxu0 0.0
        %477 = vmatpush2.msra.mxu0 0.0
        %478 = vmatprep.subr.mxu0 0.0
        %479 = vmatpush2.msra.mxu0 0.0
        %480 = vmatprep.subr.mxu0 0.0
        %481 = vmatpush2.msra.mxu0 0.0
        %482 = vmatprep.subr.mxu0 0.0
        %483 = vmatpush2.msra.mxu0 0.0
        %484 = vmatprep.subr.mxu0 0.0
        %485 = vmatpush2.msra.mxu0 0.0
        %486 = vmatprep.subr.mxu0 0.0
        %487 = vmatpush2.msra.mxu0 0.0
        %488 = vmatprep.subr.mxu0 0.0
        %489 = vmatpush2.msra.mxu0 0.0
        %490 = vmatprep.subr.mxu0 0.0
        %491 = vmatpush2.msra.mxu0 0.0
        %492 = vmatprep.subr.mxu0 0.0
        %493 = vmatpush2.msra.mxu0 0.0
        %494 = vmatprep.subr.mxu0 0.0
        %495 = vmatpush2.msra.mxu0 0.0
        %496 = vmatprep.subr.mxu0 0.0
        %497 = vmatpush2.msra.mxu0 0.0
        %498 = vmatprep.subr.mxu0 0.0
        %499 = vmatpush2.msra.mxu0 0.0
        %500 = vmatprep.subr.mxu0 0.0
        %501 = vmatpush2.msra.mxu0 0.0
        %502 = vmatprep.subr.mxu0 0.0
        %503 = vmatpush2.msra.mxu0 0.0
        %504 = vmatprep.subr.mxu0 0.0
        %505 = vmatpush2.msra.mxu0 0.0
        %506 = vmatprep.mubr.f32.mxu0 0.0
        %507 = vmatmul.mubr.f32.gmra.mxu0 %v348
        %v508 = vpop.f32.mrf.mxu0
        %v509 = vadd.f32 %v425, %v508
        %v510 = vpop.f32.mrf.mxu0
        %v511 = vadd.f32 %v429, %v510
        %512 = vmatprep.mubr.f32.mxu0 0.0
        %513 = vmatmul.mubr.f32.gmra.mxu0 %v349
        %v514 = vpop.f32.mrf.mxu0
        %v515 = vadd.f32 %v425, %v514
        %v516 = vpop.f32.mrf.mxu0
        %v517 = vadd.f32 %v429, %v516
        %518 = vmatprep.mubr.f32.mxu0 0.0
        %519 = vmatmul.mubr.f32.gmra.mxu0 %v350
        %v520 = vpop.f32.mrf.mxu0
        %v521 = vadd.f32 %v425, %v520
        %v522 = vpop.f32.mrf.mxu0
        %v523 = vadd.f32 %v429, %v522
        %524 = vmatprep.mubr.f32.mxu0 0.0
        %525 = vmatmul.mubr.f32.gmra.mxu0 %v351
        %v526 = vpop.f32.mrf.mxu0
        %v527 = vadd.f32 %v425, %v526
        %v528 = vpop.f32.mrf.mxu0
        %v529 = vadd.f32 %v429, %v528
        %530 = vmatprep.mubr.f32.mxu0 0.0
        %531 = vmatmul.mubr.f32.gmra.mxu0 %v352
        %v532 = vpop.f32.mrf.mxu0
        %v533 = vadd.f32 %v425, %v532
        %v534 = vpop.f32.mrf.mxu0
        %v535 = vadd.f32 %v429, %v534
        %536 = vmatprep.mubr.f32.mxu0 0.0
        %537 = vmatmul.mubr.f32.gmra.mxu0 %v353
        %v538 = vpop.f32.mrf.mxu0
        %v539 = vadd.f32 %v425, %v538
        %v540 = vpop.f32.mrf.mxu0
        %v541 = vadd.f32 %v429, %v540
        %542 = vmatprep.mubr.f32.mxu0 0.0
        %543 = vmatmul.mubr.f32.gmra.mxu0 %v354
        %v544 = vpop.f32.mrf.mxu0
        %v545 = vadd.f32 %v425, %v544
        %v546 = vpop.f32.mrf.mxu0
        %v547 = vadd.f32 %v429, %v546
        %548 = vmatprep.mubr.f32.mxu0 0.0
        %549 = vmatmul.mubr.f32.gmra.mxu0 %v355
        %v550 = vpop.f32.mrf.mxu0
        %v551 = vadd.f32 %v425, %v550
        %v552 = vpop.f32.mrf.mxu0
        %v553 = vadd.f32 %v429, %v552
        %554 = vdwg.mxu0
        %555 = vmatprep.subr.mxu0 %v419
        %556 = vmatpush1.msra.mxu0 %v418
        %557 = vmatprep.subr.mxu0 %v415
        %558 = vmatpush1.msra.mxu0 %v414
        %559 = vmatprep.subr.mxu0 %v411
        %560 = vmatpush1.msra.mxu0 %v410
        %561 = vmatprep.subr.mxu0 %v407
        %562 = vmatpush1.msra.mxu0 %v406
        %563 = vmatprep.subr.mxu0 %v403
        %564 = vmatpush1.msra.mxu0 %v402
        %565 = vmatprep.subr.mxu0 %v399
        %566 = vmatpush1.msra.mxu0 %v398
        %567 = vmatprep.subr.mxu0 %v395
        %568 = vmatpush1.msra.mxu0 %v394
        %569 = vmatprep.subr.mxu0 %v391
        %570 = vmatpush1.msra.mxu0 %v390
        %571 = vmatprep.subr.mxu0 %v387
        %572 = vmatpush1.msra.mxu0 %v386
        %573 = vmatprep.subr.mxu0 %v383
        %574 = vmatpush1.msra.mxu0 %v382
        %575 = vmatprep.subr.mxu0 %v379
        %576 = vmatpush1.msra.mxu0 %v378
        %577 = vmatprep.subr.mxu0 %v375
        %578 = vmatpush1.msra.mxu0 %v374
        %579 = vmatprep.subr.mxu0 %v371
        %580 = vmatpush1.msra.mxu0 %v370
        %581 = vmatprep.subr.mxu0 %v367
        %582 = vmatpush1.msra.mxu0 %v366
        %583 = vmatprep.subr.mxu0 %v363
        %584 = vmatpush1.msra.mxu0 %v362
        %585 = vmatprep.subr.mxu0 %v359
        %586 = vmatpush1.msra.mxu0 %v358
        %587 = vmatprep.subr.mxu0 0.0
        %588 = vmatpush2.msra.mxu0 0.0
        %589 = vmatprep.subr.mxu0 0.0
        %590 = vmatpush2.msra.mxu0 0.0
        %591 = vmatprep.subr.mxu0 0.0
        %592 = vmatpush2.msra.mxu0 0.0
        %593 = vmatprep.subr.mxu0 0.0
        %594 = vmatpush2.msra.mxu0 0.0
        %595 = vmatprep.subr.mxu0 0.0
        %596 = vmatpush2.msra.mxu0 0.0
        %597 = vmatprep.subr.mxu0 0.0
        %598 = vmatpush2.msra.mxu0 0.0
        %599 = vmatprep.subr.mxu0 0.0
        %600 = vmatpush2.msra.mxu0 0.0
        %601 = vmatprep.subr.mxu0 0.0
        %602 = vmatpush2.msra.mxu0 0.0
        %603 = vmatprep.subr.mxu0 0.0
        %604 = vmatpush2.msra.mxu0 0.0
        %605 = vmatprep.subr.mxu0 0.0
        %606 = vmatpush2.msra.mxu0 0.0
        %607 = vmatprep.subr.mxu0 0.0
        %608 = vmatpush2.msra.mxu0 0.0
        %609 = vmatprep.subr.mxu0 0.0
        %610 = vmatpush2.msra.mxu0 0.0
        %611 = vmatprep.subr.mxu0 0.0
        %612 = vmatpush2.msra.mxu0 0.0
        %613 = vmatprep.subr.mxu0 0.0
        %614 = vmatpush2.msra.mxu0 0.0
        %615 = vmatprep.subr.mxu0 0.0
        %616 = vmatpush2.msra.mxu0 0.0
        %617 = vmatprep.subr.mxu0 0.0
        %618 = vmatpush2.msra.mxu0 0.0
        %619 = vmatprep.mubr.f32.mxu0 0.0
        %620 = vmatmul.mubr.f32.gmra.mxu0 %v348
        %v621 = vpop.f32.mrf.mxu0
        %v622 = vadd.f32 %v433, %v621
        %v623 = vpop.f32.mrf.mxu0
        %v624 = vadd.f32 %v437, %v623
        %625 = vmatprep.mubr.f32.mxu0 0.0
        %626 = vmatmul.mubr.f32.gmra.mxu0 %v349
        %v627 = vpop.f32.mrf.mxu0
        %v628 = vadd.f32 %v433, %v627
        %v629 = vpop.f32.mrf.mxu0
        %v630 = vadd.f32 %v437, %v629
        %631 = vmatprep.mubr.f32.mxu0 0.0
        %632 = vmatmul.mubr.f32.gmra.mxu0 %v350
        %v633 = vpop.f32.mrf.mxu0
        %v634 = vadd.f32 %v433, %v633
        %v635 = vpop.f32.mrf.mxu0
        %v636 = vadd.f32 %v437, %v635
        %637 = vmatprep.mubr.f32.mxu0 0.0
        %638 = vmatmul.mubr.f32.gmra.mxu0 %v351
        %v639 = vpop.f32.mrf.mxu0
        %v640 = vadd.f32 %v433, %v639
        %v641 = vpop.f32.mrf.mxu0
        %v642 = vadd.f32 %v437, %v641
        %643 = vmatprep.mubr.f32.mxu0 0.0
        %644 = vmatmul.mubr.f32.gmra.mxu0 %v352
        %v645 = vpop.f32.mrf.mxu0
        %v646 = vadd.f32 %v433, %v645
        %v647 = vpop.f32.mrf.mxu0
        %v648 = vadd.f32 %v437, %v647
        %649 = vmatprep.mubr.f32.mxu0 0.0
        %650 = vmatmul.mubr.f32.gmra.mxu0 %v353
        %v651 = vpop.f32.mrf.mxu0
        %v652 = vadd.f32 %v433, %v651
        %v653 = vpop.f32.mrf.mxu0
        %v654 = vadd.f32 %v437, %v653
        %655 = vmatprep.mubr.f32.mxu0 0.0
        %656 = vmatmul.mubr.f32.gmra.mxu0 %v354
        %v657 = vpop.f32.mrf.mxu0
        %v658 = vadd.f32 %v433, %v657
        %v659 = vpop.f32.mrf.mxu0
        %v660 = vadd.f32 %v437, %v659
        %661 = vmatprep.mubr.f32.mxu0 0.0
        %662 = vmatmul.mubr.f32.gmra.mxu0 %v355
        %v663 = vpop.f32.mrf.mxu0
        %v664 = vadd.f32 %v433, %v663
        %v665 = vpop.f32.mrf.mxu0
        %v666 = vadd.f32 %v437, %v665
        %667 = vdwg.mxu0
        %668 = vst [vmem:[#allocation2] sm:$0xff] %v509
        %669 = vst [vmem:[#allocation2 + $0x8] sm:$0xff] %v511
        %670 = vst [vmem:[#allocation2 + $0x10] sm:$0xff] %v622
        %671 = vst [vmem:[#allocation2 + $0x18] sm:$0xff] %v624
        %672 = vst [vmem:[#allocation2 + $0x20] sm:$0xff] %v515
        %673 = vst [vmem:[#allocation2 + $0x28] sm:$0xff] %v517
        %674 = vst [vmem:[#allocation2 + $0x30] sm:$0xff] %v628
        %675 = vst [vmem:[#allocation2 + $0x38] sm:$0xff] %v630
        %676 = vst [vmem:[#allocation2 + $0x40] sm:$0xff] %v521
        %677 = vst [vmem:[#allocation2 + $0x48] sm:$0xff] %v523
        %678 = vst [vmem:[#allocation2 + $0x50] sm:$0xff] %v634
        %679 = vst [vmem:[#allocation2 + $0x58] sm:$0xff] %v636
        %680 = vst [vmem:[#allocation2 + $0x60] sm:$0xff] %v527
        %681 = vst [vmem:[#allocation2 + $0x68] sm:$0xff] %v529
        %682 = vst [vmem:[#allocation2 + $0x70] sm:$0xff] %v640
        %683 = vst [vmem:[#allocation2 + $0x78] sm:$0xff] %v642
        %684 = vst [vmem:[#allocation2 + $0x80] sm:$0xff] %v533
        %685 = vst [vmem:[#allocation2 + $0x88] sm:$0xff] %v535
        %686 = vst [vmem:[#allocation2 + $0x90] sm:$0xff] %v646
        %687 = vst [vmem:[#allocation2 + $0x98] sm:$0xff] %v648
        %688 = vst [vmem:[#allocation2 + $0xa0] sm:$0xff] %v539
        %689 = vst [vmem:[#allocation2 + $0xa8] sm:$0xff] %v541
        %690 = vst [vmem:[#allocation2 + $0xb0] sm:$0xff] %v652
        %691 = vst [vmem:[#allocation2 + $0xb8] sm:$0xff] %v654
        %692 = vst [vmem:[#allocation2 + $0xc0] sm:$0xff] %v545
        %693 = vst [vmem:[#allocation2 + $0xc8] sm:$0xff] %v547
        %694 = vst [vmem:[#allocation2 + $0xd0] sm:$0xff] %v658
        %695 = vst [vmem:[#allocation2 + $0xd8] sm:$0xff] %v660
        %696 = vst [vmem:[#allocation2 + $0xe0] sm:$0xff] %v551
        %697 = vst [vmem:[#allocation2 + $0xe8] sm:$0xff] %v553
        %698 = vst [vmem:[#allocation2 + $0xf0] sm:$0xff] %v664
        %699 = vst [vmem:[#allocation2 + $0xf8] sm:$0xff] %v666
        %v700 = vld [vmem:[%s275] sm:$0xff]
        %v701 = vld [vmem:[%s275 + $0x8] sm:$0xff]
        %v702 = vld [vmem:[%s275 + $0x10] sm:$0xff]
        %v703 = vld [vmem:[%s275 + $0x18] sm:$0xff]
        %v704 = vld [vmem:[%s275 + $0x20] sm:$0xff]
        %v705 = vld [vmem:[%s275 + $0x28] sm:$0xff]
        %v706 = vld [vmem:[%s275 + $0x30] sm:$0xff]
        %v707 = vld [vmem:[%s275 + $0x38] sm:$0xff]
        %v708 = vld [vmem:[%s275 + $0x40] sm:$0xff]
        %v709 = vld [vmem:[%s275 + $0x48] sm:$0xff]
        %v710 = vld [vmem:[%s275 + $0x50] sm:$0xff]
        %v711 = vld [vmem:[%s275 + $0x58] sm:$0xff]
        %v712 = vld [vmem:[%s275 + $0x60] sm:$0xff]
        %v713 = vld [vmem:[%s275 + $0x68] sm:$0xff]
        %v714 = vld [vmem:[%s275 + $0x70] sm:$0xff]
        %v715 = vld [vmem:[%s275 + $0x78] sm:$0xff]
        %v716 = vld [vmem:[%s275 + $0x80] sm:$0xff]
        %v717 = vld [vmem:[%s275 + $0x88] sm:$0xff]
        %v718 = vld [vmem:[%s275 + $0x90] sm:$0xff]
        %v719 = vld [vmem:[%s275 + $0x98] sm:$0xff]
        %v720 = vld [vmem:[%s275 + $0xa0] sm:$0xff]
        %v721 = vld [vmem:[%s275 + $0xa8] sm:$0xff]
        %v722 = vld [vmem:[%s275 + $0xb0] sm:$0xff]
        %v723 = vld [vmem:[%s275 + $0xb8] sm:$0xff]
        %v724 = vld [vmem:[%s275 + $0xc0] sm:$0xff]
        %v725 = vld [vmem:[%s275 + $0xc8] sm:$0xff]
        %v726 = vld [vmem:[%s275 + $0xd0] sm:$0xff]
        %v727 = vld [vmem:[%s275 + $0xd8] sm:$0xff]
        %v728 = vld [vmem:[%s275 + $0xe0] sm:$0xff]
        %v729 = vld [vmem:[%s275 + $0xe8] sm:$0xff]
        %v730 = vld [vmem:[%s275 + $0xf0] sm:$0xff]
        %v731 = vld [vmem:[%s275 + $0xf8] sm:$0xff]
        %v732 = vld [vmem:[%s275 + $0x100] sm:$0xff]
        %v733 = vld [vmem:[%s275 + $0x108] sm:$0xff]
        %v734 = vld [vmem:[%s275 + $0x110] sm:$0xff]
        %v735 = vld [vmem:[%s275 + $0x118] sm:$0xff]
        %v736 = vld [vmem:[%s275 + $0x120] sm:$0xff]
        %v737 = vld [vmem:[%s275 + $0x128] sm:$0xff]
        %v738 = vld [vmem:[%s275 + $0x130] sm:$0xff]
        %v739 = vld [vmem:[%s275 + $0x138] sm:$0xff]
        %v740 = vld [vmem:[%s275 + $0x140] sm:$0xff]
        %v741 = vld [vmem:[%s275 + $0x148] sm:$0xff]
        %v742 = vld [vmem:[%s275 + $0x150] sm:$0xff]
        %v743 = vld [vmem:[%s275 + $0x158] sm:$0xff]
        %v744 = vld [vmem:[%s275 + $0x160] sm:$0xff]
        %v745 = vld [vmem:[%s275 + $0x168] sm:$0xff]
        %v746 = vld [vmem:[%s275 + $0x170] sm:$0xff]
        %v747 = vld [vmem:[%s275 + $0x178] sm:$0xff]
        %v748 = vld [vmem:[%s275 + $0x180] sm:$0xff]
        %v749 = vld [vmem:[%s275 + $0x188] sm:$0xff]
        %v750 = vld [vmem:[%s275 + $0x190] sm:$0xff]
        %v751 = vld [vmem:[%s275 + $0x198] sm:$0xff]
        %v752 = vld [vmem:[%s275 + $0x1a0] sm:$0xff]
        %v753 = vld [vmem:[%s275 + $0x1a8] sm:$0xff]
        %v754 = vld [vmem:[%s275 + $0x1b0] sm:$0xff]
        %v755 = vld [vmem:[%s275 + $0x1b8] sm:$0xff]
        %v756 = vld [vmem:[%s275 + $0x1c0] sm:$0xff]
        %v757 = vld [vmem:[%s275 + $0x1c8] sm:$0xff]
        %v758 = vld [vmem:[%s275 + $0x1d0] sm:$0xff]
        %v759 = vld [vmem:[%s275 + $0x1d8] sm:$0xff]
        %v760 = vld [vmem:[%s275 + $0x1e0] sm:$0xff]
        %v761 = vld [vmem:[%s275 + $0x1e8] sm:$0xff]
        %v762 = vld [vmem:[%s275 + $0x1f0] sm:$0xff]
        %v763 = vld [vmem:[%s275 + $0x1f8] sm:$0xff]
        %s764 = smul.u32 %s25, 7
        %s765 = smul.u32 %s25, 2
        %s766 = ssub.s32 1, %s765
        %v767 = vld [vmem:[#allocation3] sm:$0xff]
        %v768 = vld [vmem:[#allocation4] sm:$0xff]
        %s769 = smul.u32 %s764, 4
        %s770 = smul.addr %s769, 8
        %s771 = scalar_lea.vmem [#allocation2], %s770
        %v772 = vld [vmem:[%s771] sm:$0xff]
        %v773 = vld [vmem:[%s771 + $0x8] sm:$0xff]
        %v774 = vld [vmem:[%s771 + $0x10] sm:$0xff]
        %v775 = vld [vmem:[%s771 + $0x18] sm:$0xff]
        %776 = vmatprep.subr.mxu0 %v761
        %777 = vmatpush1.msra.mxu0 %v760
        %778 = vmatprep.subr.mxu0 %v757
        %779 = vmatpush1.msra.mxu0 %v756
        %780 = vmatprep.subr.mxu0 %v753
        %781 = vmatpush1.msra.mxu0 %v752
        %782 = vmatprep.subr.mxu0 %v749
        %783 = vmatpush1.msra.mxu0 %v748
        %784 = vmatprep.subr.mxu0 %v745
        %785 = vmatpush1.msra.mxu0 %v744
        %786 = vmatprep.subr.mxu0 %v741
        %787 = vmatpush1.msra.mxu0 %v740
        %788 = vmatprep.subr.mxu0 %v737
        %789 = vmatpush1.msra.mxu0 %v736
        %790 = vmatprep.subr.mxu0 %v733
        %791 = vmatpush1.msra.mxu0 %v732
        %792 = vmatprep.subr.mxu0 %v729
        %793 = vmatpush1.msra.mxu0 %v728
        %794 = vmatprep.subr.mxu0 %v725
        %795 = vmatpush1.msra.mxu0 %v724
        %796 = vmatprep.subr.mxu0 %v721
        %797 = vmatpush1.msra.mxu0 %v720
        %798 = vmatprep.subr.mxu0 %v717
        %799 = vmatpush1.msra.mxu0 %v716
        %800 = vmatprep.subr.mxu0 %v713
        %801 = vmatpush1.msra.mxu0 %v712
        %802 = vmatprep.subr.mxu0 %v709
        %803 = vmatpush1.msra.mxu0 %v708
        %804 = vmatprep.subr.mxu0 %v705
        %805 = vmatpush1.msra.mxu0 %v704
        %806 = vmatprep.subr.mxu0 %v701
        %807 = vmatpush1.msra.mxu0 %v700
        %808 = vmatprep.subr.mxu0 0.0
        %809 = vmatpush2.msra.mxu0 0.0
        %810 = vmatprep.subr.mxu0 0.0
        %811 = vmatpush2.msra.mxu0 0.0
        %812 = vmatprep.subr.mxu0 0.0
        %813 = vmatpush2.msra.mxu0 0.0
        %814 = vmatprep.subr.mxu0 0.0
        %815 = vmatpush2.msra.mxu0 0.0
        %816 = vmatprep.subr.mxu0 0.0
        %817 = vmatpush2.msra.mxu0 0.0
        %818 = vmatprep.subr.mxu0 0.0
        %819 = vmatpush2.msra.mxu0 0.0
        %820 = vmatprep.subr.mxu0 0.0
        %821 = vmatpush2.msra.mxu0 0.0
        %822 = vmatprep.subr.mxu0 0.0
        %823 = vmatpush2.msra.mxu0 0.0
        %824 = vmatprep.subr.mxu0 0.0
        %825 = vmatpush2.msra.mxu0 0.0
        %826 = vmatprep.subr.mxu0 0.0
        %827 = vmatpush2.msra.mxu0 0.0
        %828 = vmatprep.subr.mxu0 0.0
        %829 = vmatpush2.msra.mxu0 0.0
        %830 = vmatprep.subr.mxu0 0.0
        %831 = vmatpush2.msra.mxu0 0.0
        %832 = vmatprep.subr.mxu0 0.0
        %833 = vmatpush2.msra.mxu0 0.0
        %834 = vmatprep.subr.mxu0 0.0
        %835 = vmatpush2.msra.mxu0 0.0
        %836 = vmatprep.subr.mxu0 0.0
        %837 = vmatpush2.msra.mxu0 0.0
        %838 = vmatprep.subr.mxu0 0.0
        %839 = vmatpush2.msra.mxu0 0.0
        %840 = vmatprep.mubr.f32.mxu0 0.0
        %841 = vmatmul.mubr.f32.gmra.mxu0 %v767
        %v842 = vpop.f32.mrf.mxu0
        %v843 = vadd.f32 0.0, %v842
        %v844 = vpop.f32.mrf.mxu0
        %v845 = vadd.f32 0.0, %v844
        %846 = vdwg.mxu0
        %847 = vmatprep.subr.mxu0 %v763
        %848 = vmatpush1.msra.mxu0 %v762
        %849 = vmatprep.subr.mxu0 %v759
        %850 = vmatpush1.msra.mxu0 %v758
        %851 = vmatprep.subr.mxu0 %v755
        %852 = vmatpush1.msra.mxu0 %v754
        %853 = vmatprep.subr.mxu0 %v751
        %854 = vmatpush1.msra.mxu0 %v750
        %855 = vmatprep.subr.mxu0 %v747
        %856 = vmatpush1.msra.mxu0 %v746
        %857 = vmatprep.subr.mxu0 %v743
        %858 = vmatpush1.msra.mxu0 %v742
        %859 = vmatprep.subr.mxu0 %v739
        %860 = vmatpush1.msra.mxu0 %v738
        %861 = vmatprep.subr.mxu0 %v735
        %862 = vmatpush1.msra.mxu0 %v734
        %863 = vmatprep.subr.mxu0 %v731
        %864 = vmatpush1.msra.mxu0 %v730
        %865 = vmatprep.subr.mxu0 %v727
        %866 = vmatpush1.msra.mxu0 %v726
        %867 = vmatprep.subr.mxu0 %v723
        %868 = vmatpush1.msra.mxu0 %v722
        %869 = vmatprep.subr.mxu0 %v719
        %870 = vmatpush1.msra.mxu0 %v718
        %871 = vmatprep.subr.mxu0 %v715
        %872 = vmatpush1.msra.mxu0 %v714
        %873 = vmatprep.subr.mxu0 %v711
        %874 = vmatpush1.msra.mxu0 %v710
        %875 = vmatprep.subr.mxu0 %v707
        %876 = vmatpush1.msra.mxu0 %v706
        %877 = vmatprep.subr.mxu0 %v703
        %878 = vmatpush1.msra.mxu0 %v702
        %879 = vmatprep.subr.mxu0 0.0
        %880 = vmatpush2.msra.mxu0 0.0
        %881 = vmatprep.subr.mxu0 0.0
        %882 = vmatpush2.msra.mxu0 0.0
        %883 = vmatprep.subr.mxu0 0.0
        %884 = vmatpush2.msra.mxu0 0.0
        %885 = vmatprep.subr.mxu0 0.0
        %886 = vmatpush2.msra.mxu0 0.0
        %887 = vmatprep.subr.mxu0 0.0
        %888 = vmatpush2.msra.mxu0 0.0
        %889 = vmatprep.subr.mxu0 0.0
        %890 = vmatpush2.msra.mxu0 0.0
        %891 = vmatprep.subr.mxu0 0.0
        %892 = vmatpush2.msra.mxu0 0.0
        %893 = vmatprep.subr.mxu0 0.0
        %894 = vmatpush2.msra.mxu0 0.0
        %895 = vmatprep.subr.mxu0 0.0
        %896 = vmatpush2.msra.mxu0 0.0
        %897 = vmatprep.subr.mxu0 0.0
        %898 = vmatpush2.msra.mxu0 0.0
        %899 = vmatprep.subr.mxu0 0.0
        %900 = vmatpush2.msra.mxu0 0.0
        %901 = vmatprep.subr.mxu0 0.0
        %902 = vmatpush2.msra.mxu0 0.0
        %903 = vmatprep.subr.mxu0 0.0
        %904 = vmatpush2.msra.mxu0 0.0
        %905 = vmatprep.subr.mxu0 0.0
        %906 = vmatpush2.msra.mxu0 0.0
        %907 = vmatprep.subr.mxu0 0.0
        %908 = vmatpush2.msra.mxu0 0.0
        %909 = vmatprep.subr.mxu0 0.0
        %910 = vmatpush2.msra.mxu0 0.0
        %911 = vmatprep.mubr.f32.mxu0 0.0
        %912 = vmatmul.mubr.f32.gmra.mxu0 %v767
        %v913 = vpop.f32.mrf.mxu0
        %v914 = vadd.f32 0.0, %v913
        %v915 = vpop.f32.mrf.mxu0
        %v916 = vadd.f32 0.0, %v915
        %917 = vdwg.mxu0
        %v918 = vadd.f32 %v772, %v843
        %v919 = vadd.f32 %v773, %v845
        %v920 = vadd.f32 %v774, %v914
        %v921 = vadd.f32 %v775, %v916
        %v922 = vmul.f32 %v918, 0.5
        %v923 = vtanh.pop %v922
        %v924 = vmul.f32 %v923, 0.5
        %v925 = vadd.f32 %v924, 0.5
        %v926 = vmul.f32 %v919, 0.5
        %v927 = vtanh.pop %v926
        %v928 = vmul.f32 %v927, 0.5
        %v929 = vadd.f32 %v928, 0.5
        %v930 = vtanh.pop %v920
        %v931 = vmul.f32 %v921, 0.5
        %v932 = vtanh.pop %v931
        %v933 = vmul.f32 %v932, 0.5
        %v934 = vadd.f32 %v933, 0.5
        %v935 = vmul.f32 %v929, %v768
        %v936 = vmul.f32 %v925, %v930
        %v937 = vadd.f32 %v935, %v936
        %v938 = vtanh.pop %v937
        %v939 = vmul.f32 %v934, %v938
        %s940 = sadd.s32 %s764, %s766
        %s941 = smul.u32 %s940, 4
        %s942 = smul.addr %s941, 8
        %s943 = scalar_lea.vmem [#allocation2], %s942
        %v944 = vld [vmem:[%s943] sm:$0xff]
        %v945 = vld [vmem:[%s943 + $0x8] sm:$0xff]
        %v946 = vld [vmem:[%s943 + $0x10] sm:$0xff]
        %v947 = vld [vmem:[%s943 + $0x18] sm:$0xff]
        %948 = vmatprep.subr.mxu0 %v761
        %949 = vmatpush1.msra.mxu0 %v760
        %950 = vmatprep.subr.mxu0 %v757
        %951 = vmatpush1.msra.mxu0 %v756
        %952 = vmatprep.subr.mxu0 %v753
        %953 = vmatpush1.msra.mxu0 %v752
        %954 = vmatprep.subr.mxu0 %v749
        %955 = vmatpush1.msra.mxu0 %v748
        %956 = vmatprep.subr.mxu0 %v745
        %957 = vmatpush1.msra.mxu0 %v744
        %958 = vmatprep.subr.mxu0 %v741
        %959 = vmatpush1.msra.mxu0 %v740
        %960 = vmatprep.subr.mxu0 %v737
        %961 = vmatpush1.msra.mxu0 %v736
        %962 = vmatprep.subr.mxu0 %v733
        %963 = vmatpush1.msra.mxu0 %v732
        %964 = vmatprep.subr.mxu0 %v729
        %965 = vmatpush1.msra.mxu0 %v728
        %966 = vmatprep.subr.mxu0 %v725
        %967 = vmatpush1.msra.mxu0 %v724
        %968 = vmatprep.subr.mxu0 %v721
        %969 = vmatpush1.msra.mxu0 %v720
        %970 = vmatprep.subr.mxu0 %v717
        %971 = vmatpush1.msra.mxu0 %v716
        %972 = vmatprep.subr.mxu0 %v713
        %973 = vmatpush1.msra.mxu0 %v712
        %974 = vmatprep.subr.mxu0 %v709
        %975 = vmatpush1.msra.mxu0 %v708
        %976 = vmatprep.subr.mxu0 %v705
        %977 = vmatpush1.msra.mxu0 %v704
        %978 = vmatprep.subr.mxu0 %v701
        %979 = vmatpush1.msra.mxu0 %v700
        %980 = vmatprep.subr.mxu0 0.0
        %981 = vmatpush2.msra.mxu0 0.0
        %982 = vmatprep.subr.mxu0 0.0
        %983 = vmatpush2.msra.mxu0 0.0
        %984 = vmatprep.subr.mxu0 0.0
        %985 = vmatpush2.msra.mxu0 0.0
        %986 = vmatprep.subr.mxu0 0.0
        %987 = vmatpush2.msra.mxu0 0.0
        %988 = vmatprep.subr.mxu0 0.0
        %989 = vmatpush2.msra.mxu0 0.0
        %990 = vmatprep.subr.mxu0 0.0
        %991 = vmatpush2.msra.mxu0 0.0
        %992 = vmatprep.subr.mxu0 0.0
        %993 = vmatpush2.msra.mxu0 0.0
        %994 = vmatprep.subr.mxu0 0.0
        %995 = vmatpush2.msra.mxu0 0.0
        %996 = vmatprep.subr.mxu0 0.0
        %997 = vmatpush2.msra.mxu0 0.0
        %998 = vmatprep.subr.mxu0 0.0
        %999 = vmatpush2.msra.mxu0 0.0
        %1000 = vmatprep.subr.mxu0 0.0
        %1001 = vmatpush2.msra.mxu0 0.0
        %1002 = vmatprep.subr.mxu0 0.0
        %1003 = vmatpush2.msra.mxu0 0.0
        %1004 = vmatprep.subr.mxu0 0.0
        %1005 = vmatpush2.msra.mxu0 0.0
        %1006 = vmatprep.subr.mxu0 0.0
        %1007 = vmatpush2.msra.mxu0 0.0
        %1008 = vmatprep.subr.mxu0 0.0
        %1009 = vmatpush2.msra.mxu0 0.0
        %1010 = vmatprep.subr.mxu0 0.0
        %1011 = vmatpush2.msra.mxu0 0.0
        %1012 = vmatprep.mubr.f32.mxu0 0.0
        %1013 = vmatmul.mubr.f32.gmra.mxu0 %v939
        %v1014 = vpop.f32.mrf.mxu0
        %v1015 = vadd.f32 0.0, %v1014
        %v1016 = vpop.f32.mrf.mxu0
        %v1017 = vadd.f32 0.0, %v1016
        %1018 = vdwg.mxu0
        %1019 = vmatprep.subr.mxu0 %v763
        %1020 = vmatpush1.msra.mxu0 %v762
        %1021 = vmatprep.subr.mxu0 %v759
        %1022 = vmatpush1.msra.mxu0 %v758
        %1023 = vmatprep.subr.mxu0 %v755
        %1024 = vmatpush1.msra.mxu0 %v754
        %1025 = vmatprep.subr.mxu0 %v751
        %1026 = vmatpush1.msra.mxu0 %v750
        %1027 = vmatprep.subr.mxu0 %v747
        %1028 = vmatpush1.msra.mxu0 %v746
        %1029 = vmatprep.subr.mxu0 %v743
        %1030 = vmatpush1.msra.mxu0 %v742
        %1031 = vmatprep.subr.mxu0 %v739
        %1032 = vmatpush1.msra.mxu0 %v738
        %1033 = vmatprep.subr.mxu0 %v735
        %1034 = vmatpush1.msra.mxu0 %v734
        %1035 = vmatprep.subr.mxu0 %v731
        %1036 = vmatpush1.msra.mxu0 %v730
        %1037 = vmatprep.subr.mxu0 %v727
        %1038 = vmatpush1.msra.mxu0 %v726
        %1039 = vmatprep.subr.mxu0 %v723
        %1040 = vmatpush1.msra.mxu0 %v722
        %1041 = vmatprep.subr.mxu0 %v719
        %1042 = vmatpush1.msra.mxu0 %v718
        %1043 = vmatprep.subr.mxu0 %v715
        %1044 = vmatpush1.msra.mxu0 %v714
        %1045 = vmatprep.subr.mxu0 %v711
        %1046 = vmatpush1.msra.mxu0 %v710
        %1047 = vmatprep.subr.mxu0 %v707
        %1048 = vmatpush1.msra.mxu0 %v706
        %1049 = vmatprep.subr.mxu0 %v703
        %1050 = vmatpush1.msra.mxu0 %v702
        %1051 = vmatprep.subr.mxu0 0.0
        %1052 = vmatpush2.msra.mxu0 0.0
        %1053 = vmatprep.subr.mxu0 0.0
        %1054 = vmatpush2.msra.mxu0 0.0
        %1055 = vmatprep.subr.mxu0 0.0
        %1056 = vmatpush2.msra.mxu0 0.0
        %1057 = vmatprep.subr.mxu0 0.0
        %1058 = vmatpush2.msra.mxu0 0.0
        %1059 = vmatprep.subr.mxu0 0.0
        %1060 = vmatpush2.msra.mxu0 0.0
        %1061 = vmatprep.subr.mxu0 0.0
        %1062 = vmatpush2.msra.mxu0 0.0
        %1063 = vmatprep.subr.mxu0 0.0
        %1064 = vmatpush2.msra.mxu0 0.0
        %1065 = vmatprep.subr.mxu0 0.0
        %1066 = vmatpush2.msra.mxu0 0.0
        %1067 = vmatprep.subr.mxu0 0.0
        %1068 = vmatpush2.msra.mxu0 0.0
        %1069 = vmatprep.subr.mxu0 0.0
        %1070 = vmatpush2.msra.mxu0 0.0
        %1071 = vmatprep.subr.mxu0 0.0
        %1072 = vmatpush2.msra.mxu0 0.0
        %1073 = vmatprep.subr.mxu0 0.0
        %1074 = vmatpush2.msra.mxu0 0.0
        %1075 = vmatprep.subr.mxu0 0.0
        %1076 = vmatpush2.msra.mxu0 0.0
        %1077 = vmatprep.subr.mxu0 0.0
        %1078 = vmatpush2.msra.mxu0 0.0
        %1079 = vmatprep.subr.mxu0 0.0
        %1080 = vmatpush2.msra.mxu0 0.0
        %1081 = vmatprep.subr.mxu0 0.0
        %1082 = vmatpush2.msra.mxu0 0.0
        %1083 = vmatprep.mubr.f32.mxu0 0.0
        %1084 = vmatmul.mubr.f32.gmra.mxu0 %v939
        %v1085 = vpop.f32.mrf.mxu0
        %v1086 = vadd.f32 0.0, %v1085
        %v1087 = vpop.f32.mrf.mxu0
        %v1088 = vadd.f32 0.0, %v1087
        %1089 = vdwg.mxu0
        %v1090 = vadd.f32 %v944, %v1015
        %v1091 = vadd.f32 %v945, %v1017
        %v1092 = vadd.f32 %v946, %v1086
        %v1093 = vadd.f32 %v947, %v1088
        %v1094 = vmul.f32 %v1090, 0.5
        %v1095 = vtanh.pop %v1094
        %v1096 = vmul.f32 %v1095, 0.5
        %v1097 = vadd.f32 %v1096, 0.5
        %v1098 = vmul.f32 %v1091, 0.5
        %v1099 = vtanh.pop %v1098
        %v1100 = vmul.f32 %v1099, 0.5
        %v1101 = vadd.f32 %v1100, 0.5
        %v1102 = vtanh.pop %v1092
        %v1103 = vmul.f32 %v1093, 0.5
        %v1104 = vtanh.pop %v1103
        %v1105 = vmul.f32 %v1104, 0.5
        %v1106 = vadd.f32 %v1105, 0.5
        %v1107 = vmul.f32 %v1101, %v937
        %v1108 = vmul.f32 %v1097, %v1102
        %v1109 = vadd.f32 %v1107, %v1108
        %v1110 = vtanh.pop %v1109
        %v1111 = vmul.f32 %v1106, %v1110
        %s1112 = smul.u32 %s766, 2
        %s1113 = sadd.s32 %s764, %s1112
        %s1114 = smul.u32 %s1113, 4
        %s1115 = smul.addr %s1114, 8
        %s1116 = scalar_lea.vmem [#allocation2], %s1115
        %v1117 = vld [vmem:[%s1116] sm:$0xff]
        %v1118 = vld [vmem:[%s1116 + $0x8] sm:$0xff]
        %v1119 = vld [vmem:[%s1116 + $0x10] sm:$0xff]
        %v1120 = vld [vmem:[%s1116 + $0x18] sm:$0xff]
        %1121 = vmatprep.subr.mxu0 %v761
        %1122 = vmatpush1.msra.mxu0 %v760
        %1123 = vmatprep.subr.mxu0 %v757
        %1124 = vmatpush1.msra.mxu0 %v756
        %1125 = vmatprep.subr.mxu0 %v753
        %1126 = vmatpush1.msra.mxu0 %v752
        %1127 = vmatprep.subr.mxu0 %v749
        %1128 = vmatpush1.msra.mxu0 %v748
        %1129 = vmatprep.subr.mxu0 %v745
        %1130 = vmatpush1.msra.mxu0 %v744
        %1131 = vmatprep.subr.mxu0 %v741
        %1132 = vmatpush1.msra.mxu0 %v740
        %1133 = vmatprep.subr.mxu0 %v737
        %1134 = vmatpush1.msra.mxu0 %v736
        %1135 = vmatprep.subr.mxu0 %v733
        %1136 = vmatpush1.msra.mxu0 %v732
        %1137 = vmatprep.subr.mxu0 %v729
        %1138 = vmatpush1.msra.mxu0 %v728
        %1139 = vmatprep.subr.mxu0 %v725
        %1140 = vmatpush1.msra.mxu0 %v724
        %1141 = vmatprep.subr.mxu0 %v721
        %1142 = vmatpush1.msra.mxu0 %v720
        %1143 = vmatprep.subr.mxu0 %v717
        %1144 = vmatpush1.msra.mxu0 %v716
        %1145 = vmatprep.subr.mxu0 %v713
        %1146 = vmatpush1.msra.mxu0 %v712
        %1147 = vmatprep.subr.mxu0 %v709
        %1148 = vmatpush1.msra.mxu0 %v708
        %1149 = vmatprep.subr.mxu0 %v705
        %1150 = vmatpush1.msra.mxu0 %v704
        %1151 = vmatprep.subr.mxu0 %v701
        %1152 = vmatpush1.msra.mxu0 %v700
        %1153 = vmatprep.subr.mxu0 0.0
        %1154 = vmatpush2.msra.mxu0 0.0
        %1155 = vmatprep.subr.mxu0 0.0
        %1156 = vmatpush2.msra.mxu0 0.0
        %1157 = vmatprep.subr.mxu0 0.0
        %1158 = vmatpush2.msra.mxu0 0.0
        %1159 = vmatprep.subr.mxu0 0.0
        %1160 = vmatpush2.msra.mxu0 0.0
        %1161 = vmatprep.subr.mxu0 0.0
        %1162 = vmatpush2.msra.mxu0 0.0
        %1163 = vmatprep.subr.mxu0 0.0
        %1164 = vmatpush2.msra.mxu0 0.0
        %1165 = vmatprep.subr.mxu0 0.0
        %1166 = vmatpush2.msra.mxu0 0.0
        %1167 = vmatprep.subr.mxu0 0.0
        %1168 = vmatpush2.msra.mxu0 0.0
        %1169 = vmatprep.subr.mxu0 0.0
        %1170 = vmatpush2.msra.mxu0 0.0
        %1171 = vmatprep.subr.mxu0 0.0
        %1172 = vmatpush2.msra.mxu0 0.0
        %1173 = vmatprep.subr.mxu0 0.0
        %1174 = vmatpush2.msra.mxu0 0.0
        %1175 = vmatprep.subr.mxu0 0.0
        %1176 = vmatpush2.msra.mxu0 0.0
        %1177 = vmatprep.subr.mxu0 0.0
        %1178 = vmatpush2.msra.mxu0 0.0
        %1179 = vmatprep.subr.mxu0 0.0
        %1180 = vmatpush2.msra.mxu0 0.0
        %1181 = vmatprep.subr.mxu0 0.0
        %1182 = vmatpush2.msra.mxu0 0.0
        %1183 = vmatprep.subr.mxu0 0.0
        %1184 = vmatpush2.msra.mxu0 0.0
        %1185 = vmatprep.mubr.f32.mxu0 0.0
        %1186 = vmatmul.mubr.f32.gmra.mxu0 %v1111
        %v1187 = vpop.f32.mrf.mxu0
        %v1188 = vadd.f32 0.0, %v1187
        %v1189 = vpop.f32.mrf.mxu0
        %v1190 = vadd.f32 0.0, %v1189
        %1191 = vdwg.mxu0
        %1192 = vmatprep.subr.mxu0 %v763
        %1193 = vmatpush1.msra.mxu0 %v762
        %1194 = vmatprep.subr.mxu0 %v759
        %1195 = vmatpush1.msra.mxu0 %v758
        %1196 = vmatprep.subr.mxu0 %v755
        %1197 = vmatpush1.msra.mxu0 %v754
        %1198 = vmatprep.subr.mxu0 %v751
        %1199 = vmatpush1.msra.mxu0 %v750
        %1200 = vmatprep.subr.mxu0 %v747
        %1201 = vmatpush1.msra.mxu0 %v746
        %1202 = vmatprep.subr.mxu0 %v743
        %1203 = vmatpush1.msra.mxu0 %v742
        %1204 = vmatprep.subr.mxu0 %v739
        %1205 = vmatpush1.msra.mxu0 %v738
        %1206 = vmatprep.subr.mxu0 %v735
        %1207 = vmatpush1.msra.mxu0 %v734
        %1208 = vmatprep.subr.mxu0 %v731
        %1209 = vmatpush1.msra.mxu0 %v730
        %1210 = vmatprep.subr.mxu0 %v727
        %1211 = vmatpush1.msra.mxu0 %v726
        %1212 = vmatprep.subr.mxu0 %v723
        %1213 = vmatpush1.msra.mxu0 %v722
        %1214 = vmatprep.subr.mxu0 %v719
        %1215 = vmatpush1.msra.mxu0 %v718
        %1216 = vmatprep.subr.mxu0 %v715
        %1217 = vmatpush1.msra.mxu0 %v714
        %1218 = vmatprep.subr.mxu0 %v711
        %1219 = vmatpush1.msra.mxu0 %v710
        %1220 = vmatprep.subr.mxu0 %v707
        %1221 = vmatpush1.msra.mxu0 %v706
        %1222 = vmatprep.subr.mxu0 %v703
        %1223 = vmatpush1.msra.mxu0 %v702
        %1224 = vmatprep.subr.mxu0 0.0
        %1225 = vmatpush2.msra.mxu0 0.0
        %1226 = vmatprep.subr.mxu0 0.0
        %1227 = vmatpush2.msra.mxu0 0.0
        %1228 = vmatprep.subr.mxu0 0.0
        %1229 = vmatpush2.msra.mxu0 0.0
        %1230 = vmatprep.subr.mxu0 0.0
        %1231 = vmatpush2.msra.mxu0 0.0
        %1232 = vmatprep.subr.mxu0 0.0
        %1233 = vmatpush2.msra.mxu0 0.0
        %1234 = vmatprep.subr.mxu0 0.0
        %1235 = vmatpush2.msra.mxu0 0.0
        %1236 = vmatprep.subr.mxu0 0.0
        %1237 = vmatpush2.msra.mxu0 0.0
        %1238 = vmatprep.subr.mxu0 0.0
        %1239 = vmatpush2.msra.mxu0 0.0
        %1240 = vmatprep.subr.mxu0 0.0
        %1241 = vmatpush2.msra.mxu0 0.0
        %1242 = vmatprep.subr.mxu0 0.0
        %1243 = vmatpush2.msra.mxu0 0.0
        %1244 = vmatprep.subr.mxu0 0.0
        %1245 = vmatpush2.msra.mxu0 0.0
        %1246 = vmatprep.subr.mxu0 0.0
        %1247 = vmatpush2.msra.mxu0 0.0
        %1248 = vmatprep.subr.mxu0 0.0
        %1249 = vmatpush2.msra.mxu0 0.0
        %1250 = vmatprep.subr.mxu0 0.0
        %1251 = vmatpush2.msra.mxu0 0.0
        %1252 = vmatprep.subr.mxu0 0.0
        %1253 = vmatpush2.msra.mxu0 0.0
        %1254 = vmatprep.subr.mxu0 0.0
        %1255 = vmatpush2.msra.mxu0 0.0
        %1256 = vmatprep.mubr.f32.mxu0 0.0
        %1257 = vmatmul.mubr.f32.gmra.mxu0 %v1111
        %v1258 = vpop.f32.mrf.mxu0
        %v1259 = vadd.f32 0.0, %v1258
        %v1260 = vpop.f32.mrf.mxu0
        %v1261 = vadd.f32 0.0, %v1260
        %1262 = vdwg.mxu0
        %v1263 = vadd.f32 %v1117, %v1188
        %v1264 = vadd.f32 %v1118, %v1190
        %v1265 = vadd.f32 %v1119, %v1259
        %v1266 = vadd.f32 %v1120, %v1261
        %v1267 = vmul.f32 %v1263, 0.5
        %v1268 = vtanh.pop %v1267
        %v1269 = vmul.f32 %v1268, 0.5
        %v1270 = vadd.f32 %v1269, 0.5
        %v1271 = vmul.f32 %v1264, 0.5
        %v1272 = vtanh.pop %v1271
        %v1273 = vmul.f32 %v1272, 0.5
        %v1274 = vadd.f32 %v1273, 0.5
        %v1275 = vtanh.pop %v1265
        %v1276 = vmul.f32 %v1266, 0.5
        %v1277 = vtanh.pop %v1276
        %v1278 = vmul.f32 %v1277, 0.5
        %v1279 = vadd.f32 %v1278, 0.5
        %v1280 = vmul.f32 %v1274, %v1109
        %v1281 = vmul.f32 %v1270, %v1275
        %v1282 = vadd.f32 %v1280, %v1281
        %v1283 = vtanh.pop %v1282
        %v1284 = vmul.f32 %v1279, %v1283
        %s1285 = smul.u32 %s766, 3
        %s1286 = sadd.s32 %s764, %s1285
        %s1287 = smul.u32 %s1286, 4
        %s1288 = smul.addr %s1287, 8
        %s1289 = scalar_lea.vmem [#allocation2], %s1288
        %v1290 = vld [vmem:[%s1289] sm:$0xff]
        %v1291 = vld [vmem:[%s1289 + $0x8] sm:$0xff]
        %v1292 = vld [vmem:[%s1289 + $0x10] sm:$0xff]
        %v1293 = vld [vmem:[%s1289 + $0x18] sm:$0xff]
        %1294 = vmatprep.subr.mxu0 %v761
        %1295 = vmatpush1.msra.mxu0 %v760
        %1296 = vmatprep.subr.mxu0 %v757
        %1297 = vmatpush1.msra.mxu0 %v756
        %1298 = vmatprep.subr.mxu0 %v753
        %1299 = vmatpush1.msra.mxu0 %v752
        %1300 = vmatprep.subr.mxu0 %v749
        %1301 = vmatpush1.msra.mxu0 %v748
        %1302 = vmatprep.subr.mxu0 %v745
        %1303 = vmatpush1.msra.mxu0 %v744
        %1304 = vmatprep.subr.mxu0 %v741
        %1305 = vmatpush1.msra.mxu0 %v740
        %1306 = vmatprep.subr.mxu0 %v737
        %1307 = vmatpush1.msra.mxu0 %v736
        %1308 = vmatprep.subr.mxu0 %v733
        %1309 = vmatpush1.msra.mxu0 %v732
        %1310 = vmatprep.subr.mxu0 %v729
        %1311 = vmatpush1.msra.mxu0 %v728
        %1312 = vmatprep.subr.mxu0 %v725
        %1313 = vmatpush1.msra.mxu0 %v724
        %1314 = vmatprep.subr.mxu0 %v721
        %1315 = vmatpush1.msra.mxu0 %v720
        %1316 = vmatprep.subr.mxu0 %v717
        %1317 = vmatpush1.msra.mxu0 %v716
        %1318 = vmatprep.subr.mxu0 %v713
        %1319 = vmatpush1.msra.mxu0 %v712
        %1320 = vmatprep.subr.mxu0 %v709
        %1321 = vmatpush1.msra.mxu0 %v708
        %1322 = vmatprep.subr.mxu0 %v705
        %1323 = vmatpush1.msra.mxu0 %v704
        %1324 = vmatprep.subr.mxu0 %v701
        %1325 = vmatpush1.msra.mxu0 %v700
        %1326 = vmatprep.subr.mxu0 0.0
        %1327 = vmatpush2.msra.mxu0 0.0
        %1328 = vmatprep.subr.mxu0 0.0
        %1329 = vmatpush2.msra.mxu0 0.0
        %1330 = vmatprep.subr.mxu0 0.0
        %1331 = vmatpush2.msra.mxu0 0.0
        %1332 = vmatprep.subr.mxu0 0.0
        %1333 = vmatpush2.msra.mxu0 0.0
        %1334 = vmatprep.subr.mxu0 0.0
        %1335 = vmatpush2.msra.mxu0 0.0
        %1336 = vmatprep.subr.mxu0 0.0
        %1337 = vmatpush2.msra.mxu0 0.0
        %1338 = vmatprep.subr.mxu0 0.0
        %1339 = vmatpush2.msra.mxu0 0.0
        %1340 = vmatprep.subr.mxu0 0.0
        %1341 = vmatpush2.msra.mxu0 0.0
        %1342 = vmatprep.subr.mxu0 0.0
        %1343 = vmatpush2.msra.mxu0 0.0
        %1344 = vmatprep.subr.mxu0 0.0
        %1345 = vmatpush2.msra.mxu0 0.0
        %1346 = vmatprep.subr.mxu0 0.0
        %1347 = vmatpush2.msra.mxu0 0.0
        %1348 = vmatprep.subr.mxu0 0.0
        %1349 = vmatpush2.msra.mxu0 0.0
        %1350 = vmatprep.subr.mxu0 0.0
        %1351 = vmatpush2.msra.mxu0 0.0
        %1352 = vmatprep.subr.mxu0 0.0
        %1353 = vmatpush2.msra.mxu0 0.0
        %1354 = vmatprep.subr.mxu0 0.0
        %1355 = vmatpush2.msra.mxu0 0.0
        %1356 = vmatprep.subr.mxu0 0.0
        %1357 = vmatpush2.msra.mxu0 0.0
        %1358 = vmatprep.mubr.f32.mxu0 0.0
        %1359 = vmatmul.mubr.f32.gmra.mxu0 %v1284
        %v1360 = vpop.f32.mrf.mxu0
        %v1361 = vadd.f32 0.0, %v1360
        %v1362 = vpop.f32.mrf.mxu0
        %v1363 = vadd.f32 0.0, %v1362
        %1364 = vdwg.mxu0
        %1365 = vmatprep.subr.mxu0 %v763
        %1366 = vmatpush1.msra.mxu0 %v762
        %1367 = vmatprep.subr.mxu0 %v759
        %1368 = vmatpush1.msra.mxu0 %v758
        %1369 = vmatprep.subr.mxu0 %v755
        %1370 = vmatpush1.msra.mxu0 %v754
        %1371 = vmatprep.subr.mxu0 %v751
        %1372 = vmatpush1.msra.mxu0 %v750
        %1373 = vmatprep.subr.mxu0 %v747
        %1374 = vmatpush1.msra.mxu0 %v746
        %1375 = vmatprep.subr.mxu0 %v743
        %1376 = vmatpush1.msra.mxu0 %v742
        %1377 = vmatprep.subr.mxu0 %v739
        %1378 = vmatpush1.msra.mxu0 %v738
        %1379 = vmatprep.subr.mxu0 %v735
        %1380 = vmatpush1.msra.mxu0 %v734
        %1381 = vmatprep.subr.mxu0 %v731
        %1382 = vmatpush1.msra.mxu0 %v730
        %1383 = vmatprep.subr.mxu0 %v727
        %1384 = vmatpush1.msra.mxu0 %v726
        %1385 = vmatprep.subr.mxu0 %v723
        %1386 = vmatpush1.msra.mxu0 %v722
        %1387 = vmatprep.subr.mxu0 %v719
        %1388 = vmatpush1.msra.mxu0 %v718
        %1389 = vmatprep.subr.mxu0 %v715
        %1390 = vmatpush1.msra.mxu0 %v714
        %1391 = vmatprep.subr.mxu0 %v711
        %1392 = vmatpush1.msra.mxu0 %v710
        %1393 = vmatprep.subr.mxu0 %v707
        %1394 = vmatpush1.msra.mxu0 %v706
        %1395 = vmatprep.subr.mxu0 %v703
        %1396 = vmatpush1.msra.mxu0 %v702
        %1397 = vmatprep.subr.mxu0 0.0
        %1398 = vmatpush2.msra.mxu0 0.0
        %1399 = vmatprep.subr.mxu0 0.0
        %1400 = vmatpush2.msra.mxu0 0.0
        %1401 = vmatprep.subr.mxu0 0.0
        %1402 = vmatpush2.msra.mxu0 0.0
        %1403 = vmatprep.subr.mxu0 0.0
        %1404 = vmatpush2.msra.mxu0 0.0
        %1405 = vmatprep.subr.mxu0 0.0
        %1406 = vmatpush2.msra.mxu0 0.0
        %1407 = vmatprep.subr.mxu0 0.0
        %1408 = vmatpush2.msra.mxu0 0.0
        %1409 = vmatprep.subr.mxu0 0.0
        %1410 = vmatpush2.msra.mxu0 0.0
        %1411 = vmatprep.subr.mxu0 0.0
        %1412 = vmatpush2.msra.mxu0 0.0
        %1413 = vmatprep.subr.mxu0 0.0
        %1414 = vmatpush2.msra.mxu0 0.0
        %1415 = vmatprep.subr.mxu0 0.0
        %1416 = vmatpush2.msra.mxu0 0.0
        %1417 = vmatprep.subr.mxu0 0.0
        %1418 = vmatpush2.msra.mxu0 0.0
        %1419 = vmatprep.subr.mxu0 0.0
        %1420 = vmatpush2.msra.mxu0 0.0
        %1421 = vmatprep.subr.mxu0 0.0
        %1422 = vmatpush2.msra.mxu0 0.0
        %1423 = vmatprep.subr.mxu0 0.0
        %1424 = vmatpush2.msra.mxu0 0.0
        %1425 = vmatprep.subr.mxu0 0.0
        %1426 = vmatpush2.msra.mxu0 0.0
        %1427 = vmatprep.subr.mxu0 0.0
        %1428 = vmatpush2.msra.mxu0 0.0
        %1429 = vmatprep.mubr.f32.mxu0 0.0
        %1430 = vmatmul.mubr.f32.gmra.mxu0 %v1284
        %v1431 = vpop.f32.mrf.mxu0
        %v1432 = vadd.f32 0.0, %v1431
        %v1433 = vpop.f32.mrf.mxu0
        %v1434 = vadd.f32 0.0, %v1433
        %1435 = vdwg.mxu0
        %v1436 = vadd.f32 %v1290, %v1361
        %v1437 = vadd.f32 %v1291, %v1363
        %v1438 = vadd.f32 %v1292, %v1432
        %v1439 = vadd.f32 %v1293, %v1434
        %v1440 = vmul.f32 %v1436, 0.5
        %v1441 = vtanh.pop %v1440
        %v1442 = vmul.f32 %v1441, 0.5
        %v1443 = vadd.f32 %v1442, 0.5
        %v1444 = vmul.f32 %v1437, 0.5
        %v1445 = vtanh.pop %v1444
        %v1446 = vmul.f32 %v1445, 0.5
        %v1447 = vadd.f32 %v1446, 0.5
        %v1448 = vtanh.pop %v1438
        %v1449 = vmul.f32 %v1439, 0.5
        %v1450 = vtanh.pop %v1449
        %v1451 = vmul.f32 %v1450, 0.5
        %v1452 = vadd.f32 %v1451, 0.5
        %v1453 = vmul.f32 %v1447, %v1282
        %v1454 = vmul.f32 %v1443, %v1448
        %v1455 = vadd.f32 %v1453, %v1454
        %v1456 = vtanh.pop %v1455
        %v1457 = vmul.f32 %v1452, %v1456
        %s1458 = smul.u32 %s766, 4
        %s1459 = sadd.s32 %s764, %s1458
        %s1460 = smul.u32 %s1459, 4
        %s1461 = smul.addr %s1460, 8
        %s1462 = scalar_lea.vmem [#allocation2], %s1461
        %v1463 = vld [vmem:[%s1462] sm:$0xff]
        %v1464 = vld [vmem:[%s1462 + $0x8] sm:$0xff]
        %v1465 = vld [vmem:[%s1462 + $0x10] sm:$0xff]
        %v1466 = vld [vmem:[%s1462 + $0x18] sm:$0xff]
        %1467 = vmatprep.subr.mxu0 %v761
        %1468 = vmatpush1.msra.mxu0 %v760
        %1469 = vmatprep.subr.mxu0 %v757
        %1470 = vmatpush1.msra.mxu0 %v756
        %1471 = vmatprep.subr.mxu0 %v753
        %1472 = vmatpush1.msra.mxu0 %v752
        %1473 = vmatprep.subr.mxu0 %v749
        %1474 = vmatpush1.msra.mxu0 %v748
        %1475 = vmatprep.subr.mxu0 %v745
        %1476 = vmatpush1.msra.mxu0 %v744
        %1477 = vmatprep.subr.mxu0 %v741
        %1478 = vmatpush1.msra.mxu0 %v740
        %1479 = vmatprep.subr.mxu0 %v737
        %1480 = vmatpush1.msra.mxu0 %v736
        %1481 = vmatprep.subr.mxu0 %v733
        %1482 = vmatpush1.msra.mxu0 %v732
        %1483 = vmatprep.subr.mxu0 %v729
        %1484 = vmatpush1.msra.mxu0 %v728
        %1485 = vmatprep.subr.mxu0 %v725
        %1486 = vmatpush1.msra.mxu0 %v724
        %1487 = vmatprep.subr.mxu0 %v721
        %1488 = vmatpush1.msra.mxu0 %v720
        %1489 = vmatprep.subr.mxu0 %v717
        %1490 = vmatpush1.msra.mxu0 %v716
        %1491 = vmatprep.subr.mxu0 %v713
        %1492 = vmatpush1.msra.mxu0 %v712
        %1493 = vmatprep.subr.mxu0 %v709
        %1494 = vmatpush1.msra.mxu0 %v708
        %1495 = vmatprep.subr.mxu0 %v705
        %1496 = vmatpush1.msra.mxu0 %v704
        %1497 = vmatprep.subr.mxu0 %v701
        %1498 = vmatpush1.msra.mxu0 %v700
        %1499 = vmatprep.subr.mxu0 0.0
        %1500 = vmatpush2.msra.mxu0 0.0
        %1501 = vmatprep.subr.mxu0 0.0
        %1502 = vmatpush2.msra.mxu0 0.0
        %1503 = vmatprep.subr.mxu0 0.0
        %1504 = vmatpush2.msra.mxu0 0.0
        %1505 = vmatprep.subr.mxu0 0.0
        %1506 = vmatpush2.msra.mxu0 0.0
        %1507 = vmatprep.subr.mxu0 0.0
        %1508 = vmatpush2.msra.mxu0 0.0
        %1509 = vmatprep.subr.mxu0 0.0
        %1510 = vmatpush2.msra.mxu0 0.0
        %1511 = vmatprep.subr.mxu0 0.0
        %1512 = vmatpush2.msra.mxu0 0.0
        %1513 = vmatprep.subr.mxu0 0.0
        %1514 = vmatpush2.msra.mxu0 0.0
        %1515 = vmatprep.subr.mxu0 0.0
        %1516 = vmatpush2.msra.mxu0 0.0
        %1517 = vmatprep.subr.mxu0 0.0
        %1518 = vmatpush2.msra.mxu0 0.0
        %1519 = vmatprep.subr.mxu0 0.0
        %1520 = vmatpush2.msra.mxu0 0.0
        %1521 = vmatprep.subr.mxu0 0.0
        %1522 = vmatpush2.msra.mxu0 0.0
        %1523 = vmatprep.subr.mxu0 0.0
        %1524 = vmatpush2.msra.mxu0 0.0
        %1525 = vmatprep.subr.mxu0 0.0
        %1526 = vmatpush2.msra.mxu0 0.0
        %1527 = vmatprep.subr.mxu0 0.0
        %1528 = vmatpush2.msra.mxu0 0.0
        %1529 = vmatprep.subr.mxu0 0.0
        %1530 = vmatpush2.msra.mxu0 0.0
        %1531 = vmatprep.mubr.f32.mxu0 0.0
        %1532 = vmatmul.mubr.f32.gmra.mxu0 %v1457
        %v1533 = vpop.f32.mrf.mxu0
        %v1534 = vadd.f32 0.0, %v1533
        %v1535 = vpop.f32.mrf.mxu0
        %v1536 = vadd.f32 0.0, %v1535
        %1537 = vdwg.mxu0
        %1538 = vmatprep.subr.mxu0 %v763
        %1539 = vmatpush1.msra.mxu0 %v762
        %1540 = vmatprep.subr.mxu0 %v759
        %1541 = vmatpush1.msra.mxu0 %v758
        %1542 = vmatprep.subr.mxu0 %v755
        %1543 = vmatpush1.msra.mxu0 %v754
        %1544 = vmatprep.subr.mxu0 %v751
        %1545 = vmatpush1.msra.mxu0 %v750
        %1546 = vmatprep.subr.mxu0 %v747
        %1547 = vmatpush1.msra.mxu0 %v746
        %1548 = vmatprep.subr.mxu0 %v743
        %1549 = vmatpush1.msra.mxu0 %v742
        %1550 = vmatprep.subr.mxu0 %v739
        %1551 = vmatpush1.msra.mxu0 %v738
        %1552 = vmatprep.subr.mxu0 %v735
        %1553 = vmatpush1.msra.mxu0 %v734
        %1554 = vmatprep.subr.mxu0 %v731
        %1555 = vmatpush1.msra.mxu0 %v730
        %1556 = vmatprep.subr.mxu0 %v727
        %1557 = vmatpush1.msra.mxu0 %v726
        %1558 = vmatprep.subr.mxu0 %v723
        %1559 = vmatpush1.msra.mxu0 %v722
        %1560 = vmatprep.subr.mxu0 %v719
        %1561 = vmatpush1.msra.mxu0 %v718
        %1562 = vmatprep.subr.mxu0 %v715
        %1563 = vmatpush1.msra.mxu0 %v714
        %1564 = vmatprep.subr.mxu0 %v711
        %1565 = vmatpush1.msra.mxu0 %v710
        %1566 = vmatprep.subr.mxu0 %v707
        %1567 = vmatpush1.msra.mxu0 %v706
        %1568 = vmatprep.subr.mxu0 %v703
        %1569 = vmatpush1.msra.mxu0 %v702
        %1570 = vmatprep.subr.mxu0 0.0
        %1571 = vmatpush2.msra.mxu0 0.0
        %1572 = vmatprep.subr.mxu0 0.0
        %1573 = vmatpush2.msra.mxu0 0.0
        %1574 = vmatprep.subr.mxu0 0.0
        %1575 = vmatpush2.msra.mxu0 0.0
        %1576 = vmatprep.subr.mxu0 0.0
        %1577 = vmatpush2.msra.mxu0 0.0
        %1578 = vmatprep.subr.mxu0 0.0
        %1579 = vmatpush2.msra.mxu0 0.0
        %1580 = vmatprep.subr.mxu0 0.0
        %1581 = vmatpush2.msra.mxu0 0.0
        %1582 = vmatprep.subr.mxu0 0.0
        %1583 = vmatpush2.msra.mxu0 0.0
        %1584 = vmatprep.subr.mxu0 0.0
        %1585 = vmatpush2.msra.mxu0 0.0
        %1586 = vmatprep.subr.mxu0 0.0
        %1587 = vmatpush2.msra.mxu0 0.0
        %1588 = vmatprep.subr.mxu0 0.0
        %1589 = vmatpush2.msra.mxu0 0.0
        %1590 = vmatprep.subr.mxu0 0.0
        %1591 = vmatpush2.msra.mxu0 0.0
        %1592 = vmatprep.subr.mxu0 0.0
        %1593 = vmatpush2.msra.mxu0 0.0
        %1594 = vmatprep.subr.mxu0 0.0
        %1595 = vmatpush2.msra.mxu0 0.0
        %1596 = vmatprep.subr.mxu0 0.0
        %1597 = vmatpush2.msra.mxu0 0.0
        %1598 = vmatprep.subr.mxu0 0.0
        %1599 = vmatpush2.msra.mxu0 0.0
        %1600 = vmatprep.subr.mxu0 0.0
        %1601 = vmatpush2.msra.mxu0 0.0
        %1602 = vmatprep.mubr.f32.mxu0 0.0
        %1603 = vmatmul.mubr.f32.gmra.mxu0 %v1457
        %v1604 = vpop.f32.mrf.mxu0
        %v1605 = vadd.f32 0.0, %v1604
        %v1606 = vpop.f32.mrf.mxu0
        %v1607 = vadd.f32 0.0, %v1606
        %1608 = vdwg.mxu0
        %v1609 = vadd.f32 %v1463, %v1534
        %v1610 = vadd.f32 %v1464, %v1536
        %v1611 = vadd.f32 %v1465, %v1605
        %v1612 = vadd.f32 %v1466, %v1607
        %v1613 = vmul.f32 %v1609, 0.5
        %v1614 = vtanh.pop %v1613
        %v1615 = vmul.f32 %v1614, 0.5
        %v1616 = vadd.f32 %v1615, 0.5
        %v1617 = vmul.f32 %v1610, 0.5
        %v1618 = vtanh.pop %v1617
        %v1619 = vmul.f32 %v1618, 0.5
        %v1620 = vadd.f32 %v1619, 0.5
        %v1621 = vtanh.pop %v1611
        %v1622 = vmul.f32 %v1612, 0.5
        %v1623 = vtanh.pop %v1622
        %v1624 = vmul.f32 %v1623, 0.5
        %v1625 = vadd.f32 %v1624, 0.5
        %v1626 = vmul.f32 %v1620, %v1455
        %v1627 = vmul.f32 %v1616, %v1621
        %v1628 = vadd.f32 %v1626, %v1627
        %v1629 = vtanh.pop %v1628
        %v1630 = vmul.f32 %v1625, %v1629
        %s1631 = smul.u32 %s766, 5
        %s1632 = sadd.s32 %s764, %s1631
        %s1633 = smul.u32 %s1632, 4
        %s1634 = smul.addr %s1633, 8
        %s1635 = scalar_lea.vmem [#allocation2], %s1634
        %v1636 = vld [vmem:[%s1635] sm:$0xff]
        %v1637 = vld [vmem:[%s1635 + $0x8] sm:$0xff]
        %v1638 = vld [vmem:[%s1635 + $0x10] sm:$0xff]
        %v1639 = vld [vmem:[%s1635 + $0x18] sm:$0xff]
        %1640 = vmatprep.subr.mxu0 %v761
        %1641 = vmatpush1.msra.mxu0 %v760
        %1642 = vmatprep.subr.mxu0 %v757
        %1643 = vmatpush1.msra.mxu0 %v756
        %1644 = vmatprep.subr.mxu0 %v753
        %1645 = vmatpush1.msra.mxu0 %v752
        %1646 = vmatprep.subr.mxu0 %v749
        %1647 = vmatpush1.msra.mxu0 %v748
        %1648 = vmatprep.subr.mxu0 %v745
        %1649 = vmatpush1.msra.mxu0 %v744
        %1650 = vmatprep.subr.mxu0 %v741
        %1651 = vmatpush1.msra.mxu0 %v740
        %1652 = vmatprep.subr.mxu0 %v737
        %1653 = vmatpush1.msra.mxu0 %v736
        %1654 = vmatprep.subr.mxu0 %v733
        %1655 = vmatpush1.msra.mxu0 %v732
        %1656 = vmatprep.subr.mxu0 %v729
        %1657 = vmatpush1.msra.mxu0 %v728
        %1658 = vmatprep.subr.mxu0 %v725
        %1659 = vmatpush1.msra.mxu0 %v724
        %1660 = vmatprep.subr.mxu0 %v721
        %1661 = vmatpush1.msra.mxu0 %v720
        %1662 = vmatprep.subr.mxu0 %v717
        %1663 = vmatpush1.msra.mxu0 %v716
        %1664 = vmatprep.subr.mxu0 %v713
        %1665 = vmatpush1.msra.mxu0 %v712
        %1666 = vmatprep.subr.mxu0 %v709
        %1667 = vmatpush1.msra.mxu0 %v708
        %1668 = vmatprep.subr.mxu0 %v705
        %1669 = vmatpush1.msra.mxu0 %v704
        %1670 = vmatprep.subr.mxu0 %v701
        %1671 = vmatpush1.msra.mxu0 %v700
        %1672 = vmatprep.subr.mxu0 0.0
        %1673 = vmatpush2.msra.mxu0 0.0
        %1674 = vmatprep.subr.mxu0 0.0
        %1675 = vmatpush2.msra.mxu0 0.0
        %1676 = vmatprep.subr.mxu0 0.0
        %1677 = vmatpush2.msra.mxu0 0.0
        %1678 = vmatprep.subr.mxu0 0.0
        %1679 = vmatpush2.msra.mxu0 0.0
        %1680 = vmatprep.subr.mxu0 0.0
        %1681 = vmatpush2.msra.mxu0 0.0
        %1682 = vmatprep.subr.mxu0 0.0
        %1683 = vmatpush2.msra.mxu0 0.0
        %1684 = vmatprep.subr.mxu0 0.0
        %1685 = vmatpush2.msra.mxu0 0.0
        %1686 = vmatprep.subr.mxu0 0.0
        %1687 = vmatpush2.msra.mxu0 0.0
        %1688 = vmatprep.subr.mxu0 0.0
        %1689 = vmatpush2.msra.mxu0 0.0
        %1690 = vmatprep.subr.mxu0 0.0
        %1691 = vmatpush2.msra.mxu0 0.0
        %1692 = vmatprep.subr.mxu0 0.0
        %1693 = vmatpush2.msra.mxu0 0.0
        %1694 = vmatprep.subr.mxu0 0.0
        %1695 = vmatpush2.msra.mxu0 0.0
        %1696 = vmatprep.subr.mxu0 0.0
        %1697 = vmatpush2.msra.mxu0 0.0
        %1698 = vmatprep.subr.mxu0 0.0
        %1699 = vmatpush2.msra.mxu0 0.0
        %1700 = vmatprep.subr.mxu0 0.0
        %1701 = vmatpush2.msra.mxu0 0.0
        %1702 = vmatprep.subr.mxu0 0.0
        %1703 = vmatpush2.msra.mxu0 0.0
        %1704 = vmatprep.mubr.f32.mxu0 0.0
        %1705 = vmatmul.mubr.f32.gmra.mxu0 %v1630
        %v1706 = vpop.f32.mrf.mxu0
        %v1707 = vadd.f32 0.0, %v1706
        %v1708 = vpop.f32.mrf.mxu0
        %v1709 = vadd.f32 0.0, %v1708
        %1710 = vdwg.mxu0
        %1711 = vmatprep.subr.mxu0 %v763
        %1712 = vmatpush1.msra.mxu0 %v762
        %1713 = vmatprep.subr.mxu0 %v759
        %1714 = vmatpush1.msra.mxu0 %v758
        %1715 = vmatprep.subr.mxu0 %v755
        %1716 = vmatpush1.msra.mxu0 %v754
        %1717 = vmatprep.subr.mxu0 %v751
        %1718 = vmatpush1.msra.mxu0 %v750
        %1719 = vmatprep.subr.mxu0 %v747
        %1720 = vmatpush1.msra.mxu0 %v746
        %1721 = vmatprep.subr.mxu0 %v743
        %1722 = vmatpush1.msra.mxu0 %v742
        %1723 = vmatprep.subr.mxu0 %v739
        %1724 = vmatpush1.msra.mxu0 %v738
        %1725 = vmatprep.subr.mxu0 %v735
        %1726 = vmatpush1.msra.mxu0 %v734
        %1727 = vmatprep.subr.mxu0 %v731
        %1728 = vmatpush1.msra.mxu0 %v730
        %1729 = vmatprep.subr.mxu0 %v727
        %1730 = vmatpush1.msra.mxu0 %v726
        %1731 = vmatprep.subr.mxu0 %v723
        %1732 = vmatpush1.msra.mxu0 %v722
        %1733 = vmatprep.subr.mxu0 %v719
        %1734 = vmatpush1.msra.mxu0 %v718
        %1735 = vmatprep.subr.mxu0 %v715
        %1736 = vmatpush1.msra.mxu0 %v714
        %1737 = vmatprep.subr.mxu0 %v711
        %1738 = vmatpush1.msra.mxu0 %v710
        %1739 = vmatprep.subr.mxu0 %v707
        %1740 = vmatpush1.msra.mxu0 %v706
        %1741 = vmatprep.subr.mxu0 %v703
        %1742 = vmatpush1.msra.mxu0 %v702
        %1743 = vmatprep.subr.mxu0 0.0
        %1744 = vmatpush2.msra.mxu0 0.0
        %1745 = vmatprep.subr.mxu0 0.0
        %1746 = vmatpush2.msra.mxu0 0.0
        %1747 = vmatprep.subr.mxu0 0.0
        %1748 = vmatpush2.msra.mxu0 0.0
        %1749 = vmatprep.subr.mxu0 0.0
        %1750 = vmatpush2.msra.mxu0 0.0
        %1751 = vmatprep.subr.mxu0 0.0
        %1752 = vmatpush2.msra.mxu0 0.0
        %1753 = vmatprep.subr.mxu0 0.0
        %1754 = vmatpush2.msra.mxu0 0.0
        %1755 = vmatprep.subr.mxu0 0.0
        %1756 = vmatpush2.msra.mxu0 0.0
        %1757 = vmatprep.subr.mxu0 0.0
        %1758 = vmatpush2.msra.mxu0 0.0
        %1759 = vmatprep.subr.mxu0 0.0
        %1760 = vmatpush2.msra.mxu0 0.0
        %1761 = vmatprep.subr.mxu0 0.0
        %1762 = vmatpush2.msra.mxu0 0.0
        %1763 = vmatprep.subr.mxu0 0.0
        %1764 = vmatpush2.msra.mxu0 0.0
        %1765 = vmatprep.subr.mxu0 0.0
        %1766 = vmatpush2.msra.mxu0 0.0
        %1767 = vmatprep.subr.mxu0 0.0
        %1768 = vmatpush2.msra.mxu0 0.0
        %1769 = vmatprep.subr.mxu0 0.0
        %1770 = vmatpush2.msra.mxu0 0.0
        %1771 = vmatprep.subr.mxu0 0.0
        %1772 = vmatpush2.msra.mxu0 0.0
        %1773 = vmatprep.subr.mxu0 0.0
        %1774 = vmatpush2.msra.mxu0 0.0
        %1775 = vmatprep.mubr.f32.mxu0 0.0
        %1776 = vmatmul.mubr.f32.gmra.mxu0 %v1630
        %v1777 = vpop.f32.mrf.mxu0
        %v1778 = vadd.f32 0.0, %v1777
        %v1779 = vpop.f32.mrf.mxu0
        %v1780 = vadd.f32 0.0, %v1779
        %1781 = vdwg.mxu0
        %v1782 = vadd.f32 %v1636, %v1707
        %v1783 = vadd.f32 %v1637, %v1709
        %v1784 = vadd.f32 %v1638, %v1778
        %v1785 = vadd.f32 %v1639, %v1780
        %v1786 = vmul.f32 %v1782, 0.5
        %v1787 = vtanh.pop %v1786
        %v1788 = vmul.f32 %v1787, 0.5
        %v1789 = vadd.f32 %v1788, 0.5
        %v1790 = vmul.f32 %v1783, 0.5
        %v1791 = vtanh.pop %v1790
        %v1792 = vmul.f32 %v1791, 0.5
        %v1793 = vadd.f32 %v1792, 0.5
        %v1794 = vtanh.pop %v1784
        %v1795 = vmul.f32 %v1785, 0.5
        %v1796 = vtanh.pop %v1795
        %v1797 = vmul.f32 %v1796, 0.5
        %v1798 = vadd.f32 %v1797, 0.5
        %v1799 = vmul.f32 %v1793, %v1628
        %v1800 = vmul.f32 %v1789, %v1794
        %v1801 = vadd.f32 %v1799, %v1800
        %v1802 = vtanh.pop %v1801
        %v1803 = vmul.f32 %v1798, %v1802
        %s1804 = smul.u32 %s766, 6
        %s1805 = sadd.s32 %s764, %s1804
        %s1806 = smul.u32 %s1805, 4
        %s1807 = smul.addr %s1806, 8
        %s1808 = scalar_lea.vmem [#allocation2], %s1807
        %v1809 = vld [vmem:[%s1808] sm:$0xff]
        %v1810 = vld [vmem:[%s1808 + $0x8] sm:$0xff]
        %v1811 = vld [vmem:[%s1808 + $0x10] sm:$0xff]
        %v1812 = vld [vmem:[%s1808 + $0x18] sm:$0xff]
        %1813 = vmatprep.subr.mxu0 %v761
        %1814 = vmatpush1.msra.mxu0 %v760
        %1815 = vmatprep.subr.mxu0 %v757
        %1816 = vmatpush1.msra.mxu0 %v756
        %1817 = vmatprep.subr.mxu0 %v753
        %1818 = vmatpush1.msra.mxu0 %v752
        %1819 = vmatprep.subr.mxu0 %v749
        %1820 = vmatpush1.msra.mxu0 %v748
        %1821 = vmatprep.subr.mxu0 %v745
        %1822 = vmatpush1.msra.mxu0 %v744
        %1823 = vmatprep.subr.mxu0 %v741
        %1824 = vmatpush1.msra.mxu0 %v740
        %1825 = vmatprep.subr.mxu0 %v737
        %1826 = vmatpush1.msra.mxu0 %v736
        %1827 = vmatprep.subr.mxu0 %v733
        %1828 = vmatpush1.msra.mxu0 %v732
        %1829 = vmatprep.subr.mxu0 %v729
        %1830 = vmatpush1.msra.mxu0 %v728
        %1831 = vmatprep.subr.mxu0 %v725
        %1832 = vmatpush1.msra.mxu0 %v724
        %1833 = vmatprep.subr.mxu0 %v721
        %1834 = vmatpush1.msra.mxu0 %v720
        %1835 = vmatprep.subr.mxu0 %v717
        %1836 = vmatpush1.msra.mxu0 %v716
        %1837 = vmatprep.subr.mxu0 %v713
        %1838 = vmatpush1.msra.mxu0 %v712
        %1839 = vmatprep.subr.mxu0 %v709
        %1840 = vmatpush1.msra.mxu0 %v708
        %1841 = vmatprep.subr.mxu0 %v705
        %1842 = vmatpush1.msra.mxu0 %v704
        %1843 = vmatprep.subr.mxu0 %v701
        %1844 = vmatpush1.msra.mxu0 %v700
        %1845 = vmatprep.subr.mxu0 0.0
        %1846 = vmatpush2.msra.mxu0 0.0
        %1847 = vmatprep.subr.mxu0 0.0
        %1848 = vmatpush2.msra.mxu0 0.0
        %1849 = vmatprep.subr.mxu0 0.0
        %1850 = vmatpush2.msra.mxu0 0.0
        %1851 = vmatprep.subr.mxu0 0.0
        %1852 = vmatpush2.msra.mxu0 0.0
        %1853 = vmatprep.subr.mxu0 0.0
        %1854 = vmatpush2.msra.mxu0 0.0
        %1855 = vmatprep.subr.mxu0 0.0
        %1856 = vmatpush2.msra.mxu0 0.0
        %1857 = vmatprep.subr.mxu0 0.0
        %1858 = vmatpush2.msra.mxu0 0.0
        %1859 = vmatprep.subr.mxu0 0.0
        %1860 = vmatpush2.msra.mxu0 0.0
        %1861 = vmatprep.subr.mxu0 0.0
        %1862 = vmatpush2.msra.mxu0 0.0
        %1863 = vmatprep.subr.mxu0 0.0
        %1864 = vmatpush2.msra.mxu0 0.0
        %1865 = vmatprep.subr.mxu0 0.0
        %1866 = vmatpush2.msra.mxu0 0.0
        %1867 = vmatprep.subr.mxu0 0.0
        %1868 = vmatpush2.msra.mxu0 0.0
        %1869 = vmatprep.subr.mxu0 0.0
        %1870 = vmatpush2.msra.mxu0 0.0
        %1871 = vmatprep.subr.mxu0 0.0
        %1872 = vmatpush2.msra.mxu0 0.0
        %1873 = vmatprep.subr.mxu0 0.0
        %1874 = vmatpush2.msra.mxu0 0.0
        %1875 = vmatprep.subr.mxu0 0.0
        %1876 = vmatpush2.msra.mxu0 0.0
        %1877 = vmatprep.mubr.f32.mxu0 0.0
        %1878 = vmatmul.mubr.f32.gmra.mxu0 %v1803
        %v1879 = vpop.f32.mrf.mxu0
        %v1880 = vadd.f32 0.0, %v1879
        %v1881 = vpop.f32.mrf.mxu0
        %v1882 = vadd.f32 0.0, %v1881
        %1883 = vdwg.mxu0
        %1884 = vmatprep.subr.mxu0 %v763
        %1885 = vmatpush1.msra.mxu0 %v762
        %1886 = vmatprep.subr.mxu0 %v759
        %1887 = vmatpush1.msra.mxu0 %v758
        %1888 = vmatprep.subr.mxu0 %v755
        %1889 = vmatpush1.msra.mxu0 %v754
        %1890 = vmatprep.subr.mxu0 %v751
        %1891 = vmatpush1.msra.mxu0 %v750
        %1892 = vmatprep.subr.mxu0 %v747
        %1893 = vmatpush1.msra.mxu0 %v746
        %1894 = vmatprep.subr.mxu0 %v743
        %1895 = vmatpush1.msra.mxu0 %v742
        %1896 = vmatprep.subr.mxu0 %v739
        %1897 = vmatpush1.msra.mxu0 %v738
        %1898 = vmatprep.subr.mxu0 %v735
        %1899 = vmatpush1.msra.mxu0 %v734
        %1900 = vmatprep.subr.mxu0 %v731
        %1901 = vmatpush1.msra.mxu0 %v730
        %1902 = vmatprep.subr.mxu0 %v727
        %1903 = vmatpush1.msra.mxu0 %v726
        %1904 = vmatprep.subr.mxu0 %v723
        %1905 = vmatpush1.msra.mxu0 %v722
        %1906 = vmatprep.subr.mxu0 %v719
        %1907 = vmatpush1.msra.mxu0 %v718
        %1908 = vmatprep.subr.mxu0 %v715
        %1909 = vmatpush1.msra.mxu0 %v714
        %1910 = vmatprep.subr.mxu0 %v711
        %1911 = vmatpush1.msra.mxu0 %v710
        %1912 = vmatprep.subr.mxu0 %v707
        %1913 = vmatpush1.msra.mxu0 %v706
        %1914 = vmatprep.subr.mxu0 %v703
        %1915 = vmatpush1.msra.mxu0 %v702
        %1916 = vmatprep.subr.mxu0 0.0
        %1917 = vmatpush2.msra.mxu0 0.0
        %1918 = vmatprep.subr.mxu0 0.0
        %1919 = vmatpush2.msra.mxu0 0.0
        %1920 = vmatprep.subr.mxu0 0.0
        %1921 = vmatpush2.msra.mxu0 0.0
        %1922 = vmatprep.subr.mxu0 0.0
        %1923 = vmatpush2.msra.mxu0 0.0
        %1924 = vmatprep.subr.mxu0 0.0
        %1925 = vmatpush2.msra.mxu0 0.0
        %1926 = vmatprep.subr.mxu0 0.0
        %1927 = vmatpush2.msra.mxu0 0.0
        %1928 = vmatprep.subr.mxu0 0.0
        %1929 = vmatpush2.msra.mxu0 0.0
        %1930 = vmatprep.subr.mxu0 0.0
        %1931 = vmatpush2.msra.mxu0 0.0
        %1932 = vmatprep.subr.mxu0 0.0
        %1933 = vmatpush2.msra.mxu0 0.0
        %1934 = vmatprep.subr.mxu0 0.0
        %1935 = vmatpush2.msra.mxu0 0.0
        %1936 = vmatprep.subr.mxu0 0.0
        %1937 = vmatpush2.msra.mxu0 0.0
        %1938 = vmatprep.subr.mxu0 0.0
        %1939 = vmatpush2.msra.mxu0 0.0
        %1940 = vmatprep.subr.mxu0 0.0
        %1941 = vmatpush2.msra.mxu0 0.0
        %1942 = vmatprep.subr.mxu0 0.0
        %1943 = vmatpush2.msra.mxu0 0.0
        %1944 = vmatprep.subr.mxu0 0.0
        %1945 = vmatpush2.msra.mxu0 0.0
        %1946 = vmatprep.subr.mxu0 0.0
        %1947 = vmatpush2.msra.mxu0 0.0
        %1948 = vmatprep.mubr.f32.mxu0 0.0
        %1949 = vmatmul.mubr.f32.gmra.mxu0 %v1803
        %v1950 = vpop.f32.mrf.mxu0
        %v1951 = vadd.f32 0.0, %v1950
        %v1952 = vpop.f32.mrf.mxu0
        %v1953 = vadd.f32 0.0, %v1952
        %1954 = vdwg.mxu0
        %v1955 = vadd.f32 %v1809, %v1880
        %v1956 = vadd.f32 %v1810, %v1882
        %v1957 = vadd.f32 %v1811, %v1951
        %v1958 = vadd.f32 %v1812, %v1953
        %v1959 = vmul.f32 %v1955, 0.5
        %v1960 = vtanh.pop %v1959
        %v1961 = vmul.f32 %v1960, 0.5
        %v1962 = vadd.f32 %v1961, 0.5
        %v1963 = vmul.f32 %v1956, 0.5
        %v1964 = vtanh.pop %v1963
        %v1965 = vmul.f32 %v1964, 0.5
        %v1966 = vadd.f32 %v1965, 0.5
        %v1967 = vtanh.pop %v1957
        %v1968 = vmul.f32 %v1958, 0.5
        %v1969 = vtanh.pop %v1968
        %v1970 = vmul.f32 %v1969, 0.5
        %v1971 = vadd.f32 %v1970, 0.5
        %v1972 = vmul.f32 %v1966, %v1801
        %v1973 = vmul.f32 %v1962, %v1967
        %v1974 = vadd.f32 %v1972, %v1973
        %v1975 = vtanh.pop %v1974
        %v1976 = vmul.f32 %v1971, %v1975
        %s1977 = smul.u32 %s766, 7
        %s1978 = sadd.s32 %s764, %s1977
        %s1979 = smul.u32 %s1978, 4
        %s1980 = smul.addr %s1979, 8
        %s1981 = scalar_lea.vmem [#allocation2], %s1980
        %v1982 = vld [vmem:[%s1981] sm:$0xff]
        %v1983 = vld [vmem:[%s1981 + $0x8] sm:$0xff]
        %v1984 = vld [vmem:[%s1981 + $0x10] sm:$0xff]
        %v1985 = vld [vmem:[%s1981 + $0x18] sm:$0xff]
        %1986 = vmatprep.subr.mxu0 %v761
        %1987 = vmatpush1.msra.mxu0 %v760
        %1988 = vmatprep.subr.mxu0 %v757
        %1989 = vmatpush1.msra.mxu0 %v756
        %1990 = vmatprep.subr.mxu0 %v753
        %1991 = vmatpush1.msra.mxu0 %v752
        %1992 = vmatprep.subr.mxu0 %v749
        %1993 = vmatpush1.msra.mxu0 %v748
        %1994 = vmatprep.subr.mxu0 %v745
        %1995 = vmatpush1.msra.mxu0 %v744
        %1996 = vmatprep.subr.mxu0 %v741
        %1997 = vmatpush1.msra.mxu0 %v740
        %1998 = vmatprep.subr.mxu0 %v737
        %1999 = vmatpush1.msra.mxu0 %v736
        %2000 = vmatprep.subr.mxu0 %v733
        %2001 = vmatpush1.msra.mxu0 %v732
        %2002 = vmatprep.subr.mxu0 %v729
        %2003 = vmatpush1.msra.mxu0 %v728
        %2004 = vmatprep.subr.mxu0 %v725
        %2005 = vmatpush1.msra.mxu0 %v724
        %2006 = vmatprep.subr.mxu0 %v721
        %2007 = vmatpush1.msra.mxu0 %v720
        %2008 = vmatprep.subr.mxu0 %v717
        %2009 = vmatpush1.msra.mxu0 %v716
        %2010 = vmatprep.subr.mxu0 %v713
        %2011 = vmatpush1.msra.mxu0 %v712
        %2012 = vmatprep.subr.mxu0 %v709
        %2013 = vmatpush1.msra.mxu0 %v708
        %2014 = vmatprep.subr.mxu0 %v705
        %2015 = vmatpush1.msra.mxu0 %v704
        %2016 = vmatprep.subr.mxu0 %v701
        %2017 = vmatpush1.msra.mxu0 %v700
        %2018 = vmatprep.subr.mxu0 0.0
        %2019 = vmatpush2.msra.mxu0 0.0
        %2020 = vmatprep.subr.mxu0 0.0
        %2021 = vmatpush2.msra.mxu0 0.0
        %2022 = vmatprep.subr.mxu0 0.0
        %2023 = vmatpush2.msra.mxu0 0.0
        %2024 = vmatprep.subr.mxu0 0.0
        %2025 = vmatpush2.msra.mxu0 0.0
        %2026 = vmatprep.subr.mxu0 0.0
        %2027 = vmatpush2.msra.mxu0 0.0
        %2028 = vmatprep.subr.mxu0 0.0
        %2029 = vmatpush2.msra.mxu0 0.0
        %2030 = vmatprep.subr.mxu0 0.0
        %2031 = vmatpush2.msra.mxu0 0.0
        %2032 = vmatprep.subr.mxu0 0.0
        %2033 = vmatpush2.msra.mxu0 0.0
        %2034 = vmatprep.subr.mxu0 0.0
        %2035 = vmatpush2.msra.mxu0 0.0
        %2036 = vmatprep.subr.mxu0 0.0
        %2037 = vmatpush2.msra.mxu0 0.0
        %2038 = vmatprep.subr.mxu0 0.0
        %2039 = vmatpush2.msra.mxu0 0.0
        %2040 = vmatprep.subr.mxu0 0.0
        %2041 = vmatpush2.msra.mxu0 0.0
        %2042 = vmatprep.subr.mxu0 0.0
        %2043 = vmatpush2.msra.mxu0 0.0
        %2044 = vmatprep.subr.mxu0 0.0
        %2045 = vmatpush2.msra.mxu0 0.0
        %2046 = vmatprep.subr.mxu0 0.0
        %2047 = vmatpush2.msra.mxu0 0.0
        %2048 = vmatprep.subr.mxu0 0.0
        %2049 = vmatpush2.msra.mxu0 0.0
        %2050 = vmatprep.mubr.f32.mxu0 0.0
        %2051 = vmatmul.mubr.f32.gmra.mxu0 %v1976
        %v2052 = vpop.f32.mrf.mxu0
        %v2053 = vadd.f32 0.0, %v2052
        %v2054 = vpop.f32.mrf.mxu0
        %v2055 = vadd.f32 0.0, %v2054
        %2056 = vdwg.mxu0
        %2057 = vmatprep.subr.mxu0 %v763
        %2058 = vmatpush1.msra.mxu0 %v762
        %2059 = vmatprep.subr.mxu0 %v759
        %2060 = vmatpush1.msra.mxu0 %v758
        %2061 = vmatprep.subr.mxu0 %v755
        %2062 = vmatpush1.msra.mxu0 %v754
        %2063 = vmatprep.subr.mxu0 %v751
        %2064 = vmatpush1.msra.mxu0 %v750
        %2065 = vmatprep.subr.mxu0 %v747
        %2066 = vmatpush1.msra.mxu0 %v746
        %2067 = vmatprep.subr.mxu0 %v743
        %2068 = vmatpush1.msra.mxu0 %v742
        %2069 = vmatprep.subr.mxu0 %v739
        %2070 = vmatpush1.msra.mxu0 %v738
        %2071 = vmatprep.subr.mxu0 %v735
        %2072 = vmatpush1.msra.mxu0 %v734
        %2073 = vmatprep.subr.mxu0 %v731
        %2074 = vmatpush1.msra.mxu0 %v730
        %2075 = vmatprep.subr.mxu0 %v727
        %2076 = vmatpush1.msra.mxu0 %v726
        %2077 = vmatprep.subr.mxu0 %v723
        %2078 = vmatpush1.msra.mxu0 %v722
        %2079 = vmatprep.subr.mxu0 %v719
        %2080 = vmatpush1.msra.mxu0 %v718
        %2081 = vmatprep.subr.mxu0 %v715
        %2082 = vmatpush1.msra.mxu0 %v714
        %2083 = vmatprep.subr.mxu0 %v711
        %2084 = vmatpush1.msra.mxu0 %v710
        %2085 = vmatprep.subr.mxu0 %v707
        %2086 = vmatpush1.msra.mxu0 %v706
        %2087 = vmatprep.subr.mxu0 %v703
        %2088 = vmatpush1.msra.mxu0 %v702
        %2089 = vmatprep.subr.mxu0 0.0
        %2090 = vmatpush2.msra.mxu0 0.0
        %2091 = vmatprep.subr.mxu0 0.0
        %2092 = vmatpush2.msra.mxu0 0.0
        %2093 = vmatprep.subr.mxu0 0.0
        %2094 = vmatpush2.msra.mxu0 0.0
        %2095 = vmatprep.subr.mxu0 0.0
        %2096 = vmatpush2.msra.mxu0 0.0
        %2097 = vmatprep.subr.mxu0 0.0
        %2098 = vmatpush2.msra.mxu0 0.0
        %2099 = vmatprep.subr.mxu0 0.0
        %2100 = vmatpush2.msra.mxu0 0.0
        %2101 = vmatprep.subr.mxu0 0.0
        %2102 = vmatpush2.msra.mxu0 0.0
        %2103 = vmatprep.subr.mxu0 0.0
        %2104 = vmatpush2.msra.mxu0 0.0
        %2105 = vmatprep.subr.mxu0 0.0
        %2106 = vmatpush2.msra.mxu0 0.0
        %2107 = vmatprep.subr.mxu0 0.0
        %2108 = vmatpush2.msra.mxu0 0.0
        %2109 = vmatprep.subr.mxu0 0.0
        %2110 = vmatpush2.msra.mxu0 0.0
        %2111 = vmatprep.subr.mxu0 0.0
        %2112 = vmatpush2.msra.mxu0 0.0
        %2113 = vmatprep.subr.mxu0 0.0
        %2114 = vmatpush2.msra.mxu0 0.0
        %2115 = vmatprep.subr.mxu0 0.0
        %2116 = vmatpush2.msra.mxu0 0.0
        %2117 = vmatprep.subr.mxu0 0.0
        %2118 = vmatpush2.msra.mxu0 0.0
        %2119 = vmatprep.subr.mxu0 0.0
        %2120 = vmatpush2.msra.mxu0 0.0
        %2121 = vmatprep.mubr.f32.mxu0 0.0
        %2122 = vmatmul.mubr.f32.gmra.mxu0 %v1976
        %v2123 = vpop.f32.mrf.mxu0
        %v2124 = vadd.f32 0.0, %v2123
        %v2125 = vpop.f32.mrf.mxu0
        %v2126 = vadd.f32 0.0, %v2125
        %2127 = vdwg.mxu0
        %v2128 = vadd.f32 %v1982, %v2053
        %v2129 = vadd.f32 %v1983, %v2055
        %v2130 = vadd.f32 %v1984, %v2124
        %v2131 = vadd.f32 %v1985, %v2126
        %v2132 = vmul.f32 %v2128, 0.5
        %v2133 = vtanh.pop %v2132
        %v2134 = vmul.f32 %v2133, 0.5
        %v2135 = vadd.f32 %v2134, 0.5
        %v2136 = vmul.f32 %v2129, 0.5
        %v2137 = vtanh.pop %v2136
        %v2138 = vmul.f32 %v2137, 0.5
        %v2139 = vadd.f32 %v2138, 0.5
        %v2140 = vtanh.pop %v2130
        %v2141 = vmul.f32 %v2131, 0.5
        %v2142 = vtanh.pop %v2141
        %v2143 = vmul.f32 %v2142, 0.5
        %v2144 = vadd.f32 %v2143, 0.5
        %v2145 = vmul.f32 %v2139, %v1974
        %v2146 = vmul.f32 %v2135, %v2140
        %v2147 = vadd.f32 %v2145, %v2146
        %v2148 = vtanh.pop %v2147
        %v2149 = vmul.f32 %v2144, %v2148
        %2150 = vst [vmem:[#allocation3] sm:$0xff] %v2149
        %2151 = vst [vmem:[#allocation4] sm:$0xff] %v2147
        %2152 = vst [vmem:[%s341] sm:$0xff] %v2149
        %p2153 = scmp.lt.s32.totalorder %s25, 1
        %s2154 = scalar_select %p2153, %s25, 1
        %s2155 = smul.addr %s2154, 8
        %s2156 = scalar_lea.vmem %s4, %s2155
        // Predicated region
        $region49: #{encoder_forward.2} parent=35 // pred_check
          %p2157 = pneg %p165
        $region50: #{encoder_forward.2} parent=35 // pred_check_branch
          %2159 = sbr.rel (%p2157) target = $region52
        $region51: #{encoder_forward.2} parent=35 // pred_region
          _
        $region52: #{encoder_forward.2} parent=35 // pred_fallthru
          _
      $region36: #{encoder_forward.2} parent=5 // pred_fallthru
        _
      %p2160 = scmp.le.s32.totalorder 2, %s16
      // Predicated region
      $region53: #{encoder_forward.2} parent=5 // pred_check
        %p2161 = pneg %p2160
      $region54: #{encoder_forward.2} parent=5 // pred_check_branch
        %2163 = sbr.rel (%p2161) target = $region56
      $region55: #{encoder_forward.2} parent=5 // pred_region
        %s2164 = ssub.s32 %s16, 2
        // Predicated region
        $region57: #{encoder_forward.2} parent=55 // pred_check
          %p2165 = pneg %p171
        $region58: #{encoder_forward.2} parent=55 // pred_check_branch
          %2167 = sbr.rel (%p2165) target = $region60
        $region59: #{encoder_forward.2} parent=55 // pred_region
          %p2168 = scmp.lt.s32.totalorder %s27, 1
          %s2169 = scalar_select %p2168, %s27, 1
          %s2170 = smul.addr %s2169, 8
          %s2171 = scalar_lea.vmem %s4, %s2170
        $region60: #{encoder_forward.2} parent=55 // pred_fallthru
          _
      $region56: #{encoder_forward.2} parent=5 // pred_fallthru
        _
    $region6: #{encoder_forward.2} parent=1 // loop_footer
      %s20 = sadd.s32 1, %s16
    $region7: #{encoder_forward.2} parent=1 // loop_footer_branch
      %15 = sbr.rel target = $region3
    $region8: #{encoder_forward.2} parent=1 // loop_exit
      _
    %2172 = vsyncpa [#allocation6], 1
    %s2173 = scalar_lea.sflag [#allocation6], 1
    %2174 = vsyncpa %s2173, 1
    %2175 = vsyncpa [#allocation8], 1
    %s2176 = scalar_lea.sflag [#allocation8], 1
    %2177 = vsyncpa %s2176, 1

</llo_original>
